<compile_context>
chip_gen: v7x
topology: tpu7x:2x2x1
jax: 0.10.0
libtpu: 0.0.40
codegen_flags: <defaults>
</compile_context>

<pallas_src>
import numpy as np

import jax
import jax.numpy as jnp
from jax import lax
from jax.experimental import pallas as pl
from jax.experimental.pallas import tpu as pltpu

# ----------------------------- config (small) -------------------------------
NUM_CLASSES = 5
NUM_CONTEXT_PARAMS = 8
CONTEXT_IN = (True, True, True, True, True)
NUM_FILM_HIDDEN_LAYERS = 1
CHANNEL = 1
HIDDEN = 32
MAX_POOL = False  # TODO(synk): max_pool=True branch (F.max_pool2d) not implemented.
KSIZE = 3
STRIDE = 2
PAD = 1
BN_EPS = 1e-5


# ----------------------------- fused Pallas kernel --------------------------
def _condconv_fused_kernel(cols1_ref, w1_ref,
                           s2_ref, w2_ref, s3_ref, w3_ref, s4_ref, w4_ref,
                           scale_ref, shift_ref, fcw_ref, fcb_ref, o_ref):
    """Whole CondConvNet forward on VMEM-resident data.

    cols1 : (N*H1*W1, K*K*Cin)  layer-1 im2col of the external input
    w1    : (K*K*Cin, C)        layer-1 conv weight, rows ordered (kh, kw, cin)
    s{l}  : (K*K, R_out, R_in)  static 0/1 row-gather matrices for layer l
    w{l}  : (K*K, C, C)         per-tap conv weights for layer l
    scale / shift : (4, 1, C)   BN-affine folded with FiLM gamma/beta
    fcw   : (C, num_classes)    fc1 weight (hidden part)
    fcb   : (1, num_classes)    fc1 bias with the context term folded in
    """

    def bn_film_relu(h, layer):
        # BatchNorm2d (batch stats, biased variance) + FiLM + ReLU, with the
        # statistics computed in a single pass over the VMEM-resident slab.
        inv_r = 1.0 / h.shape[0]
        mean = jnp.sum(h, axis=0, keepdims=True) * inv_r
        ex2 = jnp.sum(h * h, axis=0, keepdims=True) * inv_r
        var = ex2 - mean * mean
        s = scale_ref[layer] * lax.rsqrt(var + BN_EPS)      # (1, C), EUP rsqrt
        return jnp.maximum((h - mean) * s + shift_ref[layer], 0.0)

    # Layer 1: plain im2col matmul (conv bias dropped: cancelled by BN mean).
    h = jnp.dot(cols1_ref[...], w1_ref[...], preferred_element_type=jnp.float32)
    h = bn_film_relu(h, 0)

    # Layers 2-4: 3x3 / stride-2 conv expressed as a sum over the 9 taps of
    # (static row-gather matmul) @ (per-tap weight); everything stays in VMEM.
    for layer, (s_ref, w_ref) in enumerate(
            ((s2_ref, w2_ref), (s3_ref, w3_ref), (s4_ref, w4_ref)), start=1):
        acc = None
        for t in range(KSIZE * KSIZE):
            g = jnp.dot(s_ref[t], h, preferred_element_type=jnp.float32)   # (R_out, C)
            z = jnp.dot(g, w_ref[t], preferred_element_type=jnp.float32)   # (R_out, C)
            acc = z if acc is None else acc + z
        h = bn_film_relu(acc, layer)

    # fc1 (the context-params contribution is pre-folded into fcb on the host).
    o_ref[...] = jnp.dot(h, fcw_ref[...], preferred_element_type=jnp.float32) + fcb_ref[...]


# ----------------------------- host-side prep (tiny, one-time) ---------------
def _conv_out(hw):
    return (hw + 2 * PAD - KSIZE) // STRIDE + 1


def im2col_nchw(x_nchw, k=KSIZE, stride=STRIDE, pad=PAD):
    """NCHW -> (N*Ho*Wo, k*k*Cin); rows ordered (n, ho, wo), cols (kh, kw, cin)."""
    n, c, h, w = x_nchw.shape
    ho, wo = _conv_out(h), _conv_out(w)
    xp = jnp.pad(x_nchw, ((0, 0), (0, 0), (pad, pad), (pad, pad)))
    patches = []
    for i in range(k):
        for j in range(k):
            patches.append(xp[:, :, i:i + stride * ho:stride, j:j + stride * wo:stride])
    p = jnp.stack(patches, axis=0).reshape(k, k, n, c, ho, wo)
    p = p.transpose(2, 4, 5, 0, 1, 3)                 # (n, ho, wo, kh, kw, c)
    return p.reshape(n * ho * wo, k * k * c)


def build_selection_mats(n, h, w):
    """Static 0/1 gather matrices for conv layers 2..4 operating on the
    channels-last (N*H*W, C) slab of the previous layer (includes zero-pad
    handling: out-of-bounds taps have all-zero rows)."""
    mats = []
    hi, wi = _conv_out(h), _conv_out(w)               # spatial after layer 1
    for _ in range(3):                                # layers 2, 3, 4
        ho, wo = _conv_out(hi), _conv_out(wi)
        s = np.zeros((KSIZE * KSIZE, n * ho * wo, n * hi * wi), np.float32)
        for kh in range(KSIZE):
            for kw in range(KSIZE):
                t = kh * KSIZE + kw
                for b in range(n):
                    for oh in range(ho):
                        ih = oh * STRIDE - PAD + kh
                        if not 0 <= ih < hi:
                            continue
                        for ow in range(wo):
                            iw = ow * STRIDE - PAD + kw
                            if not 0 <= iw < wi:
                                continue
                            s[t, (b * ho + oh) * wo + ow, (b * hi + ih) * wi + iw] = 1.0
        mats.append(s)
        hi, wi = ho, wo
    return mats, (hi, wi)


def folded_scale_shift(params, ctx):
    """Per-layer (scale, shift) = BN affine folded with FiLM gamma/beta.
    All four FiLM MLPs are evaluated in one batched einsum chain."""
    layers = [params[f"layer{l}"] for l in (1, 2, 3, 4)]
    bn_w = jnp.stack([p["bn_w"] for p in layers])             # (4, C)
    bn_b = jnp.stack([p["bn_b"] for p in layers])             # (4, C)
    w1 = jnp.stack([p["film_w1"] for p in layers])            # (4, 2C, ctx)
    b1 = jnp.stack([p["film_b1"] for p in layers])            # (4, 2C)
    w2 = jnp.stack([p["film_w2"] for p in layers])            # (4, 2C, 2C)
    b2 = jnp.stack([p["film_b2"] for p in layers])            # (4, 2C)
    f = jnp.einsum("loi,i->lo", w1, ctx) + b1
    if NUM_FILM_HIDDEN_LAYERS == 1:
        f = jnp.einsum("loi,li->lo", w2, jnp.maximum(f, 0.0)) + b2
    gamma, beta = f[:, :HIDDEN], f[:, HIDDEN:]
    use = jnp.asarray([float(CONTEXT_IN[l]) for l in range(4)],
                      jnp.float32)[:, None]                   # static config mask
    gamma = use * gamma + (1.0 - use)
    beta = use * beta
    scale = gamma * bn_w
    shift = gamma * bn_b + beta
    return (scale.reshape(4, 1, HIDDEN).astype(jnp.float32),
            shift.reshape(4, 1, HIDDEN).astype(jnp.float32))


def cond_conv_net_forward(x, params):
    n, c, h, w = x.shape
    ctx = params["context_params"]

    # one-time conversion of the external NCHW input for layer 1
    cols1 = im2col_nchw(x)                                    # (N*H1*W1, 9*Cin)

    sel, final_hw = build_selection_mats(n, h, w)
    assert final_hw == (1, 1), "fc1 assumes the four stride-2 convs collapse spatial to 1x1"
    s2, s3, s4 = (jnp.asarray(s) for s in sel)

    w1 = params["layer1"]["conv_w"].transpose(2, 3, 1, 0).reshape(KSIZE * KSIZE * c, HIDDEN)
    w2, w3, w4 = (params[f"layer{l}"]["conv_w"].transpose(2, 3, 1, 0)
                  .reshape(KSIZE * KSIZE, HIDDEN, HIDDEN) for l in (2, 3, 4))
    # conv biases of layers 1-4 are intentionally unused: with batch-statistic
    # BatchNorm the per-channel bias is exactly cancelled by the mean subtraction.

    scale, shift = folded_scale_shift(params, ctx)            # (4, 1, C) each

    fcw = params["fc1_w"][:, :HIDDEN].T                       # (C, num_classes)
    fcb = params["fc1_b"]
    if CONTEXT_IN[4]:
        fcb = fcb + params["fc1_w"][:, HIDDEN:] @ ctx         # fold context concat
    fcb = fcb.reshape(1, NUM_CLASSES).astype(jnp.float32)

    # Single fused kernel: no grid -> one invocation, every operand is a whole
    # array resident in VMEM (total ~1 MiB, far under any generation's limit).
    # TODO(synk): for large batch on v7x, add a row-tiled "parallel" grid axis
    # with a cross-core combine for the BN statistics.
    return pl.pallas_call(
        _condconv_fused_kernel,
        out_shape=jax.ShapeDtypeStruct((n, NUM_CLASSES), jnp.float32),
        compiler_params=pltpu.CompilerParams(vmem_limit_bytes=32 * 1024 * 1024),
    )(cols1.astype(jnp.float32), w1, s2, w2, s3, w3, s4, w4, scale, shift, fcw, fcb)


# ----------------------------- reference (for sanity) ------------------------
def film_mlp(ctx, w1, b1, w2, b2):
    f = w1 @ ctx + b1
    if NUM_FILM_HIDDEN_LAYERS == 1:
        f = w2 @ jnp.maximum(f, 0.0) + b2
    return f


def reference_forward(x, params):
    ctx = params["context_params"]
    h = x
    for li in range(4):
        p = params[f"layer{li + 1}"]
        h = lax.conv_general_dilated(
            h, p["conv_w"], window_strides=(STRIDE, STRIDE),
            padding=((PAD, PAD), (PAD, PAD)),
            dimension_numbers=("NCHW", "OIHW", "NCHW"),
        ) + p["conv_b"][None, :, None, None]
        mean = jnp.mean(h, axis=(0, 2, 3), keepdims=True)
        var = jnp.mean((h - mean) ** 2, axis=(0, 2, 3), keepdims=True)
        h = (h - mean) * lax.rsqrt(var + BN_EPS)
        h = h * p["bn_w"][None, :, None, None] + p["bn_b"][None, :, None, None]
        if CONTEXT_IN[li]:
            f = film_mlp(ctx, p["film_w1"], p["film_b1"], p["film_w2"], p["film_b2"])
            h = f[:HIDDEN][None, :, None, None] * h + f[HIDDEN:][None, :, None, None]
        h = jnp.maximum(h, 0.0)
    h = h.reshape(h.shape[0], -1)
    if CONTEXT_IN[4]:
        h = jnp.concatenate(
            [h, jnp.broadcast_to(ctx, (h.shape[0], NUM_CONTEXT_PARAMS))], axis=1)
    return h @ params["fc1_w"].T + params["fc1_b"]


# ----------------------------- params ---------------------------------------
def init_params(key):
    def uinit(k, shape, fan_in):
        bound = (1.0 / fan_in) ** 0.5
        return jax.random.uniform(k, shape, jnp.float32, -bound, bound)

    params = {}
    keys = jax.random.split(key, 32)
    ki = iter(range(32))
    in_ch = CHANNEL
    for li in range(4):
        fan_in = in_ch * KSIZE * KSIZE
        params[f"layer{li + 1}"] = {
            "conv_w": uinit(keys[next(ki)], (HIDDEN, in_ch, KSIZE, KSIZE), fan_in),
            "conv_b": uinit(keys[next(ki)], (HIDDEN,), fan_in),
            "bn_w": jnp.ones((HIDDEN,), jnp.float32),
            "bn_b": jnp.zeros((HIDDEN,), jnp.float32),
            "film_w1": uinit(keys[next(ki)], (2 * HIDDEN, NUM_CONTEXT_PARAMS),
                             NUM_CONTEXT_PARAMS),
            "film_b1": uinit(keys[next(ki)], (2 * HIDDEN,), NUM_CONTEXT_PARAMS),
            "film_w2": uinit(keys[next(ki)], (2 * HIDDEN, 2 * HIDDEN), 2 * HIDDEN),
            "film_b2": uinit(keys[next(ki)], (2 * HIDDEN,), 2 * HIDDEN),
        }
        in_ch = HIDDEN
    fc_in = HIDDEN + int(CONTEXT_IN[4]) * NUM_CONTEXT_PARAMS
    params["fc1_w"] = uinit(keys[next(ki)], (NUM_CLASSES, fc_in), fc_in)
    params["fc1_b"] = uinit(keys[next(ki)], (NUM_CLASSES,), fc_in)
    # module initializes context_params to zeros (learned online in CAVIA)
    params["context_params"] = jnp.zeros((NUM_CONTEXT_PARAMS,), jnp.float32)
    return params


# ----------------------------- main ------------------------------------------
if __name__ == "__main__":
    key = jax.random.PRNGKey(0)
    kx, kp = jax.random.split(key)
    x = jax.random.normal(kx, (2, CHANNEL, 16, 16), jnp.float32)  # NCHW
    params = init_params(kp)

    y = jax.block_until_ready(jax.jit(cond_conv_net_forward)(x, params))
    assert y.shape == (2, NUM_CLASSES)
    assert bool(jnp.all(jnp.isfinite(y)))

    y_ref = jax.block_until_ready(jax.jit(reference_forward)(x, params))
    assert bool(jnp.allclose(y, y_ref, atol=2e-3, rtol=2e-3)), (
        "mismatch vs reference: max|dy|="
        + str(float(jnp.max(jnp.abs(y - y_ref)))))

    print("KERNEL_OK")
</pallas_src>

<mosaic_0001>
module attributes {stable_mosaic.version = 11 : i64} {
  func.func @_condconv_fused_kernel(%arg0: memref<128x9xf32, #tpu.memory_space<vmem>>, %arg1: memref<9x32xf32, #tpu.memory_space<vmem>>, %arg2: memref<9x32x128xf32, #tpu.memory_space<vmem>>, %arg3: memref<9x32x32xf32, #tpu.memory_space<vmem>>, %arg4: memref<9x8x32xf32, #tpu.memory_space<vmem>>, %arg5: memref<9x32x32xf32, #tpu.memory_space<vmem>>, %arg6: memref<9x2x8xf32, #tpu.memory_space<vmem>>, %arg7: memref<9x32x32xf32, #tpu.memory_space<vmem>>, %arg8: memref<4x1x32xf32, #tpu.memory_space<vmem>>, %arg9: memref<4x1x32xf32, #tpu.memory_space<vmem>>, %arg10: memref<32x5xf32, #tpu.memory_space<vmem>>, %arg11: memref<1x5xf32, #tpu.memory_space<vmem>>, %arg12: memref<2x5xf32, #tpu.memory_space<vmem>>) attributes {dimension_semantics = [], scalar_prefetch = 0 : i64, scratch_operands = 0 : i64, tpu.core_type = #tpu.core_type<tc>} {
    %c0 = arith.constant 0 : index
    %c0_0 = arith.constant 0 : index
    %0 = vector.load %arg0[%c0, %c0_0] : memref<128x9xf32, #tpu.memory_space<vmem>>, vector<128x9xf32>
    %c0_1 = arith.constant 0 : index
    %c0_2 = arith.constant 0 : index
    %1 = vector.load %arg1[%c0_1, %c0_2] : memref<9x32xf32, #tpu.memory_space<vmem>>, vector<9x32xf32>
    %cst = arith.constant dense<0.000000e+00> : vector<128x32xf32>
    %2 = tpu.matmul %0, %1, %cst {dimension_numbers = #tpu.dot_dimension_numbers<[1], [0], [0], [1], [0, 0, 1, 1], [], []>} : vector<128x9xf32>, vector<9x32xf32>, vector<128x32xf32> -> vector<128x32xf32>
    %cst_3 = arith.constant dense<0.000000e+00> : vector<32xf32>
    %3 = vector.multi_reduction <add>, %2, %cst_3 [0] : vector<128x32xf32> to vector<32xf32>
    %4 = vector.shape_cast %3 : vector<32xf32> to vector<1x32xf32>
    %cst_4 = arith.constant 7.812500e-03 : f32
    %5 = vector.broadcast %cst_4 : f32 to vector<1x32xf32>
    %6 = arith.mulf %4, %5 : vector<1x32xf32>
    %7 = arith.mulf %2, %2 : vector<128x32xf32>
    %cst_5 = arith.constant dense<0.000000e+00> : vector<32xf32>
    %8 = vector.multi_reduction <add>, %7, %cst_5 [0] : vector<128x32xf32> to vector<32xf32>
    %9 = vector.shape_cast %8 : vector<32xf32> to vector<1x32xf32>
    %cst_6 = arith.constant 7.812500e-03 : f32
    %10 = vector.broadcast %cst_6 : f32 to vector<1x32xf32>
    %11 = arith.mulf %9, %10 : vector<1x32xf32>
    %12 = arith.mulf %6, %6 : vector<1x32xf32>
    %13 = arith.subf %11, %12 : vector<1x32xf32>
    %c0_7 = arith.constant 0 : index
    %c0_8 = arith.constant 0 : index
    %c0_9 = arith.constant 0 : index
    %14 = vector.load %arg8[%c0_7, %c0_8, %c0_9] : memref<4x1x32xf32, #tpu.memory_space<vmem>>, vector<1x1x32xf32>
    %15 = vector.shape_cast %14 : vector<1x1x32xf32> to vector<1x32xf32>
    %cst_10 = arith.constant 9.99999974E-6 : f32
    %16 = vector.broadcast %cst_10 : f32 to vector<1x32xf32>
    %17 = arith.addf %13, %16 : vector<1x32xf32>
    %18 = math.rsqrt %17 : vector<1x32xf32>
    %19 = arith.mulf %15, %18 : vector<1x32xf32>
    %20 = vector.broadcast %6 : vector<1x32xf32> to vector<128x32xf32>
    %21 = arith.subf %2, %20 : vector<128x32xf32>
    %22 = vector.broadcast %19 : vector<1x32xf32> to vector<128x32xf32>
    %23 = arith.mulf %21, %22 : vector<128x32xf32>
    %c0_11 = arith.constant 0 : index
    %c0_12 = arith.constant 0 : index
    %c0_13 = arith.constant 0 : index
    %24 = vector.load %arg9[%c0_11, %c0_12, %c0_13] : memref<4x1x32xf32, #tpu.memory_space<vmem>>, vector<1x1x32xf32>
    %25 = vector.shape_cast %24 : vector<1x1x32xf32> to vector<1x32xf32>
    %26 = vector.broadcast %25 : vector<1x32xf32> to vector<128x32xf32>
    %27 = arith.addf %23, %26 : vector<128x32xf32>
    %cst_14 = arith.constant 0.000000e+00 : f32
    %28 = vector.broadcast %cst_14 : f32 to vector<128x32xf32>
    %29 = arith.maximumf %27, %28 : vector<128x32xf32>
    %c0_15 = arith.constant 0 : index
    %c0_16 = arith.constant 0 : index
    %c0_17 = arith.constant 0 : index
    %30 = vector.load %arg2[%c0_15, %c0_16, %c0_17] : memref<9x32x128xf32, #tpu.memory_space<vmem>>, vector<1x32x128xf32>
    %31 = vector.shape_cast %30 : vector<1x32x128xf32> to vector<32x128xf32>
    %cst_18 = arith.constant dense<0.000000e+00> : vector<32x32xf32>
    %32 = tpu.matmul %31, %29, %cst_18 {dimension_numbers = #tpu.dot_dimension_numbers<[1], [0], [0], [1], [0, 0, 1, 1], [], []>} : vector<32x128xf32>, vector<128x32xf32>, vector<32x32xf32> -> vector<32x32xf32>
    %c0_19 = arith.constant 0 : index
    %c0_20 = arith.constant 0 : index
    %c0_21 = arith.constant 0 : index
    %33 = vector.load %arg3[%c0_19, %c0_20, %c0_21] : memref<9x32x32xf32, #tpu.memory_space<vmem>>, vector<1x32x32xf32>
    %34 = vector.shape_cast %33 : vector<1x32x32xf32> to vector<32x32xf32>
    %cst_22 = arith.constant dense<0.000000e+00> : vector<32x32xf32>
    %35 = tpu.matmul %32, %34, %cst_22 {dimension_numbers = #tpu.dot_dimension_numbers<[1], [0], [0], [1], [0, 0, 1, 1], [], []>} : vector<32x32xf32>, vector<32x32xf32>, vector<32x32xf32> -> vector<32x32xf32>
    %c1 = arith.constant 1 : index
    %c0_23 = arith.constant 0 : index
    %c0_24 = arith.constant 0 : index
    %36 = vector.load %arg2[%c1, %c0_23, %c0_24] : memref<9x32x128xf32, #tpu.memory_space<vmem>>, vector<1x32x128xf32>
    %37 = vector.shape_cast %36 : vector<1x32x128xf32> to vector<32x128xf32>
    %cst_25 = arith.constant dense<0.000000e+00> : vector<32x32xf32>
    %38 = tpu.matmul %37, %29, %cst_25 {dimension_numbers = #tpu.dot_dimension_numbers<[1], [0], [0], [1], [0, 0, 1, 1], [], []>} : vector<32x128xf32>, vector<128x32xf32>, vector<32x32xf32> -> vector<32x32xf32>
    %c1_26 = arith.constant 1 : index
    %c0_27 = arith.constant 0 : index
    %c0_28 = arith.constant 0 : index
    %39 = vector.load %arg3[%c1_26, %c0_27, %c0_28] : memref<9x32x32xf32, #tpu.memory_space<vmem>>, vector<1x32x32xf32>
    %40 = vector.shape_cast %39 : vector<1x32x32xf32> to vector<32x32xf32>
    %cst_29 = arith.constant dense<0.000000e+00> : vector<32x32xf32>
    %41 = tpu.matmul %38, %40, %cst_29 {dimension_numbers = #tpu.dot_dimension_numbers<[1], [0], [0], [1], [0, 0, 1, 1], [], []>} : vector<32x32xf32>, vector<32x32xf32>, vector<32x32xf32> -> vector<32x32xf32>
    %42 = arith.addf %35, %41 : vector<32x32xf32>
    %c2 = arith.constant 2 : index
    %c0_30 = arith.constant 0 : index
    %c0_31 = arith.constant 0 : index
    %43 = vector.load %arg2[%c2, %c0_30, %c0_31] : memref<9x32x128xf32, #tpu.memory_space<vmem>>, vector<1x32x128xf32>
    %44 = vector.shape_cast %43 : vector<1x32x128xf32> to vector<32x128xf32>
    %cst_32 = arith.constant dense<0.000000e+00> : vector<32x32xf32>
    %45 = tpu.matmul %44, %29, %cst_32 {dimension_numbers = #tpu.dot_dimension_numbers<[1], [0], [0], [1], [0, 0, 1, 1], [], []>} : vector<32x128xf32>, vector<128x32xf32>, vector<32x32xf32> -> vector<32x32xf32>
    %c2_33 = arith.constant 2 : index
    %c0_34 = arith.constant 0 : index
    %c0_35 = arith.constant 0 : index
    %46 = vector.load %arg3[%c2_33, %c0_34, %c0_35] : memref<9x32x32xf32, #tpu.memory_space<vmem>>, vector<1x32x32xf32>
    %47 = vector.shape_cast %46 : vector<1x32x32xf32> to vector<32x32xf32>
    %cst_36 = arith.constant dense<0.000000e+00> : vector<32x32xf32>
    %48 = tpu.matmul %45, %47, %cst_36 {dimension_numbers = #tpu.dot_dimension_numbers<[1], [0], [0], [1], [0, 0, 1, 1], [], []>} : vector<32x32xf32>, vector<32x32xf32>, vector<32x32xf32> -> vector<32x32xf32>
    %49 = arith.addf %42, %48 : vector<32x32xf32>
    %c3 = arith.constant 3 : index
    %c0_37 = arith.constant 0 : index
    %c0_38 = arith.constant 0 : index
    %50 = vector.load %arg2[%c3, %c0_37, %c0_38] : memref<9x32x128xf32, #tpu.memory_space<vmem>>, vector<1x32x128xf32>
    %51 = vector.shape_cast %50 : vector<1x32x128xf32> to vector<32x128xf32>
    %cst_39 = arith.constant dense<0.000000e+00> : vector<32x32xf32>
    %52 = tpu.matmul %51, %29, %cst_39 {dimension_numbers = #tpu.dot_dimension_numbers<[1], [0], [0], [1], [0, 0, 1, 1], [], []>} : vector<32x128xf32>, vector<128x32xf32>, vector<32x32xf32> -> vector<32x32xf32>
    %c3_40 = arith.constant 3 : index
    %c0_41 = arith.constant 0 : index
    %c0_42 = arith.constant 0 : index
    %53 = vector.load %arg3[%c3_40, %c0_41, %c0_42] : memref<9x32x32xf32, #tpu.memory_space<vmem>>, vector<1x32x32xf32>
    %54 = vector.shape_cast %53 : vector<1x32x32xf32> to vector<32x32xf32>
    %cst_43 = arith.constant dense<0.000000e+00> : vector<32x32xf32>
    %55 = tpu.matmul %52, %54, %cst_43 {dimension_numbers = #tpu.dot_dimension_numbers<[1], [0], [0], [1], [0, 0, 1, 1], [], []>} : vector<32x32xf32>, vector<32x32xf32>, vector<32x32xf32> -> vector<32x32xf32>
    %56 = arith.addf %49, %55 : vector<32x32xf32>
    %c4 = arith.constant 4 : index
    %c0_44 = arith.constant 0 : index
    %c0_45 = arith.constant 0 : index
    %57 = vector.load %arg2[%c4, %c0_44, %c0_45] : memref<9x32x128xf32, #tpu.memory_space<vmem>>, vector<1x32x128xf32>
    %58 = vector.shape_cast %57 : vector<1x32x128xf32> to vector<32x128xf32>
    %cst_46 = arith.constant dense<0.000000e+00> : vector<32x32xf32>
    %59 = tpu.matmul %58, %29, %cst_46 {dimension_numbers = #tpu.dot_dimension_numbers<[1], [0], [0], [1], [0, 0, 1, 1], [], []>} : vector<32x128xf32>, vector<128x32xf32>, vector<32x32xf32> -> vector<32x32xf32>
    %c4_47 = arith.constant 4 : index
    %c0_48 = arith.constant 0 : index
    %c0_49 = arith.constant 0 : index
    %60 = vector.load %arg3[%c4_47, %c0_48, %c0_49] : memref<9x32x32xf32, #tpu.memory_space<vmem>>, vector<1x32x32xf32>
    %61 = vector.shape_cast %60 : vector<1x32x32xf32> to vector<32x32xf32>
    %cst_50 = arith.constant dense<0.000000e+00> : vector<32x32xf32>
    %62 = tpu.matmul %59, %61, %cst_50 {dimension_numbers = #tpu.dot_dimension_numbers<[1], [0], [0], [1], [0, 0, 1, 1], [], []>} : vector<32x32xf32>, vector<32x32xf32>, vector<32x32xf32> -> vector<32x32xf32>
    %63 = arith.addf %56, %62 : vector<32x32xf32>
    %c5 = arith.constant 5 : index
    %c0_51 = arith.constant 0 : index
    %c0_52 = arith.constant 0 : index
    %64 = vector.load %arg2[%c5, %c0_51, %c0_52] : memref<9x32x128xf32, #tpu.memory_space<vmem>>, vector<1x32x128xf32>
    %65 = vector.shape_cast %64 : vector<1x32x128xf32> to vector<32x128xf32>
    %cst_53 = arith.constant dense<0.000000e+00> : vector<32x32xf32>
    %66 = tpu.matmul %65, %29, %cst_53 {dimension_numbers = #tpu.dot_dimension_numbers<[1], [0], [0], [1], [0, 0, 1, 1], [], []>} : vector<32x128xf32>, vector<128x32xf32>, vector<32x32xf32> -> vector<32x32xf32>
    %c5_54 = arith.constant 5 : index
    %c0_55 = arith.constant 0 : index
    %c0_56 = arith.constant 0 : index
    %67 = vector.load %arg3[%c5_54, %c0_55, %c0_56] : memref<9x32x32xf32, #tpu.memory_space<vmem>>, vector<1x32x32xf32>
    %68 = vector.shape_cast %67 : vector<1x32x32xf32> to vector<32x32xf32>
    %cst_57 = arith.constant dense<0.000000e+00> : vector<32x32xf32>
    %69 = tpu.matmul %66, %68, %cst_57 {dimension_numbers = #tpu.dot_dimension_numbers<[1], [0], [0], [1], [0, 0, 1, 1], [], []>} : vector<32x32xf32>, vector<32x32xf32>, vector<32x32xf32> -> vector<32x32xf32>
    %70 = arith.addf %63, %69 : vector<32x32xf32>
    %c6 = arith.constant 6 : index
    %c0_58 = arith.constant 0 : index
    %c0_59 = arith.constant 0 : index
    %71 = vector.load %arg2[%c6, %c0_58, %c0_59] : memref<9x32x128xf32, #tpu.memory_space<vmem>>, vector<1x32x128xf32>
    %72 = vector.shape_cast %71 : vector<1x32x128xf32> to vector<32x128xf32>
    %cst_60 = arith.constant dense<0.000000e+00> : vector<32x32xf32>
    %73 = tpu.matmul %72, %29, %cst_60 {dimension_numbers = #tpu.dot_dimension_numbers<[1], [0], [0], [1], [0, 0, 1, 1], [], []>} : vector<32x128xf32>, vector<128x32xf32>, vector<32x32xf32> -> vector<32x32xf32>
    %c6_61 = arith.constant 6 : index
    %c0_62 = arith.constant 0 : index
    %c0_63 = arith.constant 0 : index
    %74 = vector.load %arg3[%c6_61, %c0_62, %c0_63] : memref<9x32x32xf32, #tpu.memory_space<vmem>>, vector<1x32x32xf32>
    %75 = vector.shape_cast %74 : vector<1x32x32xf32> to vector<32x32xf32>
    %cst_64 = arith.constant dense<0.000000e+00> : vector<32x32xf32>
    %76 = tpu.matmul %73, %75, %cst_64 {dimension_numbers = #tpu.dot_dimension_numbers<[1], [0], [0], [1], [0, 0, 1, 1], [], []>} : vector<32x32xf32>, vector<32x32xf32>, vector<32x32xf32> -> vector<32x32xf32>
    %77 = arith.addf %70, %76 : vector<32x32xf32>
    %c7 = arith.constant 7 : index
    %c0_65 = arith.constant 0 : index
    %c0_66 = arith.constant 0 : index
    %78 = vector.load %arg2[%c7, %c0_65, %c0_66] : memref<9x32x128xf32, #tpu.memory_space<vmem>>, vector<1x32x128xf32>
    %79 = vector.shape_cast %78 : vector<1x32x128xf32> to vector<32x128xf32>
    %cst_67 = arith.constant dense<0.000000e+00> : vector<32x32xf32>
    %80 = tpu.matmul %79, %29, %cst_67 {dimension_numbers = #tpu.dot_dimension_numbers<[1], [0], [0], [1], [0, 0, 1, 1], [], []>} : vector<32x128xf32>, vector<128x32xf32>, vector<32x32xf32> -> vector<32x32xf32>
    %c7_68 = arith.constant 7 : index
    %c0_69 = arith.constant 0 : index
    %c0_70 = arith.constant 0 : index
    %81 = vector.load %arg3[%c7_68, %c0_69, %c0_70] : memref<9x32x32xf32, #tpu.memory_space<vmem>>, vector<1x32x32xf32>
    %82 = vector.shape_cast %81 : vector<1x32x32xf32> to vector<32x32xf32>
    %cst_71 = arith.constant dense<0.000000e+00> : vector<32x32xf32>
    %83 = tpu.matmul %80, %82, %cst_71 {dimension_numbers = #tpu.dot_dimension_numbers<[1], [0], [0], [1], [0, 0, 1, 1], [], []>} : vector<32x32xf32>, vector<32x32xf32>, vector<32x32xf32> -> vector<32x32xf32>
    %84 = arith.addf %77, %83 : vector<32x32xf32>
    %c8 = arith.constant 8 : index
    %c0_72 = arith.constant 0 : index
    %c0_73 = arith.constant 0 : index
    %85 = vector.load %arg2[%c8, %c0_72, %c0_73] : memref<9x32x128xf32, #tpu.memory_space<vmem>>, vector<1x32x128xf32>
    %86 = vector.shape_cast %85 : vector<1x32x128xf32> to vector<32x128xf32>
    %cst_74 = arith.constant dense<0.000000e+00> : vector<32x32xf32>
    %87 = tpu.matmul %86, %29, %cst_74 {dimension_numbers = #tpu.dot_dimension_numbers<[1], [0], [0], [1], [0, 0, 1, 1], [], []>} : vector<32x128xf32>, vector<128x32xf32>, vector<32x32xf32> -> vector<32x32xf32>
    %c8_75 = arith.constant 8 : index
    %c0_76 = arith.constant 0 : index
    %c0_77 = arith.constant 0 : index
    %88 = vector.load %arg3[%c8_75, %c0_76, %c0_77] : memref<9x32x32xf32, #tpu.memory_space<vmem>>, vector<1x32x32xf32>
    %89 = vector.shape_cast %88 : vector<1x32x32xf32> to vector<32x32xf32>
    %cst_78 = arith.constant dense<0.000000e+00> : vector<32x32xf32>
    %90 = tpu.matmul %87, %89, %cst_78 {dimension_numbers = #tpu.dot_dimension_numbers<[1], [0], [0], [1], [0, 0, 1, 1], [], []>} : vector<32x32xf32>, vector<32x32xf32>, vector<32x32xf32> -> vector<32x32xf32>
    %91 = arith.addf %84, %90 : vector<32x32xf32>
    %cst_79 = arith.constant dense<0.000000e+00> : vector<32xf32>
    %92 = vector.multi_reduction <add>, %91, %cst_79 [0] : vector<32x32xf32> to vector<32xf32>
    %93 = vector.shape_cast %92 : vector<32xf32> to vector<1x32xf32>
    %cst_80 = arith.constant 3.125000e-02 : f32
    %94 = vector.broadcast %cst_80 : f32 to vector<1x32xf32>
    %95 = arith.mulf %93, %94 : vector<1x32xf32>
    %96 = arith.mulf %91, %91 : vector<32x32xf32>
    %cst_81 = arith.constant dense<0.000000e+00> : vector<32xf32>
    %97 = vector.multi_reduction <add>, %96, %cst_81 [0] : vector<32x32xf32> to vector<32xf32>
    %98 = vector.shape_cast %97 : vector<32xf32> to vector<1x32xf32>
    %cst_82 = arith.constant 3.125000e-02 : f32
    %99 = vector.broadcast %cst_82 : f32 to vector<1x32xf32>
    %100 = arith.mulf %98, %99 : vector<1x32xf32>
    %101 = arith.mulf %95, %95 : vector<1x32xf32>
    %102 = arith.subf %100, %101 : vector<1x32xf32>
    %c1_83 = arith.constant 1 : index
    %c0_84 = arith.constant 0 : index
    %c0_85 = arith.constant 0 : index
    %103 = vector.load %arg8[%c1_83, %c0_84, %c0_85] : memref<4x1x32xf32, #tpu.memory_space<vmem>>, vector<1x1x32xf32>
    %104 = vector.shape_cast %103 : vector<1x1x32xf32> to vector<1x32xf32>
    %cst_86 = arith.constant 9.99999974E-6 : f32
    %105 = vector.broadcast %cst_86 : f32 to vector<1x32xf32>
    %106 = arith.addf %102, %105 : vector<1x32xf32>
    %107 = math.rsqrt %106 : vector<1x32xf32>
    %108 = arith.mulf %104, %107 : vector<1x32xf32>
    %109 = vector.broadcast %95 : vector<1x32xf32> to vector<32x32xf32>
    %110 = arith.subf %91, %109 : vector<32x32xf32>
    %111 = vector.broadcast %108 : vector<1x32xf32> to vector<32x32xf32>
    %112 = arith.mulf %110, %111 : vector<32x32xf32>
    %c1_87 = arith.constant 1 : index
    %c0_88 = arith.constant 0 : index
    %c0_89 = arith.constant 0 : index
    %113 = vector.load %arg9[%c1_87, %c0_88, %c0_89] : memref<4x1x32xf32, #tpu.memory_space<vmem>>, vector<1x1x32xf32>
    %114 = vector.shape_cast %113 : vector<1x1x32xf32> to vector<1x32xf32>
    %115 = vector.broadcast %114 : vector<1x32xf32> to vector<32x32xf32>
    %116 = arith.addf %112, %115 : vector<32x32xf32>
    %cst_90 = arith.constant 0.000000e+00 : f32
    %117 = vector.broadcast %cst_90 : f32 to vector<32x32xf32>
    %118 = arith.maximumf %116, %117 : vector<32x32xf32>
    %c0_91 = arith.constant 0 : index
    %c0_92 = arith.constant 0 : index
    %c0_93 = arith.constant 0 : index
    %119 = vector.load %arg4[%c0_91, %c0_92, %c0_93] : memref<9x8x32xf32, #tpu.memory_space<vmem>>, vector<1x8x32xf32>
    %120 = vector.shape_cast %119 : vector<1x8x32xf32> to vector<8x32xf32>
    %cst_94 = arith.constant dense<0.000000e+00> : vector<8x32xf32>
    %121 = tpu.matmul %120, %118, %cst_94 {dimension_numbers = #tpu.dot_dimension_numbers<[1], [0], [0], [1], [0, 0, 1, 1], [], []>} : vector<8x32xf32>, vector<32x32xf32>, vector<8x32xf32> -> vector<8x32xf32>
    %c0_95 = arith.constant 0 : index
    %c0_96 = arith.constant 0 : index
    %c0_97 = arith.constant 0 : index
    %122 = vector.load %arg5[%c0_95, %c0_96, %c0_97] : memref<9x32x32xf32, #tpu.memory_space<vmem>>, vector<1x32x32xf32>
    %123 = vector.shape_cast %122 : vector<1x32x32xf32> to vector<32x32xf32>
    %cst_98 = arith.constant dense<0.000000e+00> : vector<8x32xf32>
    %124 = tpu.matmul %121, %123, %cst_98 {dimension_numbers = #tpu.dot_dimension_numbers<[1], [0], [0], [1], [0, 0, 1, 1], [], []>} : vector<8x32xf32>, vector<32x32xf32>, vector<8x32xf32> -> vector<8x32xf32>
    %c1_99 = arith.constant 1 : index
    %c0_100 = arith.constant 0 : index
    %c0_101 = arith.constant 0 : index
    %125 = vector.load %arg4[%c1_99, %c0_100, %c0_101] : memref<9x8x32xf32, #tpu.memory_space<vmem>>, vector<1x8x32xf32>
    %126 = vector.shape_cast %125 : vector<1x8x32xf32> to vector<8x32xf32>
    %cst_102 = arith.constant dense<0.000000e+00> : vector<8x32xf32>
    %127 = tpu.matmul %126, %118, %cst_102 {dimension_numbers = #tpu.dot_dimension_numbers<[1], [0], [0], [1], [0, 0, 1, 1], [], []>} : vector<8x32xf32>, vector<32x32xf32>, vector<8x32xf32> -> vector<8x32xf32>
    %c1_103 = arith.constant 1 : index
    %c0_104 = arith.constant 0 : index
    %c0_105 = arith.constant 0 : index
    %128 = vector.load %arg5[%c1_103, %c0_104, %c0_105] : memref<9x32x32xf32, #tpu.memory_space<vmem>>, vector<1x32x32xf32>
    %129 = vector.shape_cast %128 : vector<1x32x32xf32> to vector<32x32xf32>
    %cst_106 = arith.constant dense<0.000000e+00> : vector<8x32xf32>
    %130 = tpu.matmul %127, %129, %cst_106 {dimension_numbers = #tpu.dot_dimension_numbers<[1], [0], [0], [1], [0, 0, 1, 1], [], []>} : vector<8x32xf32>, vector<32x32xf32>, vector<8x32xf32> -> vector<8x32xf32>
    %131 = arith.addf %124, %130 : vector<8x32xf32>
    %c2_107 = arith.constant 2 : index
    %c0_108 = arith.constant 0 : index
    %c0_109 = arith.constant 0 : index
    %132 = vector.load %arg4[%c2_107, %c0_108, %c0_109] : memref<9x8x32xf32, #tpu.memory_space<vmem>>, vector<1x8x32xf32>
    %133 = vector.shape_cast %132 : vector<1x8x32xf32> to vector<8x32xf32>
    %cst_110 = arith.constant dense<0.000000e+00> : vector<8x32xf32>
    %134 = tpu.matmul %133, %118, %cst_110 {dimension_numbers = #tpu.dot_dimension_numbers<[1], [0], [0], [1], [0, 0, 1, 1], [], []>} : vector<8x32xf32>, vector<32x32xf32>, vector<8x32xf32> -> vector<8x32xf32>
    %c2_111 = arith.constant 2 : index
    %c0_112 = arith.constant 0 : index
    %c0_113 = arith.constant 0 : index
    %135 = vector.load %arg5[%c2_111, %c0_112, %c0_113] : memref<9x32x32xf32, #tpu.memory_space<vmem>>, vector<1x32x32xf32>
    %136 = vector.shape_cast %135 : vector<1x32x32xf32> to vector<32x32xf32>
    %cst_114 = arith.constant dense<0.000000e+00> : vector<8x32xf32>
    %137 = tpu.matmul %134, %136, %cst_114 {dimension_numbers = #tpu.dot_dimension_numbers<[1], [0], [0], [1], [0, 0, 1, 1], [], []>} : vector<8x32xf32>, vector<32x32xf32>, vector<8x32xf32> -> vector<8x32xf32>
    %138 = arith.addf %131, %137 : vector<8x32xf32>
    %c3_115 = arith.constant 3 : index
    %c0_116 = arith.constant 0 : index
    %c0_117 = arith.constant 0 : index
    %139 = vector.load %arg4[%c3_115, %c0_116, %c0_117] : memref<9x8x32xf32, #tpu.memory_space<vmem>>, vector<1x8x32xf32>
    %140 = vector.shape_cast %139 : vector<1x8x32xf32> to vector<8x32xf32>
    %cst_118 = arith.constant dense<0.000000e+00> : vector<8x32xf32>
    %141 = tpu.matmul %140, %118, %cst_118 {dimension_numbers = #tpu.dot_dimension_numbers<[1], [0], [0], [1], [0, 0, 1, 1], [], []>} : vector<8x32xf32>, vector<32x32xf32>, vector<8x32xf32> -> vector<8x32xf32>
    %c3_119 = arith.constant 3 : index
    %c0_120 = arith.constant 0 : index
    %c0_121 = arith.constant 0 : index
    %142 = vector.load %arg5[%c3_119, %c0_120, %c0_121] : memref<9x32x32xf32, #tpu.memory_space<vmem>>, vector<1x32x32xf32>
    %143 = vector.shape_cast %142 : vector<1x32x32xf32> to vector<32x32xf32>
    %cst_122 = arith.constant dense<0.000000e+00> : vector<8x32xf32>
    %144 = tpu.matmul %141, %143, %cst_122 {dimension_numbers = #tpu.dot_dimension_numbers<[1], [0], [0], [1], [0, 0, 1, 1], [], []>} : vector<8x32xf32>, vector<32x32xf32>, vector<8x32xf32> -> vector<8x32xf32>
    %145 = arith.addf %138, %144 : vector<8x32xf32>
    %c4_123 = arith.constant 4 : index
    %c0_124 = arith.constant 0 : index
    %c0_125 = arith.constant 0 : index
    %146 = vector.load %arg4[%c4_123, %c0_124, %c0_125] : memref<9x8x32xf32, #tpu.memory_space<vmem>>, vector<1x8x32xf32>
    %147 = vector.shape_cast %146 : vector<1x8x32xf32> to vector<8x32xf32>
    %cst_126 = arith.constant dense<0.000000e+00> : vector<8x32xf32>
    %148 = tpu.matmul %147, %118, %cst_126 {dimension_numbers = #tpu.dot_dimension_numbers<[1], [0], [0], [1], [0, 0, 1, 1], [], []>} : vector<8x32xf32>, vector<32x32xf32>, vector<8x32xf32> -> vector<8x32xf32>
    %c4_127 = arith.constant 4 : index
    %c0_128 = arith.constant 0 : index
    %c0_129 = arith.constant 0 : index
    %149 = vector.load %arg5[%c4_127, %c0_128, %c0_129] : memref<9x32x32xf32, #tpu.memory_space<vmem>>, vector<1x32x32xf32>
    %150 = vector.shape_cast %149 : vector<1x32x32xf32> to vector<32x32xf32>
    %cst_130 = arith.constant dense<0.000000e+00> : vector<8x32xf32>
    %151 = tpu.matmul %148, %150, %cst_130 {dimension_numbers = #tpu.dot_dimension_numbers<[1], [0], [0], [1], [0, 0, 1, 1], [], []>} : vector<8x32xf32>, vector<32x32xf32>, vector<8x32xf32> -> vector<8x32xf32>
    %152 = arith.addf %145, %151 : vector<8x32xf32>
    %c5_131 = arith.constant 5 : index
    %c0_132 = arith.constant 0 : index
    %c0_133 = arith.constant 0 : index
    %153 = vector.load %arg4[%c5_131, %c0_132, %c0_133] : memref<9x8x32xf32, #tpu.memory_space<vmem>>, vector<1x8x32xf32>
    %154 = vector.shape_cast %153 : vector<1x8x32xf32> to vector<8x32xf32>
    %cst_134 = arith.constant dense<0.000000e+00> : vector<8x32xf32>
    %155 = tpu.matmul %154, %118, %cst_134 {dimension_numbers = #tpu.dot_dimension_numbers<[1], [0], [0], [1], [0, 0, 1, 1], [], []>} : vector<8x32xf32>, vector<32x32xf32>, vector<8x32xf32> -> vector<8x32xf32>
    %c5_135 = arith.constant 5 : index
    %c0_136 = arith.constant 0 : index
    %c0_137 = arith.constant 0 : index
    %156 = vector.load %arg5[%c5_135, %c0_136, %c0_137] : memref<9x32x32xf32, #tpu.memory_space<vmem>>, vector<1x32x32xf32>
    %157 = vector.shape_cast %156 : vector<1x32x32xf32> to vector<32x32xf32>
    %cst_138 = arith.constant dense<0.000000e+00> : vector<8x32xf32>
    %158 = tpu.matmul %155, %157, %cst_138 {dimension_numbers = #tpu.dot_dimension_numbers<[1], [0], [0], [1], [0, 0, 1, 1], [], []>} : vector<8x32xf32>, vector<32x32xf32>, vector<8x32xf32> -> vector<8x32xf32>
    %159 = arith.addf %152, %158 : vector<8x32xf32>
    %c6_139 = arith.constant 6 : index
    %c0_140 = arith.constant 0 : index
    %c0_141 = arith.constant 0 : index
    %160 = vector.load %arg4[%c6_139, %c0_140, %c0_141] : memref<9x8x32xf32, #tpu.memory_space<vmem>>, vector<1x8x32xf32>
    %161 = vector.shape_cast %160 : vector<1x8x32xf32> to vector<8x32xf32>
    %cst_142 = arith.constant dense<0.000000e+00> : vector<8x32xf32>
    %162 = tpu.matmul %161, %118, %cst_142 {dimension_numbers = #tpu.dot_dimension_numbers<[1], [0], [0], [1], [0, 0, 1, 1], [], []>} : vector<8x32xf32>, vector<32x32xf32>, vector<8x32xf32> -> vector<8x32xf32>
    %c6_143 = arith.constant 6 : index
    %c0_144 = arith.constant 0 : index
    %c0_145 = arith.constant 0 : index
    %163 = vector.load %arg5[%c6_143, %c0_144, %c0_145] : memref<9x32x32xf32, #tpu.memory_space<vmem>>, vector<1x32x32xf32>
    %164 = vector.shape_cast %163 : vector<1x32x32xf32> to vector<32x32xf32>
    %cst_146 = arith.constant dense<0.000000e+00> : vector<8x32xf32>
    %165 = tpu.matmul %162, %164, %cst_146 {dimension_numbers = #tpu.dot_dimension_numbers<[1], [0], [0], [1], [0, 0, 1, 1], [], []>} : vector<8x32xf32>, vector<32x32xf32>, vector<8x32xf32> -> vector<8x32xf32>
    %166 = arith.addf %159, %165 : vector<8x32xf32>
    %c7_147 = arith.constant 7 : index
    %c0_148 = arith.constant 0 : index
    %c0_149 = arith.constant 0 : index
    %167 = vector.load %arg4[%c7_147, %c0_148, %c0_149] : memref<9x8x32xf32, #tpu.memory_space<vmem>>, vector<1x8x32xf32>
    %168 = vector.shape_cast %167 : vector<1x8x32xf32> to vector<8x32xf32>
    %cst_150 = arith.constant dense<0.000000e+00> : vector<8x32xf32>
    %169 = tpu.matmul %168, %118, %cst_150 {dimension_numbers = #tpu.dot_dimension_numbers<[1], [0], [0], [1], [0, 0, 1, 1], [], []>} : vector<8x32xf32>, vector<32x32xf32>, vector<8x32xf32> -> vector<8x32xf32>
    %c7_151 = arith.constant 7 : index
    %c0_152 = arith.constant 0 : index
    %c0_153 = arith.constant 0 : index
    %170 = vector.load %arg5[%c7_151, %c0_152, %c0_153] : memref<9x32x32xf32, #tpu.memory_space<vmem>>, vector<1x32x32xf32>
    %171 = vector.shape_cast %170 : vector<1x32x32xf32> to vector<32x32xf32>
    %cst_154 = arith.constant dense<0.000000e+00> : vector<8x32xf32>
    %172 = tpu.matmul %169, %171, %cst_154 {dimension_numbers = #tpu.dot_dimension_numbers<[1], [0], [0], [1], [0, 0, 1, 1], [], []>} : vector<8x32xf32>, vector<32x32xf32>, vector<8x32xf32> -> vector<8x32xf32>
    %173 = arith.addf %166, %172 : vector<8x32xf32>
    %c8_155 = arith.constant 8 : index
    %c0_156 = arith.constant 0 : index
    %c0_157 = arith.constant 0 : index
    %174 = vector.load %arg4[%c8_155, %c0_156, %c0_157] : memref<9x8x32xf32, #tpu.memory_space<vmem>>, vector<1x8x32xf32>
    %175 = vector.shape_cast %174 : vector<1x8x32xf32> to vector<8x32xf32>
    %cst_158 = arith.constant dense<0.000000e+00> : vector<8x32xf32>
    %176 = tpu.matmul %175, %118, %cst_158 {dimension_numbers = #tpu.dot_dimension_numbers<[1], [0], [0], [1], [0, 0, 1, 1], [], []>} : vector<8x32xf32>, vector<32x32xf32>, vector<8x32xf32> -> vector<8x32xf32>
    %c8_159 = arith.constant 8 : index
    %c0_160 = arith.constant 0 : index
    %c0_161 = arith.constant 0 : index
    %177 = vector.load %arg5[%c8_159, %c0_160, %c0_161] : memref<9x32x32xf32, #tpu.memory_space<vmem>>, vector<1x32x32xf32>
    %178 = vector.shape_cast %177 : vector<1x32x32xf32> to vector<32x32xf32>
    %cst_162 = arith.constant dense<0.000000e+00> : vector<8x32xf32>
    %179 = tpu.matmul %176, %178, %cst_162 {dimension_numbers = #tpu.dot_dimension_numbers<[1], [0], [0], [1], [0, 0, 1, 1], [], []>} : vector<8x32xf32>, vector<32x32xf32>, vector<8x32xf32> -> vector<8x32xf32>
    %180 = arith.addf %173, %179 : vector<8x32xf32>
    %cst_163 = arith.constant dense<0.000000e+00> : vector<32xf32>
    %181 = vector.multi_reduction <add>, %180, %cst_163 [0] : vector<8x32xf32> to vector<32xf32>
    %182 = vector.shape_cast %181 : vector<32xf32> to vector<1x32xf32>
    %cst_164 = arith.constant 1.250000e-01 : f32
    %183 = vector.broadcast %cst_164 : f32 to vector<1x32xf32>
    %184 = arith.mulf %182, %183 : vector<1x32xf32>
    %185 = arith.mulf %180, %180 : vector<8x32xf32>
    %cst_165 = arith.constant dense<0.000000e+00> : vector<32xf32>
    %186 = vector.multi_reduction <add>, %185, %cst_165 [0] : vector<8x32xf32> to vector<32xf32>
    %187 = vector.shape_cast %186 : vector<32xf32> to vector<1x32xf32>
    %cst_166 = arith.constant 1.250000e-01 : f32
    %188 = vector.broadcast %cst_166 : f32 to vector<1x32xf32>
    %189 = arith.mulf %187, %188 : vector<1x32xf32>
    %190 = arith.mulf %184, %184 : vector<1x32xf32>
    %191 = arith.subf %189, %190 : vector<1x32xf32>
    %c2_167 = arith.constant 2 : index
    %c0_168 = arith.constant 0 : index
    %c0_169 = arith.constant 0 : index
    %192 = vector.load %arg8[%c2_167, %c0_168, %c0_169] : memref<4x1x32xf32, #tpu.memory_space<vmem>>, vector<1x1x32xf32>
    %193 = vector.shape_cast %192 : vector<1x1x32xf32> to vector<1x32xf32>
    %cst_170 = arith.constant 9.99999974E-6 : f32
    %194 = vector.broadcast %cst_170 : f32 to vector<1x32xf32>
    %195 = arith.addf %191, %194 : vector<1x32xf32>
    %196 = math.rsqrt %195 : vector<1x32xf32>
    %197 = arith.mulf %193, %196 : vector<1x32xf32>
    %198 = vector.broadcast %184 : vector<1x32xf32> to vector<8x32xf32>
    %199 = arith.subf %180, %198 : vector<8x32xf32>
    %200 = vector.broadcast %197 : vector<1x32xf32> to vector<8x32xf32>
    %201 = arith.mulf %199, %200 : vector<8x32xf32>
    %c2_171 = arith.constant 2 : index
    %c0_172 = arith.constant 0 : index
    %c0_173 = arith.constant 0 : index
    %202 = vector.load %arg9[%c2_171, %c0_172, %c0_173] : memref<4x1x32xf32, #tpu.memory_space<vmem>>, vector<1x1x32xf32>
    %203 = vector.shape_cast %202 : vector<1x1x32xf32> to vector<1x32xf32>
    %204 = vector.broadcast %203 : vector<1x32xf32> to vector<8x32xf32>
    %205 = arith.addf %201, %204 : vector<8x32xf32>
    %cst_174 = arith.constant 0.000000e+00 : f32
    %206 = vector.broadcast %cst_174 : f32 to vector<8x32xf32>
    %207 = arith.maximumf %205, %206 : vector<8x32xf32>
    %c0_175 = arith.constant 0 : index
    %c0_176 = arith.constant 0 : index
    %c0_177 = arith.constant 0 : index
    %208 = vector.load %arg6[%c0_175, %c0_176, %c0_177] : memref<9x2x8xf32, #tpu.memory_space<vmem>>, vector<1x2x8xf32>
    %209 = vector.shape_cast %208 : vector<1x2x8xf32> to vector<2x8xf32>
    %cst_178 = arith.constant dense<0.000000e+00> : vector<2x32xf32>
    %210 = tpu.matmul %209, %207, %cst_178 {dimension_numbers = #tpu.dot_dimension_numbers<[1], [0], [0], [1], [0, 0, 1, 1], [], []>} : vector<2x8xf32>, vector<8x32xf32>, vector<2x32xf32> -> vector<2x32xf32>
    %c0_179 = arith.constant 0 : index
    %c0_180 = arith.constant 0 : index
    %c0_181 = arith.constant 0 : index
    %211 = vector.load %arg7[%c0_179, %c0_180, %c0_181] : memref<9x32x32xf32, #tpu.memory_space<vmem>>, vector<1x32x32xf32>
    %212 = vector.shape_cast %211 : vector<1x32x32xf32> to vector<32x32xf32>
    %cst_182 = arith.constant dense<0.000000e+00> : vector<2x32xf32>
    %213 = tpu.matmul %210, %212, %cst_182 {dimension_numbers = #tpu.dot_dimension_numbers<[1], [0], [0], [1], [0, 0, 1, 1], [], []>} : vector<2x32xf32>, vector<32x32xf32>, vector<2x32xf32> -> vector<2x32xf32>
    %c1_183 = arith.constant 1 : index
    %c0_184 = arith.constant 0 : index
    %c0_185 = arith.constant 0 : index
    %214 = vector.load %arg6[%c1_183, %c0_184, %c0_185] : memref<9x2x8xf32, #tpu.memory_space<vmem>>, vector<1x2x8xf32>
    %215 = vector.shape_cast %214 : vector<1x2x8xf32> to vector<2x8xf32>
    %cst_186 = arith.constant dense<0.000000e+00> : vector<2x32xf32>
    %216 = tpu.matmul %215, %207, %cst_186 {dimension_numbers = #tpu.dot_dimension_numbers<[1], [0], [0], [1], [0, 0, 1, 1], [], []>} : vector<2x8xf32>, vector<8x32xf32>, vector<2x32xf32> -> vector<2x32xf32>
    %c1_187 = arith.constant 1 : index
    %c0_188 = arith.constant 0 : index
    %c0_189 = arith.constant 0 : index
    %217 = vector.load %arg7[%c1_187, %c0_188, %c0_189] : memref<9x32x32xf32, #tpu.memory_space<vmem>>, vector<1x32x32xf32>
    %218 = vector.shape_cast %217 : vector<1x32x32xf32> to vector<32x32xf32>
    %cst_190 = arith.constant dense<0.000000e+00> : vector<2x32xf32>
    %219 = tpu.matmul %216, %218, %cst_190 {dimension_numbers = #tpu.dot_dimension_numbers<[1], [0], [0], [1], [0, 0, 1, 1], [], []>} : vector<2x32xf32>, vector<32x32xf32>, vector<2x32xf32> -> vector<2x32xf32>
    %220 = arith.addf %213, %219 : vector<2x32xf32>
    %c2_191 = arith.constant 2 : index
    %c0_192 = arith.constant 0 : index
    %c0_193 = arith.constant 0 : index
    %221 = vector.load %arg6[%c2_191, %c0_192, %c0_193] : memref<9x2x8xf32, #tpu.memory_space<vmem>>, vector<1x2x8xf32>
    %222 = vector.shape_cast %221 : vector<1x2x8xf32> to vector<2x8xf32>
    %cst_194 = arith.constant dense<0.000000e+00> : vector<2x32xf32>
    %223 = tpu.matmul %222, %207, %cst_194 {dimension_numbers = #tpu.dot_dimension_numbers<[1], [0], [0], [1], [0, 0, 1, 1], [], []>} : vector<2x8xf32>, vector<8x32xf32>, vector<2x32xf32> -> vector<2x32xf32>
    %c2_195 = arith.constant 2 : index
    %c0_196 = arith.constant 0 : index
    %c0_197 = arith.constant 0 : index
    %224 = vector.load %arg7[%c2_195, %c0_196, %c0_197] : memref<9x32x32xf32, #tpu.memory_space<vmem>>, vector<1x32x32xf32>
    %225 = vector.shape_cast %224 : vector<1x32x32xf32> to vector<32x32xf32>
    %cst_198 = arith.constant dense<0.000000e+00> : vector<2x32xf32>
    %226 = tpu.matmul %223, %225, %cst_198 {dimension_numbers = #tpu.dot_dimension_numbers<[1], [0], [0], [1], [0, 0, 1, 1], [], []>} : vector<2x32xf32>, vector<32x32xf32>, vector<2x32xf32> -> vector<2x32xf32>
    %227 = arith.addf %220, %226 : vector<2x32xf32>
    %c3_199 = arith.constant 3 : index
    %c0_200 = arith.constant 0 : index
    %c0_201 = arith.constant 0 : index
    %228 = vector.load %arg6[%c3_199, %c0_200, %c0_201] : memref<9x2x8xf32, #tpu.memory_space<vmem>>, vector<1x2x8xf32>
    %229 = vector.shape_cast %228 : vector<1x2x8xf32> to vector<2x8xf32>
    %cst_202 = arith.constant dense<0.000000e+00> : vector<2x32xf32>
    %230 = tpu.matmul %229, %207, %cst_202 {dimension_numbers = #tpu.dot_dimension_numbers<[1], [0], [0], [1], [0, 0, 1, 1], [], []>} : vector<2x8xf32>, vector<8x32xf32>, vector<2x32xf32> -> vector<2x32xf32>
    %c3_203 = arith.constant 3 : index
    %c0_204 = arith.constant 0 : index
    %c0_205 = arith.constant 0 : index
    %231 = vector.load %arg7[%c3_203, %c0_204, %c0_205] : memref<9x32x32xf32, #tpu.memory_space<vmem>>, vector<1x32x32xf32>
    %232 = vector.shape_cast %231 : vector<1x32x32xf32> to vector<32x32xf32>
    %cst_206 = arith.constant dense<0.000000e+00> : vector<2x32xf32>
    %233 = tpu.matmul %230, %232, %cst_206 {dimension_numbers = #tpu.dot_dimension_numbers<[1], [0], [0], [1], [0, 0, 1, 1], [], []>} : vector<2x32xf32>, vector<32x32xf32>, vector<2x32xf32> -> vector<2x32xf32>
    %234 = arith.addf %227, %233 : vector<2x32xf32>
    %c4_207 = arith.constant 4 : index
    %c0_208 = arith.constant 0 : index
    %c0_209 = arith.constant 0 : index
    %235 = vector.load %arg6[%c4_207, %c0_208, %c0_209] : memref<9x2x8xf32, #tpu.memory_space<vmem>>, vector<1x2x8xf32>
    %236 = vector.shape_cast %235 : vector<1x2x8xf32> to vector<2x8xf32>
    %cst_210 = arith.constant dense<0.000000e+00> : vector<2x32xf32>
    %237 = tpu.matmul %236, %207, %cst_210 {dimension_numbers = #tpu.dot_dimension_numbers<[1], [0], [0], [1], [0, 0, 1, 1], [], []>} : vector<2x8xf32>, vector<8x32xf32>, vector<2x32xf32> -> vector<2x32xf32>
    %c4_211 = arith.constant 4 : index
    %c0_212 = arith.constant 0 : index
    %c0_213 = arith.constant 0 : index
    %238 = vector.load %arg7[%c4_211, %c0_212, %c0_213] : memref<9x32x32xf32, #tpu.memory_space<vmem>>, vector<1x32x32xf32>
    %239 = vector.shape_cast %238 : vector<1x32x32xf32> to vector<32x32xf32>
    %cst_214 = arith.constant dense<0.000000e+00> : vector<2x32xf32>
    %240 = tpu.matmul %237, %239, %cst_214 {dimension_numbers = #tpu.dot_dimension_numbers<[1], [0], [0], [1], [0, 0, 1, 1], [], []>} : vector<2x32xf32>, vector<32x32xf32>, vector<2x32xf32> -> vector<2x32xf32>
    %241 = arith.addf %234, %240 : vector<2x32xf32>
    %c5_215 = arith.constant 5 : index
    %c0_216 = arith.constant 0 : index
    %c0_217 = arith.constant 0 : index
    %242 = vector.load %arg6[%c5_215, %c0_216, %c0_217] : memref<9x2x8xf32, #tpu.memory_space<vmem>>, vector<1x2x8xf32>
    %243 = vector.shape_cast %242 : vector<1x2x8xf32> to vector<2x8xf32>
    %cst_218 = arith.constant dense<0.000000e+00> : vector<2x32xf32>
    %244 = tpu.matmul %243, %207, %cst_218 {dimension_numbers = #tpu.dot_dimension_numbers<[1], [0], [0], [1], [0, 0, 1, 1], [], []>} : vector<2x8xf32>, vector<8x32xf32>, vector<2x32xf32> -> vector<2x32xf32>
    %c5_219 = arith.constant 5 : index
    %c0_220 = arith.constant 0 : index
    %c0_221 = arith.constant 0 : index
    %245 = vector.load %arg7[%c5_219, %c0_220, %c0_221] : memref<9x32x32xf32, #tpu.memory_space<vmem>>, vector<1x32x32xf32>
    %246 = vector.shape_cast %245 : vector<1x32x32xf32> to vector<32x32xf32>
    %cst_222 = arith.constant dense<0.000000e+00> : vector<2x32xf32>
    %247 = tpu.matmul %244, %246, %cst_222 {dimension_numbers = #tpu.dot_dimension_numbers<[1], [0], [0], [1], [0, 0, 1, 1], [], []>} : vector<2x32xf32>, vector<32x32xf32>, vector<2x32xf32> -> vector<2x32xf32>
    %248 = arith.addf %241, %247 : vector<2x32xf32>
    %c6_223 = arith.constant 6 : index
    %c0_224 = arith.constant 0 : index
    %c0_225 = arith.constant 0 : index
    %249 = vector.load %arg6[%c6_223, %c0_224, %c0_225] : memref<9x2x8xf32, #tpu.memory_space<vmem>>, vector<1x2x8xf32>
    %250 = vector.shape_cast %249 : vector<1x2x8xf32> to vector<2x8xf32>
    %cst_226 = arith.constant dense<0.000000e+00> : vector<2x32xf32>
    %251 = tpu.matmul %250, %207, %cst_226 {dimension_numbers = #tpu.dot_dimension_numbers<[1], [0], [0], [1], [0, 0, 1, 1], [], []>} : vector<2x8xf32>, vector<8x32xf32>, vector<2x32xf32> -> vector<2x32xf32>
    %c6_227 = arith.constant 6 : index
    %c0_228 = arith.constant 0 : index
    %c0_229 = arith.constant 0 : index
    %252 = vector.load %arg7[%c6_227, %c0_228, %c0_229] : memref<9x32x32xf32, #tpu.memory_space<vmem>>, vector<1x32x32xf32>
    %253 = vector.shape_cast %252 : vector<1x32x32xf32> to vector<32x32xf32>
    %cst_230 = arith.constant dense<0.000000e+00> : vector<2x32xf32>
    %254 = tpu.matmul %251, %253, %cst_230 {dimension_numbers = #tpu.dot_dimension_numbers<[1], [0], [0], [1], [0, 0, 1, 1], [], []>} : vector<2x32xf32>, vector<32x32xf32>, vector<2x32xf32> -> vector<2x32xf32>
    %255 = arith.addf %248, %254 : vector<2x32xf32>
    %c7_231 = arith.constant 7 : index
    %c0_232 = arith.constant 0 : index
    %c0_233 = arith.constant 0 : index
    %256 = vector.load %arg6[%c7_231, %c0_232, %c0_233] : memref<9x2x8xf32, #tpu.memory_space<vmem>>, vector<1x2x8xf32>
    %257 = vector.shape_cast %256 : vector<1x2x8xf32> to vector<2x8xf32>
    %cst_234 = arith.constant dense<0.000000e+00> : vector<2x32xf32>
    %258 = tpu.matmul %257, %207, %cst_234 {dimension_numbers = #tpu.dot_dimension_numbers<[1], [0], [0], [1], [0, 0, 1, 1], [], []>} : vector<2x8xf32>, vector<8x32xf32>, vector<2x32xf32> -> vector<2x32xf32>
    %c7_235 = arith.constant 7 : index
    %c0_236 = arith.constant 0 : index
    %c0_237 = arith.constant 0 : index
    %259 = vector.load %arg7[%c7_235, %c0_236, %c0_237] : memref<9x32x32xf32, #tpu.memory_space<vmem>>, vector<1x32x32xf32>
    %260 = vector.shape_cast %259 : vector<1x32x32xf32> to vector<32x32xf32>
    %cst_238 = arith.constant dense<0.000000e+00> : vector<2x32xf32>
    %261 = tpu.matmul %258, %260, %cst_238 {dimension_numbers = #tpu.dot_dimension_numbers<[1], [0], [0], [1], [0, 0, 1, 1], [], []>} : vector<2x32xf32>, vector<32x32xf32>, vector<2x32xf32> -> vector<2x32xf32>
    %262 = arith.addf %255, %261 : vector<2x32xf32>
    %c8_239 = arith.constant 8 : index
    %c0_240 = arith.constant 0 : index
    %c0_241 = arith.constant 0 : index
    %263 = vector.load %arg6[%c8_239, %c0_240, %c0_241] : memref<9x2x8xf32, #tpu.memory_space<vmem>>, vector<1x2x8xf32>
    %264 = vector.shape_cast %263 : vector<1x2x8xf32> to vector<2x8xf32>
    %cst_242 = arith.constant dense<0.000000e+00> : vector<2x32xf32>
    %265 = tpu.matmul %264, %207, %cst_242 {dimension_numbers = #tpu.dot_dimension_numbers<[1], [0], [0], [1], [0, 0, 1, 1], [], []>} : vector<2x8xf32>, vector<8x32xf32>, vector<2x32xf32> -> vector<2x32xf32>
    %c8_243 = arith.constant 8 : index
    %c0_244 = arith.constant 0 : index
    %c0_245 = arith.constant 0 : index
    %266 = vector.load %arg7[%c8_243, %c0_244, %c0_245] : memref<9x32x32xf32, #tpu.memory_space<vmem>>, vector<1x32x32xf32>
    %267 = vector.shape_cast %266 : vector<1x32x32xf32> to vector<32x32xf32>
    %cst_246 = arith.constant dense<0.000000e+00> : vector<2x32xf32>
    %268 = tpu.matmul %265, %267, %cst_246 {dimension_numbers = #tpu.dot_dimension_numbers<[1], [0], [0], [1], [0, 0, 1, 1], [], []>} : vector<2x32xf32>, vector<32x32xf32>, vector<2x32xf32> -> vector<2x32xf32>
    %269 = arith.addf %262, %268 : vector<2x32xf32>
    %cst_247 = arith.constant dense<0.000000e+00> : vector<32xf32>
    %270 = vector.multi_reduction <add>, %269, %cst_247 [0] : vector<2x32xf32> to vector<32xf32>
    %271 = vector.shape_cast %270 : vector<32xf32> to vector<1x32xf32>
    %cst_248 = arith.constant 5.000000e-01 : f32
    %272 = vector.broadcast %cst_248 : f32 to vector<1x32xf32>
    %273 = arith.mulf %271, %272 : vector<1x32xf32>
    %274 = arith.mulf %269, %269 : vector<2x32xf32>
    %cst_249 = arith.constant dense<0.000000e+00> : vector<32xf32>
    %275 = vector.multi_reduction <add>, %274, %cst_249 [0] : vector<2x32xf32> to vector<32xf32>
    %276 = vector.shape_cast %275 : vector<32xf32> to vector<1x32xf32>
    %cst_250 = arith.constant 5.000000e-01 : f32
    %277 = vector.broadcast %cst_250 : f32 to vector<1x32xf32>
    %278 = arith.mulf %276, %277 : vector<1x32xf32>
    %279 = arith.mulf %273, %273 : vector<1x32xf32>
    %280 = arith.subf %278, %279 : vector<1x32xf32>
    %c3_251 = arith.constant 3 : index
    %c0_252 = arith.constant 0 : index
    %c0_253 = arith.constant 0 : index
    %281 = vector.load %arg8[%c3_251, %c0_252, %c0_253] : memref<4x1x32xf32, #tpu.memory_space<vmem>>, vector<1x1x32xf32>
    %282 = vector.shape_cast %281 : vector<1x1x32xf32> to vector<1x32xf32>
    %cst_254 = arith.constant 9.99999974E-6 : f32
    %283 = vector.broadcast %cst_254 : f32 to vector<1x32xf32>
    %284 = arith.addf %280, %283 : vector<1x32xf32>
    %285 = math.rsqrt %284 : vector<1x32xf32>
    %286 = arith.mulf %282, %285 : vector<1x32xf32>
    %287 = vector.broadcast %273 : vector<1x32xf32> to vector<2x32xf32>
    %288 = arith.subf %269, %287 : vector<2x32xf32>
    %289 = vector.broadcast %286 : vector<1x32xf32> to vector<2x32xf32>
    %290 = arith.mulf %288, %289 : vector<2x32xf32>
    %c3_255 = arith.constant 3 : index
    %c0_256 = arith.constant 0 : index
    %c0_257 = arith.constant 0 : index
    %291 = vector.load %arg9[%c3_255, %c0_256, %c0_257] : memref<4x1x32xf32, #tpu.memory_space<vmem>>, vector<1x1x32xf32>
    %292 = vector.shape_cast %291 : vector<1x1x32xf32> to vector<1x32xf32>
    %293 = vector.broadcast %292 : vector<1x32xf32> to vector<2x32xf32>
    %294 = arith.addf %290, %293 : vector<2x32xf32>
    %cst_258 = arith.constant 0.000000e+00 : f32
    %295 = vector.broadcast %cst_258 : f32 to vector<2x32xf32>
    %296 = arith.maximumf %294, %295 : vector<2x32xf32>
    %c0_259 = arith.constant 0 : index
    %c0_260 = arith.constant 0 : index
    %297 = vector.load %arg10[%c0_259, %c0_260] : memref<32x5xf32, #tpu.memory_space<vmem>>, vector<32x5xf32>
    %cst_261 = arith.constant dense<0.000000e+00> : vector<2x5xf32>
    %298 = tpu.matmul %296, %297, %cst_261 {dimension_numbers = #tpu.dot_dimension_numbers<[1], [0], [0], [1], [0, 0, 1, 1], [], []>} : vector<2x32xf32>, vector<32x5xf32>, vector<2x5xf32> -> vector<2x5xf32>
    %c0_262 = arith.constant 0 : index
    %c0_263 = arith.constant 0 : index
    %299 = vector.load %arg11[%c0_262, %c0_263] : memref<1x5xf32, #tpu.memory_space<vmem>>, vector<1x5xf32>
    %300 = vector.broadcast %299 : vector<1x5xf32> to vector<2x5xf32>
    %301 = arith.addf %298, %300 : vector<2x5xf32>
    %c0_264 = arith.constant 0 : index
    %c0_265 = arith.constant 0 : index
    %302 = vector.load %arg12[%c0_264, %c0_265] : memref<2x5xf32, #tpu.memory_space<vmem>>, vector<2x5xf32>
    tpu.vector_store %arg12[%c0_264, %c0_265], %301 {strides = array<i32>} : memref<2x5xf32, #tpu.memory_space<vmem>>, vector<2x5xf32>,
    return
  }
}

</mosaic_0001>

<llo_original>
// kernel: cond_conv_net_forward.1
$region0: #{cond_conv_net_forward.1}
  #allocation0 [shape = 'u32[]', space=smem, size = 0x4, offset = 0x4, fixed_abs, tag = 'smem constant byte address 0x4 - core index']
  #allocation1 [shape = 'u32[144,128]{1,0:T(1,128)}', space=vmem, size = 0x12000, scoped, tag = 'internal scratch']
  %s0 = inlined_call_operand.vmem [shape: f32[128,9], index: 0, kind: input, shape index: {}]
  %s1 = inlined_call_operand.vmem [shape: f32[9,32], index: 1, kind: input, shape index: {}]
  %s2 = inlined_call_operand.vmem [shape: f32[9,32,128], index: 2, kind: input, shape index: {}]
  %s3 = inlined_call_operand.vmem [shape: f32[9,32,32], index: 3, kind: input, shape index: {}]
  %s4 = inlined_call_operand.vmem [shape: f32[9,8,32], index: 4, kind: input, shape index: {}]
  %s5 = inlined_call_operand.vmem [shape: f32[9,32,32], index: 5, kind: input, shape index: {}]
  %s6 = inlined_call_operand.vmem [shape: f32[9,2,8], index: 6, kind: input, shape index: {}]
  %s7 = inlined_call_operand.vmem [shape: f32[9,32,32], index: 7, kind: input, shape index: {}]
  %s8 = inlined_call_operand.vmem [shape: f32[4,1,32], index: 8, kind: input, shape index: {}]
  %s9 = inlined_call_operand.vmem [shape: f32[4,1,32], index: 9, kind: input, shape index: {}]
  %s10 = inlined_call_operand.vmem [shape: f32[32,5], index: 10, kind: input, shape index: {}]
  %s11 = inlined_call_operand.vmem [shape: f32[1,5], index: 11, kind: input, shape index: {}]
  %s12 = inlined_call_operand.hbm [shape: f32[2,5], index: 12, kind: output, shape index: {}]
  %s13 = sld [smem:[#allocation0]]
  $region58: #{cond_conv_net_forward.1} parent=0
    _
  %s15 = ssub.s32 1, %s13
  %s16 = scalar_select 0, %s15, %s13
  $region1: #{cond_conv_net_forward.1} parent=0
    #allocation2 [shape = 'u8[1024]{0}', space=vmem, size = 0x400, scoped, tag = 'output window, operand 0, single buffered']
    #allocation3 [shape = 's32[1]{0}', space=sflag, size = 0x4, scoped, tag = 'scoped memory for cond_conv_net_forward.1']
    %17 = vsyncpa [#allocation3], 0
    // Predicated region
    $region2: #{cond_conv_net_forward.1} parent=1 // pred_check
      _
    $region3: #{cond_conv_net_forward.1} parent=1 // pred_check_branch
      %19 = sbr.rel (0) target = $region5
    $region4: #{cond_conv_net_forward.1} parent=1 // pred_region
      _
    $region5: #{cond_conv_net_forward.1} parent=1 // pred_fallthru
      _
    // Predicated region
    $region6: #{cond_conv_net_forward.1} parent=1 // pred_check
      _
    $region7: #{cond_conv_net_forward.1} parent=1 // pred_check_branch
      %21 = sbr.rel (0) target = $region9
    $region8: #{cond_conv_net_forward.1} parent=1 // pred_region
      _
    $region9: #{cond_conv_net_forward.1} parent=1 // pred_fallthru
      _
    // Predicated region
    $region10: #{cond_conv_net_forward.1} parent=1 // pred_check
      _
    $region11: #{cond_conv_net_forward.1} parent=1 // pred_check_branch
      %23 = sbr.rel (0) target = $region13
    $region12: #{cond_conv_net_forward.1} parent=1 // pred_region
      _
    $region13: #{cond_conv_net_forward.1} parent=1 // pred_fallthru
      _
    // Predicated region
    $region14: #{cond_conv_net_forward.1} parent=1 // pred_check
      _
    $region15: #{cond_conv_net_forward.1} parent=1 // pred_check_branch
      %25 = sbr.rel (0) target = $region17
    $region16: #{cond_conv_net_forward.1} parent=1 // pred_region
      _
    $region17: #{cond_conv_net_forward.1} parent=1 // pred_fallthru
      _
    // Predicated region
    $region18: #{cond_conv_net_forward.1} parent=1 // pred_check
      _
    $region19: #{cond_conv_net_forward.1} parent=1 // pred_check_branch
      %27 = sbr.rel (0) target = $region21
    $region20: #{cond_conv_net_forward.1} parent=1 // pred_region
      _
    $region21: #{cond_conv_net_forward.1} parent=1 // pred_fallthru
      _
    // Predicated region
    $region22: #{cond_conv_net_forward.1} parent=1 // pred_check
      _
    $region23: #{cond_conv_net_forward.1} parent=1 // pred_check_branch
      %29 = sbr.rel (0) target = $region25
    $region24: #{cond_conv_net_forward.1} parent=1 // pred_region
      _
    $region25: #{cond_conv_net_forward.1} parent=1 // pred_fallthru
      _
    // Predicated region
    $region26: #{cond_conv_net_forward.1} parent=1 // pred_check
      _
    $region27: #{cond_conv_net_forward.1} parent=1 // pred_check_branch
      %31 = sbr.rel (0) target = $region29
    $region28: #{cond_conv_net_forward.1} parent=1 // pred_region
      _
    $region29: #{cond_conv_net_forward.1} parent=1 // pred_fallthru
      _
    // Predicated region
    $region30: #{cond_conv_net_forward.1} parent=1 // pred_check
      _
    $region31: #{cond_conv_net_forward.1} parent=1 // pred_check_branch
      %33 = sbr.rel (0) target = $region33
    $region32: #{cond_conv_net_forward.1} parent=1 // pred_region
      _
    $region33: #{cond_conv_net_forward.1} parent=1 // pred_fallthru
      _
    // Predicated region
    $region34: #{cond_conv_net_forward.1} parent=1 // pred_check
      _
    $region35: #{cond_conv_net_forward.1} parent=1 // pred_check_branch
      %35 = sbr.rel (0) target = $region37
    $region36: #{cond_conv_net_forward.1} parent=1 // pred_region
      _
    $region37: #{cond_conv_net_forward.1} parent=1 // pred_fallthru
      _
    // Predicated region
    $region38: #{cond_conv_net_forward.1} parent=1 // pred_check
      _
    $region39: #{cond_conv_net_forward.1} parent=1 // pred_check_branch
      %37 = sbr.rel (0) target = $region41
    $region40: #{cond_conv_net_forward.1} parent=1 // pred_region
      _
    $region41: #{cond_conv_net_forward.1} parent=1 // pred_fallthru
      _
    // Predicated region
    $region42: #{cond_conv_net_forward.1} parent=1 // pred_check
      _
    $region43: #{cond_conv_net_forward.1} parent=1 // pred_check_branch
      %39 = sbr.rel (0) target = $region45
    $region44: #{cond_conv_net_forward.1} parent=1 // pred_region
      _
    $region45: #{cond_conv_net_forward.1} parent=1 // pred_fallthru
      _
    // Predicated region
    $region46: #{cond_conv_net_forward.1} parent=1 // pred_check
      _
    $region47: #{cond_conv_net_forward.1} parent=1 // pred_check_branch
      %41 = sbr.rel (0) target = $region49
    $region48: #{cond_conv_net_forward.1} parent=1 // pred_region
      _
    $region49: #{cond_conv_net_forward.1} parent=1 // pred_fallthru
      _
    %v42 = vld [vmem:[%s0] sm:$0xff]
    %v43 = vld [vmem:[%s0 + $0x8] sm:$0xff]
    %v44 = vld [vmem:[%s0 + $0x10] sm:$0xff]
    %v45 = vld [vmem:[%s0 + $0x18] sm:$0xff]
    %v46 = vld [vmem:[%s0 + $0x20] sm:$0xff]
    %v47 = vld [vmem:[%s0 + $0x28] sm:$0xff]
    %v48 = vld [vmem:[%s0 + $0x30] sm:$0xff]
    %v49 = vld [vmem:[%s0 + $0x38] sm:$0xff]
    %v50 = vld [vmem:[%s0 + $0x40] sm:$0xff]
    %v51 = vld [vmem:[%s0 + $0x48] sm:$0xff]
    %v52 = vld [vmem:[%s0 + $0x50] sm:$0xff]
    %v53 = vld [vmem:[%s0 + $0x58] sm:$0xff]
    %v54 = vld [vmem:[%s0 + $0x60] sm:$0xff]
    %v55 = vld [vmem:[%s0 + $0x68] sm:$0xff]
    %v56 = vld [vmem:[%s0 + $0x70] sm:$0xff]
    %v57 = vld [vmem:[%s0 + $0x78] sm:$0xff]
    %v58 = vld [vmem:[%s1] sm:$0xff]
    %v59 = vld [vmem:[%s1 + $0x8] sm:$0x1]
    %vm60 = vcmask 72704
    %v62 = vsel %vm60, %v42, 0
    %v65 = vsel %vm60, %v43, 0
    %v68 = vsel %vm60, %v44, 0
    %v71 = vsel %vm60, %v45, 0
    %v74 = vsel %vm60, %v46, 0
    %v77 = vsel %vm60, %v47, 0
    %v80 = vsel %vm60, %v48, 0
    %v83 = vsel %vm60, %v49, 0
    %v86 = vsel %vm60, %v50, 0
    %v89 = vsel %vm60, %v51, 0
    %v92 = vsel %vm60, %v52, 0
    %v95 = vsel %vm60, %v53, 0
    %v98 = vsel %vm60, %v54, 0
    %v101 = vsel %vm60, %v55, 0
    %v104 = vsel %vm60, %v56, 0
    %v107 = vsel %vm60, %v57, 0
    %vm109 = vcmask 1040384
    %v111 = vsel %vm109, %v59, 0
    %113 = vmatprep.subr.mxu0 0.0
    %114 = vmatpush1.msra.mxu0 %v58
    %115 = vmatprep.subr.mxu0 0.0
    %116 = vmatpush1.msra.mxu0 %v111
    %117 = vmatprep.subr.mxu0 0.0
    %118 = vmatpush1.msra.mxu0 0.0
    %119 = vmatprep.subr.mxu0 0.0
    %120 = vmatpush1.msra.mxu0 0.0
    %121 = vmatprep.subr.mxu0 0.0
    %122 = vmatpush1.msra.mxu0 0.0
    %123 = vmatprep.subr.mxu0 0.0
    %124 = vmatpush1.msra.mxu0 0.0
    %125 = vmatprep.subr.mxu0 0.0
    %126 = vmatpush1.msra.mxu0 0.0
    %127 = vmatprep.subr.mxu0 0.0
    %128 = vmatpush1.msra.mxu0 0.0
    %129 = vmatprep.subr.mxu0 0.0
    %130 = vmatpush1.msra.mxu0 0.0
    %131 = vmatprep.subr.mxu0 0.0
    %132 = vmatpush1.msra.mxu0 0.0
    %133 = vmatprep.subr.mxu0 0.0
    %134 = vmatpush1.msra.mxu0 0.0
    %135 = vmatprep.subr.mxu0 0.0
    %136 = vmatpush1.msra.mxu0 0.0
    %137 = vmatprep.subr.mxu0 0.0
    %138 = vmatpush1.msra.mxu0 0.0
    %139 = vmatprep.subr.mxu0 0.0
    %140 = vmatpush1.msra.mxu0 0.0
    %141 = vmatprep.subr.mxu0 0.0
    %142 = vmatpush1.msra.mxu0 0.0
    %143 = vmatprep.subr.mxu0 0.0
    %144 = vmatpush1.msra.mxu0 0.0
    %145 = vmatprep.subr.mxu0 0.0
    %146 = vmatpush1.msra.mxu0 0.0
    %147 = vmatprep.subr.mxu0 0.0
    %148 = vmatpush1.msra.mxu0 0.0
    %149 = vmatprep.subr.mxu0 0.0
    %150 = vmatpush1.msra.mxu0 0.0
    %151 = vmatprep.subr.mxu0 0.0
    %152 = vmatpush1.msra.mxu0 0.0
    %153 = vmatprep.subr.mxu0 0.0
    %154 = vmatpush1.msra.mxu0 0.0
    %155 = vmatprep.subr.mxu0 0.0
    %156 = vmatpush1.msra.mxu0 0.0
    %157 = vmatprep.subr.mxu0 0.0
    %158 = vmatpush1.msra.mxu0 0.0
    %159 = vmatprep.subr.mxu0 0.0
    %160 = vmatpush1.msra.mxu0 0.0
    %161 = vmatprep.subr.mxu0 0.0
    %162 = vmatpush1.msra.mxu0 0.0
    %163 = vmatprep.subr.mxu0 0.0
    %164 = vmatpush1.msra.mxu0 0.0
    %165 = vmatprep.subr.mxu0 0.0
    %166 = vmatpush1.msra.mxu0 0.0
    %167 = vmatprep.subr.mxu0 0.0
    %168 = vmatpush1.msra.mxu0 0.0
    %169 = vmatprep.subr.mxu0 0.0
    %170 = vmatpush1.msra.mxu0 0.0
    %171 = vmatprep.subr.mxu0 0.0
    %172 = vmatpush1.msra.mxu0 0.0
    %173 = vmatprep.subr.mxu0 0.0
    %174 = vmatpush1.msra.mxu0 0.0
    %175 = vmatprep.subr.mxu0 0.0
    %176 = vmatpush1.msra.mxu0 0.0
    %177 = vmatprep.mubr.f32.mxu0 0.0
    %178 = vmatmul.mubr.f32.gmra.mrb[0].mxu0 %v62
    %v179 = vpop.f32.mrb[0].mxu0
    %v180 = vadd.f32 0.0, %v179
    %v181 = vpop.f32.mrb[0].mxu0
    %182 = vmatprep.mubr.f32.mxu0 0.0
    %183 = vmatmul.mubr.f32.gmra.mrb[0].mxu0 %v65
    %v184 = vpop.f32.mrb[0].mxu0
    %v185 = vadd.f32 0.0, %v184
    %v186 = vpop.f32.mrb[0].mxu0
    %187 = vmatprep.mubr.f32.mxu0 0.0
    %188 = vmatmul.mubr.f32.gmra.mrb[0].mxu0 %v68
    %v189 = vpop.f32.mrb[0].mxu0
    %v190 = vadd.f32 0.0, %v189
    %v191 = vpop.f32.mrb[0].mxu0
    %192 = vmatprep.mubr.f32.mxu0 0.0
    %193 = vmatmul.mubr.f32.gmra.mrb[0].mxu0 %v71
    %v194 = vpop.f32.mrb[0].mxu0
    %v195 = vadd.f32 0.0, %v194
    %v196 = vpop.f32.mrb[0].mxu0
    %197 = vmatprep.mubr.f32.mxu0 0.0
    %198 = vmatmul.mubr.f32.gmra.mrb[0].mxu0 %v74
    %v199 = vpop.f32.mrb[0].mxu0
    %v200 = vadd.f32 0.0, %v199
    %v201 = vpop.f32.mrb[0].mxu0
    %202 = vmatprep.mubr.f32.mxu0 0.0
    %203 = vmatmul.mubr.f32.gmra.mrb[0].mxu0 %v77
    %v204 = vpop.f32.mrb[0].mxu0
    %v205 = vadd.f32 0.0, %v204
    %v206 = vpop.f32.mrb[0].mxu0
    %207 = vmatprep.mubr.f32.mxu0 0.0
    %208 = vmatmul.mubr.f32.gmra.mrb[0].mxu0 %v80
    %v209 = vpop.f32.mrb[0].mxu0
    %v210 = vadd.f32 0.0, %v209
    %v211 = vpop.f32.mrb[0].mxu0
    %212 = vmatprep.mubr.f32.mxu0 0.0
    %213 = vmatmul.mubr.f32.gmra.mrb[0].mxu0 %v83
    %v214 = vpop.f32.mrb[0].mxu0
    %v215 = vadd.f32 0.0, %v214
    %v216 = vpop.f32.mrb[0].mxu0
    %217 = vmatprep.mubr.f32.mxu0 0.0
    %218 = vmatmul.mubr.f32.gmra.mrb[0].mxu0 %v86
    %v219 = vpop.f32.mrb[0].mxu0
    %v220 = vadd.f32 0.0, %v219
    %v221 = vpop.f32.mrb[0].mxu0
    %222 = vmatprep.mubr.f32.mxu0 0.0
    %223 = vmatmul.mubr.f32.gmra.mrb[0].mxu0 %v89
    %v224 = vpop.f32.mrb[0].mxu0
    %v225 = vadd.f32 0.0, %v224
    %v226 = vpop.f32.mrb[0].mxu0
    %227 = vmatprep.mubr.f32.mxu0 0.0
    %228 = vmatmul.mubr.f32.gmra.mrb[0].mxu0 %v92
    %v229 = vpop.f32.mrb[0].mxu0
    %v230 = vadd.f32 0.0, %v229
    %v231 = vpop.f32.mrb[0].mxu0
    %232 = vmatprep.mubr.f32.mxu0 0.0
    %233 = vmatmul.mubr.f32.gmra.mrb[0].mxu0 %v95
    %v234 = vpop.f32.mrb[0].mxu0
    %v235 = vadd.f32 0.0, %v234
    %v236 = vpop.f32.mrb[0].mxu0
    %237 = vmatprep.mubr.f32.mxu0 0.0
    %238 = vmatmul.mubr.f32.gmra.mrb[0].mxu0 %v98
    %v239 = vpop.f32.mrb[0].mxu0
    %v240 = vadd.f32 0.0, %v239
    %v241 = vpop.f32.mrb[0].mxu0
    %242 = vmatprep.mubr.f32.mxu0 0.0
    %243 = vmatmul.mubr.f32.gmra.mrb[0].mxu0 %v101
    %v244 = vpop.f32.mrb[0].mxu0
    %v245 = vadd.f32 0.0, %v244
    %v246 = vpop.f32.mrb[0].mxu0
    %247 = vmatprep.mubr.f32.mxu0 0.0
    %248 = vmatmul.mubr.f32.gmra.mrb[0].mxu0 %v104
    %v249 = vpop.f32.mrb[0].mxu0
    %v250 = vadd.f32 0.0, %v249
    %v251 = vpop.f32.mrb[0].mxu0
    %252 = vmatprep.mubr.f32.mxu0 0.0
    %253 = vmatmul.mubr.f32.gmra.mrb[0].mxu0 %v107
    %v254 = vpop.f32.mrb[0].mxu0
    %v255 = vadd.f32 0.0, %v254
    %v256 = vpop.f32.mrb[0].mxu0
    %257 = vdwg.mxu0
    %vm258 = vcmask 261120
    %v259 = vsel %vm258, %v180, 0.0
    %v260 = vsel %vm258, %v185, 0.0
    %v261 = vadd.f32 %v259, %v260
    %v262 = vsel %vm258, %v190, 0.0
    %v263 = vadd.f32 %v261, %v262
    %v264 = vsel %vm258, %v195, 0.0
    %v265 = vadd.f32 %v263, %v264
    %v266 = vsel %vm258, %v200, 0.0
    %v267 = vadd.f32 %v265, %v266
    %v268 = vsel %vm258, %v205, 0.0
    %v269 = vadd.f32 %v267, %v268
    %v270 = vsel %vm258, %v210, 0.0
    %v271 = vadd.f32 %v269, %v270
    %v272 = vsel %vm258, %v215, 0.0
    %v273 = vadd.f32 %v271, %v272
    %v274 = vsel %vm258, %v220, 0.0
    %v275 = vadd.f32 %v273, %v274
    %v276 = vsel %vm258, %v225, 0.0
    %v277 = vadd.f32 %v275, %v276
    %v278 = vsel %vm258, %v230, 0.0
    %v279 = vadd.f32 %v277, %v278
    %v280 = vsel %vm258, %v235, 0.0
    %v281 = vadd.f32 %v279, %v280
    %v282 = vsel %vm258, %v240, 0.0
    %v283 = vadd.f32 %v281, %v282
    %v284 = vsel %vm258, %v245, 0.0
    %v285 = vadd.f32 %v283, %v284
    %v286 = vsel %vm258, %v250, 0.0
    %v287 = vadd.f32 %v285, %v286
    %v288 = vsel %vm258, %v255, 0.0
    %v289 = vadd.f32 %v287, %v288
    %v290 = vrot.slane %v289, 4
    %v291 = vadd.f32 %v289, %v290
    %v292 = vrot.slane %v291, 2
    %v293 = vadd.f32 %v291, %v292
    %v294 = vrot.slane %v293, 1
    %v295 = vadd.f32 %v293, %v294
    %v296 = vmul.f32 %v295, 0.0078125
    %v297 = vmul.f32 %v180, %v180
    %v298 = vmul.f32 %v185, %v185
    %v299 = vmul.f32 %v190, %v190
    %v300 = vmul.f32 %v195, %v195
    %v301 = vmul.f32 %v200, %v200
    %v302 = vmul.f32 %v205, %v205
    %v303 = vmul.f32 %v210, %v210
    %v304 = vmul.f32 %v215, %v215
    %v305 = vmul.f32 %v220, %v220
    %v306 = vmul.f32 %v225, %v225
    %v307 = vmul.f32 %v230, %v230
    %v308 = vmul.f32 %v235, %v235
    %v309 = vmul.f32 %v240, %v240
    %v310 = vmul.f32 %v245, %v245
    %v311 = vmul.f32 %v250, %v250
    %v312 = vmul.f32 %v255, %v255
    %v313 = vsel %vm258, %v297, 0.0
    %v314 = vsel %vm258, %v298, 0.0
    %v315 = vadd.f32 %v313, %v314
    %v316 = vsel %vm258, %v299, 0.0
    %v317 = vadd.f32 %v315, %v316
    %v318 = vsel %vm258, %v300, 0.0
    %v319 = vadd.f32 %v317, %v318
    %v320 = vsel %vm258, %v301, 0.0
    %v321 = vadd.f32 %v319, %v320
    %v322 = vsel %vm258, %v302, 0.0
    %v323 = vadd.f32 %v321, %v322
    %v324 = vsel %vm258, %v303, 0.0
    %v325 = vadd.f32 %v323, %v324
    %v326 = vsel %vm258, %v304, 0.0
    %v327 = vadd.f32 %v325, %v326
    %v328 = vsel %vm258, %v305, 0.0
    %v329 = vadd.f32 %v327, %v328
    %v330 = vsel %vm258, %v306, 0.0
    %v331 = vadd.f32 %v329, %v330
    %v332 = vsel %vm258, %v307, 0.0
    %v333 = vadd.f32 %v331, %v332
    %v334 = vsel %vm258, %v308, 0.0
    %v335 = vadd.f32 %v333, %v334
    %v336 = vsel %vm258, %v309, 0.0
    %v337 = vadd.f32 %v335, %v336
    %v338 = vsel %vm258, %v310, 0.0
    %v339 = vadd.f32 %v337, %v338
    %v340 = vsel %vm258, %v311, 0.0
    %v341 = vadd.f32 %v339, %v340
    %v342 = vsel %vm258, %v312, 0.0
    %v343 = vadd.f32 %v341, %v342
    %v344 = vrot.slane %v343, 4
    %v345 = vadd.f32 %v343, %v344
    %v346 = vrot.slane %v345, 2
    %v347 = vadd.f32 %v345, %v346
    %v348 = vrot.slane %v347, 1
    %v349 = vadd.f32 %v347, %v348
    %v350 = vmul.f32 %v349, 0.0078125
    %v351 = vmul.f32 %v296, %v296
    %v352 = vsub.f32 %v350, %v351
    %v353 = vld [vmem:[%s8] sm:$0x1]
    %v354 = vadd.f32 %v352, 1e-05
    %v355 = vrsqrt.pop %v354
    %v356 = vmul.f32 %v353, %v355
    %v357 = vsub.f32 %v180, %v296
    %v358 = vsub.f32 %v185, %v296
    %v359 = vsub.f32 %v190, %v296
    %v360 = vsub.f32 %v195, %v296
    %v361 = vsub.f32 %v200, %v296
    %v362 = vsub.f32 %v205, %v296
    %v363 = vsub.f32 %v210, %v296
    %v364 = vsub.f32 %v215, %v296
    %v365 = vsub.f32 %v220, %v296
    %v366 = vsub.f32 %v225, %v296
    %v367 = vsub.f32 %v230, %v296
    %v368 = vsub.f32 %v235, %v296
    %v369 = vsub.f32 %v240, %v296
    %v370 = vsub.f32 %v245, %v296
    %v371 = vsub.f32 %v250, %v296
    %v372 = vsub.f32 %v255, %v296
    %v374 = vlaneseq
    %v375 = vshrl.u32 %v374, 7
    %v376 = vsub.s32 0, %v375
    %v377 = vrot.slane %v356, %v376
    %v379 = vmul.f32 %v357, %v377
    %v380 = vmul.f32 %v358, %v377
    %v381 = vmul.f32 %v359, %v377
    %v382 = vmul.f32 %v360, %v377
    %v383 = vmul.f32 %v361, %v377
    %v384 = vmul.f32 %v362, %v377
    %v385 = vmul.f32 %v363, %v377
    %v386 = vmul.f32 %v364, %v377
    %v387 = vmul.f32 %v365, %v377
    %v388 = vmul.f32 %v366, %v377
    %v389 = vmul.f32 %v367, %v377
    %v390 = vmul.f32 %v368, %v377
    %v391 = vmul.f32 %v369, %v377
    %v392 = vmul.f32 %v370, %v377
    %v393 = vmul.f32 %v371, %v377
    %v394 = vmul.f32 %v372, %v377
    %v395 = vld [vmem:[%s9] sm:$0x1]
    %v397 = vlaneseq
    %v398 = vshrl.u32 %v397, 7
    %v399 = vsub.s32 0, %v398
    %v400 = vrot.slane %v395, %v399
    %v402 = vadd.f32 %v379, %v400
    %v403 = vadd.f32 %v380, %v400
    %v404 = vadd.f32 %v381, %v400
    %v405 = vadd.f32 %v382, %v400
    %v406 = vadd.f32 %v383, %v400
    %v407 = vadd.f32 %v384, %v400
    %v408 = vadd.f32 %v385, %v400
    %v409 = vadd.f32 %v386, %v400
    %v410 = vadd.f32 %v387, %v400
    %v411 = vadd.f32 %v388, %v400
    %v412 = vadd.f32 %v389, %v400
    %v413 = vadd.f32 %v390, %v400
    %v414 = vadd.f32 %v391, %v400
    %v415 = vadd.f32 %v392, %v400
    %v416 = vadd.f32 %v393, %v400
    %v417 = vadd.f32 %v394, %v400
    %v418 = vmax.f32 %v402, 0.0
    %v419 = vmax.f32 %v403, 0.0
    %v420 = vmax.f32 %v404, 0.0
    %v421 = vmax.f32 %v405, 0.0
    %v422 = vmax.f32 %v406, 0.0
    %v423 = vmax.f32 %v407, 0.0
    %v424 = vmax.f32 %v408, 0.0
    %v425 = vmax.f32 %v409, 0.0
    %v426 = vmax.f32 %v410, 0.0
    %v427 = vmax.f32 %v411, 0.0
    %v428 = vmax.f32 %v412, 0.0
    %v429 = vmax.f32 %v413, 0.0
    %v430 = vmax.f32 %v414, 0.0
    %v431 = vmax.f32 %v415, 0.0
    %v432 = vmax.f32 %v416, 0.0
    %v433 = vmax.f32 %v417, 0.0
    %v434 = vld [vmem:[%s2] sm:$0xff]
    %v435 = vld [vmem:[%s2 + $0x8] sm:$0xff]
    %v436 = vld [vmem:[%s2 + $0x10] sm:$0xff]
    %v437 = vld [vmem:[%s2 + $0x18] sm:$0xff]
    %438 = vmatprep.subr.mxu0 0.0
    %439 = vmatpush1.msra.mxu0 %v418
    %440 = vmatprep.subr.mxu0 0.0
    %441 = vmatpush1.msra.mxu0 %v419
    %442 = vmatprep.subr.mxu0 0.0
    %443 = vmatpush1.msra.mxu0 %v420
    %444 = vmatprep.subr.mxu0 0.0
    %445 = vmatpush1.msra.mxu0 %v421
    %446 = vmatprep.subr.mxu0 0.0
    %447 = vmatpush1.msra.mxu0 %v422
    %448 = vmatprep.subr.mxu0 0.0
    %449 = vmatpush1.msra.mxu0 %v423
    %450 = vmatprep.subr.mxu0 0.0
    %451 = vmatpush1.msra.mxu0 %v424
    %452 = vmatprep.subr.mxu0 0.0
    %453 = vmatpush1.msra.mxu0 %v425
    %454 = vmatprep.subr.mxu0 0.0
    %455 = vmatpush1.msra.mxu0 %v426
    %456 = vmatprep.subr.mxu0 0.0
    %457 = vmatpush1.msra.mxu0 %v427
    %458 = vmatprep.subr.mxu0 0.0
    %459 = vmatpush1.msra.mxu0 %v428
    %460 = vmatprep.subr.mxu0 0.0
    %461 = vmatpush1.msra.mxu0 %v429
    %462 = vmatprep.subr.mxu0 0.0
    %463 = vmatpush1.msra.mxu0 %v430
    %464 = vmatprep.subr.mxu0 0.0
    %465 = vmatpush1.msra.mxu0 %v431
    %466 = vmatprep.subr.mxu0 0.0
    %467 = vmatpush1.msra.mxu0 %v432
    %468 = vmatprep.subr.mxu0 0.0
    %469 = vmatpush1.msra.mxu0 %v433
    %470 = vmatprep.subr.mxu0 0.0
    %471 = vmatpush1.msra.mxu0 0.0
    %472 = vmatprep.subr.mxu0 0.0
    %473 = vmatpush1.msra.mxu0 0.0
    %474 = vmatprep.subr.mxu0 0.0
    %475 = vmatpush1.msra.mxu0 0.0
    %476 = vmatprep.subr.mxu0 0.0
    %477 = vmatpush1.msra.mxu0 0.0
    %478 = vmatprep.subr.mxu0 0.0
    %479 = vmatpush1.msra.mxu0 0.0
    %480 = vmatprep.subr.mxu0 0.0
    %481 = vmatpush1.msra.mxu0 0.0
    %482 = vmatprep.subr.mxu0 0.0
    %483 = vmatpush1.msra.mxu0 0.0
    %484 = vmatprep.subr.mxu0 0.0
    %485 = vmatpush1.msra.mxu0 0.0
    %486 = vmatprep.subr.mxu0 0.0
    %487 = vmatpush1.msra.mxu0 0.0
    %488 = vmatprep.subr.mxu0 0.0
    %489 = vmatpush1.msra.mxu0 0.0
    %490 = vmatprep.subr.mxu0 0.0
    %491 = vmatpush1.msra.mxu0 0.0
    %492 = vmatprep.subr.mxu0 0.0
    %493 = vmatpush1.msra.mxu0 0.0
    %494 = vmatprep.subr.mxu0 0.0
    %495 = vmatpush1.msra.mxu0 0.0
    %496 = vmatprep.subr.mxu0 0.0
    %497 = vmatpush1.msra.mxu0 0.0
    %498 = vmatprep.subr.mxu0 0.0
    %499 = vmatpush1.msra.mxu0 0.0
    %500 = vmatprep.subr.mxu0 0.0
    %501 = vmatpush1.msra.mxu0 0.0
    %502 = vmatprep.mubr.f32.mxu0 0.0
    %503 = vmatmul.mubr.f32.gmra.mrb[0].mxu0 %v434
    %v504 = vpop.f32.mrb[0].mxu0
    %v505 = vadd.f32 0.0, %v504
    %v506 = vpop.f32.mrb[0].mxu0
    %507 = vmatprep.mubr.f32.mxu0 0.0
    %508 = vmatmul.mubr.f32.gmra.mrb[0].mxu0 %v435
    %v509 = vpop.f32.mrb[0].mxu0
    %v510 = vadd.f32 0.0, %v509
    %v511 = vpop.f32.mrb[0].mxu0
    %512 = vmatprep.mubr.f32.mxu0 0.0
    %513 = vmatmul.mubr.f32.gmra.mrb[0].mxu0 %v436
    %v514 = vpop.f32.mrb[0].mxu0
    %v515 = vadd.f32 0.0, %v514
    %v516 = vpop.f32.mrb[0].mxu0
    %517 = vmatprep.mubr.f32.mxu0 0.0
    %518 = vmatmul.mubr.f32.gmra.mrb[0].mxu0 %v437
    %v519 = vpop.f32.mrb[0].mxu0
    %v520 = vadd.f32 0.0, %v519
    %v521 = vpop.f32.mrb[0].mxu0
    %522 = vdwg.mxu0
    %v523 = vld [vmem:[%s3] sm:$0xff]
    %v524 = vld [vmem:[%s3 + $0x8] sm:$0xff]
    %v525 = vld [vmem:[%s3 + $0x10] sm:$0xff]
    %v526 = vld [vmem:[%s3 + $0x18] sm:$0xff]
    %s527 = scalar_lea.vmem %s2, 32
    %v528 = vld [vmem:[%s527] sm:$0xff]
    %v529 = vld [vmem:[%s527 + $0x8] sm:$0xff]
    %v530 = vld [vmem:[%s527 + $0x10] sm:$0xff]
    %v531 = vld [vmem:[%s527 + $0x18] sm:$0xff]
    %532 = vmatprep.subr.mxu0 0.0
    %533 = vmatpush1.msra.mxu0 %v418
    %534 = vmatprep.subr.mxu0 0.0
    %535 = vmatpush1.msra.mxu0 %v419
    %536 = vmatprep.subr.mxu0 0.0
    %537 = vmatpush1.msra.mxu0 %v420
    %538 = vmatprep.subr.mxu0 0.0
    %539 = vmatpush1.msra.mxu0 %v421
    %540 = vmatprep.subr.mxu0 0.0
    %541 = vmatpush1.msra.mxu0 %v422
    %542 = vmatprep.subr.mxu0 0.0
    %543 = vmatpush1.msra.mxu0 %v423
    %544 = vmatprep.subr.mxu0 0.0
    %545 = vmatpush1.msra.mxu0 %v424
    %546 = vmatprep.subr.mxu0 0.0
    %547 = vmatpush1.msra.mxu0 %v425
    %548 = vmatprep.subr.mxu0 0.0
    %549 = vmatpush1.msra.mxu0 %v426
    %550 = vmatprep.subr.mxu0 0.0
    %551 = vmatpush1.msra.mxu0 %v427
    %552 = vmatprep.subr.mxu0 0.0
    %553 = vmatpush1.msra.mxu0 %v428
    %554 = vmatprep.subr.mxu0 0.0
    %555 = vmatpush1.msra.mxu0 %v429
    %556 = vmatprep.subr.mxu0 0.0
    %557 = vmatpush1.msra.mxu0 %v430
    %558 = vmatprep.subr.mxu0 0.0
    %559 = vmatpush1.msra.mxu0 %v431
    %560 = vmatprep.subr.mxu0 0.0
    %561 = vmatpush1.msra.mxu0 %v432
    %562 = vmatprep.subr.mxu0 0.0
    %563 = vmatpush1.msra.mxu0 %v433
    %564 = vmatprep.subr.mxu0 0.0
    %565 = vmatpush1.msra.mxu0 0.0
    %566 = vmatprep.subr.mxu0 0.0
    %567 = vmatpush1.msra.mxu0 0.0
    %568 = vmatprep.subr.mxu0 0.0
    %569 = vmatpush1.msra.mxu0 0.0
    %570 = vmatprep.subr.mxu0 0.0
    %571 = vmatpush1.msra.mxu0 0.0
    %572 = vmatprep.subr.mxu0 0.0
    %573 = vmatpush1.msra.mxu0 0.0
    %574 = vmatprep.subr.mxu0 0.0
    %575 = vmatpush1.msra.mxu0 0.0
    %576 = vmatprep.subr.mxu0 0.0
    %577 = vmatpush1.msra.mxu0 0.0
    %578 = vmatprep.subr.mxu0 0.0
    %579 = vmatpush1.msra.mxu0 0.0
    %580 = vmatprep.subr.mxu0 0.0
    %581 = vmatpush1.msra.mxu0 0.0
    %582 = vmatprep.subr.mxu0 0.0
    %583 = vmatpush1.msra.mxu0 0.0
    %584 = vmatprep.subr.mxu0 0.0
    %585 = vmatpush1.msra.mxu0 0.0
    %586 = vmatprep.subr.mxu0 0.0
    %587 = vmatpush1.msra.mxu0 0.0
    %588 = vmatprep.subr.mxu0 0.0
    %589 = vmatpush1.msra.mxu0 0.0
    %590 = vmatprep.subr.mxu0 0.0
    %591 = vmatpush1.msra.mxu0 0.0
    %592 = vmatprep.subr.mxu0 0.0
    %593 = vmatpush1.msra.mxu0 0.0
    %594 = vmatprep.subr.mxu0 0.0
    %595 = vmatpush1.msra.mxu0 0.0
    %596 = vmatprep.mubr.f32.mxu0 0.0
    %597 = vmatmul.mubr.f32.gmra.mrb[0].mxu0 %v528
    %v598 = vpop.f32.mrb[0].mxu0
    %v599 = vadd.f32 0.0, %v598
    %v600 = vpop.f32.mrb[0].mxu0
    %601 = vmatprep.mubr.f32.mxu0 0.0
    %602 = vmatmul.mubr.f32.gmra.mrb[0].mxu0 %v529
    %v603 = vpop.f32.mrb[0].mxu0
    %v604 = vadd.f32 0.0, %v603
    %v605 = vpop.f32.mrb[0].mxu0
    %606 = vmatprep.mubr.f32.mxu0 0.0
    %607 = vmatmul.mubr.f32.gmra.mrb[0].mxu0 %v530
    %v608 = vpop.f32.mrb[0].mxu0
    %v609 = vadd.f32 0.0, %v608
    %v610 = vpop.f32.mrb[0].mxu0
    %611 = vmatprep.mubr.f32.mxu0 0.0
    %612 = vmatmul.mubr.f32.gmra.mrb[0].mxu0 %v531
    %v613 = vpop.f32.mrb[0].mxu0
    %v614 = vadd.f32 0.0, %v613
    %v615 = vpop.f32.mrb[0].mxu0
    %616 = vdwg.mxu0
    %s617 = scalar_lea.vmem %s3, 32
    %v618 = vld [vmem:[%s617] sm:$0xff]
    %v619 = vld [vmem:[%s617 + $0x8] sm:$0xff]
    %v620 = vld [vmem:[%s617 + $0x10] sm:$0xff]
    %v621 = vld [vmem:[%s617 + $0x18] sm:$0xff]
    %v623 = vsel %vm258, %v599, 0
    %v626 = vsel %vm258, %v604, 0
    %v629 = vsel %vm258, %v609, 0
    %v632 = vsel %vm258, %v614, 0
    %634 = vmatprep.subr.mxu0 0.0
    %635 = vmatpush1.msra.mxu0 %v618
    %636 = vmatprep.subr.mxu0 0.0
    %637 = vmatpush1.msra.mxu0 %v619
    %638 = vmatprep.subr.mxu0 0.0
    %639 = vmatpush1.msra.mxu0 %v620
    %640 = vmatprep.subr.mxu0 0.0
    %641 = vmatpush1.msra.mxu0 %v621
    %642 = vmatprep.subr.mxu0 0.0
    %643 = vmatpush1.msra.mxu0 0.0
    %644 = vmatprep.subr.mxu0 0.0
    %645 = vmatpush1.msra.mxu0 0.0
    %646 = vmatprep.subr.mxu0 0.0
    %647 = vmatpush1.msra.mxu0 0.0
    %648 = vmatprep.subr.mxu0 0.0
    %649 = vmatpush1.msra.mxu0 0.0
    %650 = vmatprep.subr.mxu0 0.0
    %651 = vmatpush1.msra.mxu0 0.0
    %652 = vmatprep.subr.mxu0 0.0
    %653 = vmatpush1.msra.mxu0 0.0
    %654 = vmatprep.subr.mxu0 0.0
    %655 = vmatpush1.msra.mxu0 0.0
    %656 = vmatprep.subr.mxu0 0.0
    %657 = vmatpush1.msra.mxu0 0.0
    %658 = vmatprep.subr.mxu0 0.0
    %659 = vmatpush1.msra.mxu0 0.0
    %660 = vmatprep.subr.mxu0 0.0
    %661 = vmatpush1.msra.mxu0 0.0
    %662 = vmatprep.subr.mxu0 0.0
    %663 = vmatpush1.msra.mxu0 0.0
    %664 = vmatprep.subr.mxu0 0.0
    %665 = vmatpush1.msra.mxu0 0.0
    %666 = vmatprep.subr.mxu0 0.0
    %667 = vmatpush1.msra.mxu0 0.0
    %668 = vmatprep.subr.mxu0 0.0
    %669 = vmatpush1.msra.mxu0 0.0
    %670 = vmatprep.subr.mxu0 0.0
    %671 = vmatpush1.msra.mxu0 0.0
    %672 = vmatprep.subr.mxu0 0.0
    %673 = vmatpush1.msra.mxu0 0.0
    %674 = vmatprep.subr.mxu0 0.0
    %675 = vmatpush1.msra.mxu0 0.0
    %676 = vmatprep.subr.mxu0 0.0
    %677 = vmatpush1.msra.mxu0 0.0
    %678 = vmatprep.subr.mxu0 0.0
    %679 = vmatpush1.msra.mxu0 0.0
    %680 = vmatprep.subr.mxu0 0.0
    %681 = vmatpush1.msra.mxu0 0.0
    %682 = vmatprep.subr.mxu0 0.0
    %683 = vmatpush1.msra.mxu0 0.0
    %684 = vmatprep.subr.mxu0 0.0
    %685 = vmatpush1.msra.mxu0 0.0
    %686 = vmatprep.subr.mxu0 0.0
    %687 = vmatpush1.msra.mxu0 0.0
    %688 = vmatprep.subr.mxu0 0.0
    %689 = vmatpush1.msra.mxu0 0.0
    %690 = vmatprep.subr.mxu0 0.0
    %691 = vmatpush1.msra.mxu0 0.0
    %692 = vmatprep.subr.mxu0 0.0
    %693 = vmatpush1.msra.mxu0 0.0
    %694 = vmatprep.subr.mxu0 0.0
    %695 = vmatpush1.msra.mxu0 0.0
    %696 = vmatprep.subr.mxu0 0.0
    %697 = vmatpush1.msra.mxu0 0.0
    %698 = vmatprep.mubr.f32.mxu0 0.0
    %699 = vmatmul.mubr.f32.gmra.mrb[0].mxu0 %v623
    %v700 = vpop.f32.mrb[0].mxu0
    %v701 = vadd.f32 0.0, %v700
    %v702 = vpop.f32.mrb[0].mxu0
    %703 = vmatprep.mubr.f32.mxu0 0.0
    %704 = vmatmul.mubr.f32.gmra.mrb[0].mxu0 %v626
    %v705 = vpop.f32.mrb[0].mxu0
    %v706 = vadd.f32 0.0, %v705
    %v707 = vpop.f32.mrb[0].mxu0
    %708 = vmatprep.mubr.f32.mxu0 0.0
    %709 = vmatmul.mubr.f32.gmra.mrb[0].mxu0 %v629
    %v710 = vpop.f32.mrb[0].mxu0
    %v711 = vadd.f32 0.0, %v710
    %v712 = vpop.f32.mrb[0].mxu0
    %713 = vmatprep.mubr.f32.mxu0 0.0
    %714 = vmatmul.mubr.f32.gmra.mrb[0].mxu0 %v632
    %v715 = vpop.f32.mrb[0].mxu0
    %v716 = vadd.f32 0.0, %v715
    %v717 = vpop.f32.mrb[0].mxu0
    %718 = vdwg.mxu0
    %v720 = vsel %vm258, %v505, 0
    %v723 = vsel %vm258, %v510, 0
    %v726 = vsel %vm258, %v515, 0
    %v729 = vsel %vm258, %v520, 0
    %731 = vmatprep.subr.mxu0 0.0
    %732 = vmatpush1.msra.mxu0 %v523
    %733 = vmatprep.subr.mxu0 0.0
    %734 = vmatpush1.msra.mxu0 %v524
    %735 = vmatprep.subr.mxu0 0.0
    %736 = vmatpush1.msra.mxu0 %v525
    %737 = vmatprep.subr.mxu0 0.0
    %738 = vmatpush1.msra.mxu0 %v526
    %739 = vmatprep.subr.mxu0 0.0
    %740 = vmatpush1.msra.mxu0 0.0
    %741 = vmatprep.subr.mxu0 0.0
    %742 = vmatpush1.msra.mxu0 0.0
    %743 = vmatprep.subr.mxu0 0.0
    %744 = vmatpush1.msra.mxu0 0.0
    %745 = vmatprep.subr.mxu0 0.0
    %746 = vmatpush1.msra.mxu0 0.0
    %747 = vmatprep.subr.mxu0 0.0
    %748 = vmatpush1.msra.mxu0 0.0
    %749 = vmatprep.subr.mxu0 0.0
    %750 = vmatpush1.msra.mxu0 0.0
    %751 = vmatprep.subr.mxu0 0.0
    %752 = vmatpush1.msra.mxu0 0.0
    %753 = vmatprep.subr.mxu0 0.0
    %754 = vmatpush1.msra.mxu0 0.0
    %755 = vmatprep.subr.mxu0 0.0
    %756 = vmatpush1.msra.mxu0 0.0
    %757 = vmatprep.subr.mxu0 0.0
    %758 = vmatpush1.msra.mxu0 0.0
    %759 = vmatprep.subr.mxu0 0.0
    %760 = vmatpush1.msra.mxu0 0.0
    %761 = vmatprep.subr.mxu0 0.0
    %762 = vmatpush1.msra.mxu0 0.0
    %763 = vmatprep.subr.mxu0 0.0
    %764 = vmatpush1.msra.mxu0 0.0
    %765 = vmatprep.subr.mxu0 0.0
    %766 = vmatpush1.msra.mxu0 0.0
    %767 = vmatprep.subr.mxu0 0.0
    %768 = vmatpush1.msra.mxu0 0.0
    %769 = vmatprep.subr.mxu0 0.0
    %770 = vmatpush1.msra.mxu0 0.0
    %771 = vmatprep.subr.mxu0 0.0
    %772 = vmatpush1.msra.mxu0 0.0
    %773 = vmatprep.subr.mxu0 0.0
    %774 = vmatpush1.msra.mxu0 0.0
    %775 = vmatprep.subr.mxu0 0.0
    %776 = vmatpush1.msra.mxu0 0.0
    %777 = vmatprep.subr.mxu0 0.0
    %778 = vmatpush1.msra.mxu0 0.0
    %779 = vmatprep.subr.mxu0 0.0
    %780 = vmatpush1.msra.mxu0 0.0
    %781 = vmatprep.subr.mxu0 0.0
    %782 = vmatpush1.msra.mxu0 0.0
    %783 = vmatprep.subr.mxu0 0.0
    %784 = vmatpush1.msra.mxu0 0.0
    %785 = vmatprep.subr.mxu0 0.0
    %786 = vmatpush1.msra.mxu0 0.0
    %787 = vmatprep.subr.mxu0 0.0
    %788 = vmatpush1.msra.mxu0 0.0
    %789 = vmatprep.subr.mxu0 0.0
    %790 = vmatpush1.msra.mxu0 0.0
    %791 = vmatprep.subr.mxu0 0.0
    %792 = vmatpush1.msra.mxu0 0.0
    %793 = vmatprep.subr.mxu0 0.0
    %794 = vmatpush1.msra.mxu0 0.0
    %795 = vmatprep.mubr.f32.mxu0 0.0
    %796 = vmatmul.mubr.f32.gmra.mrb[0].mxu0 %v720
    %v797 = vpop.f32.mrb[0].mxu0
    %v798 = vadd.f32 %v701, %v797
    %v799 = vpop.f32.mrb[0].mxu0
    %800 = vmatprep.mubr.f32.mxu0 0.0
    %801 = vmatmul.mubr.f32.gmra.mrb[0].mxu0 %v723
    %v802 = vpop.f32.mrb[0].mxu0
    %v803 = vadd.f32 %v706, %v802
    %v804 = vpop.f32.mrb[0].mxu0
    %805 = vmatprep.mubr.f32.mxu0 0.0
    %806 = vmatmul.mubr.f32.gmra.mrb[0].mxu0 %v726
    %v807 = vpop.f32.mrb[0].mxu0
    %v808 = vadd.f32 %v711, %v807
    %v809 = vpop.f32.mrb[0].mxu0
    %810 = vmatprep.mubr.f32.mxu0 0.0
    %811 = vmatmul.mubr.f32.gmra.mrb[0].mxu0 %v729
    %v812 = vpop.f32.mrb[0].mxu0
    %v813 = vadd.f32 %v716, %v812
    %v814 = vpop.f32.mrb[0].mxu0
    %815 = vdwg.mxu0
    %s816 = scalar_lea.vmem %s2, 64
    %v817 = vld [vmem:[%s816] sm:$0xff]
    %v818 = vld [vmem:[%s816 + $0x8] sm:$0xff]
    %v819 = vld [vmem:[%s816 + $0x10] sm:$0xff]
    %v820 = vld [vmem:[%s816 + $0x18] sm:$0xff]
    %821 = vmatprep.subr.mxu0 0.0
    %822 = vmatpush1.msra.mxu0 %v418
    %823 = vmatprep.subr.mxu0 0.0
    %824 = vmatpush1.msra.mxu0 %v419
    %825 = vmatprep.subr.mxu0 0.0
    %826 = vmatpush1.msra.mxu0 %v420
    %827 = vmatprep.subr.mxu0 0.0
    %828 = vmatpush1.msra.mxu0 %v421
    %829 = vmatprep.subr.mxu0 0.0
    %830 = vmatpush1.msra.mxu0 %v422
    %831 = vmatprep.subr.mxu0 0.0
    %832 = vmatpush1.msra.mxu0 %v423
    %833 = vmatprep.subr.mxu0 0.0
    %834 = vmatpush1.msra.mxu0 %v424
    %835 = vmatprep.subr.mxu0 0.0
    %836 = vmatpush1.msra.mxu0 %v425
    %837 = vmatprep.subr.mxu0 0.0
    %838 = vmatpush1.msra.mxu0 %v426
    %839 = vmatprep.subr.mxu0 0.0
    %840 = vmatpush1.msra.mxu0 %v427
    %841 = vmatprep.subr.mxu0 0.0
    %842 = vmatpush1.msra.mxu0 %v428
    %843 = vmatprep.subr.mxu0 0.0
    %844 = vmatpush1.msra.mxu0 %v429
    %845 = vmatprep.subr.mxu0 0.0
    %846 = vmatpush1.msra.mxu0 %v430
    %847 = vmatprep.subr.mxu0 0.0
    %848 = vmatpush1.msra.mxu0 %v431
    %849 = vmatprep.subr.mxu0 0.0
    %850 = vmatpush1.msra.mxu0 %v432
    %851 = vmatprep.subr.mxu0 0.0
    %852 = vmatpush1.msra.mxu0 %v433
    %853 = vmatprep.subr.mxu0 0.0
    %854 = vmatpush1.msra.mxu0 0.0
    %855 = vmatprep.subr.mxu0 0.0
    %856 = vmatpush1.msra.mxu0 0.0
    %857 = vmatprep.subr.mxu0 0.0
    %858 = vmatpush1.msra.mxu0 0.0
    %859 = vmatprep.subr.mxu0 0.0
    %860 = vmatpush1.msra.mxu0 0.0
    %861 = vmatprep.subr.mxu0 0.0
    %862 = vmatpush1.msra.mxu0 0.0
    %863 = vmatprep.subr.mxu0 0.0
    %864 = vmatpush1.msra.mxu0 0.0
    %865 = vmatprep.subr.mxu0 0.0
    %866 = vmatpush1.msra.mxu0 0.0
    %867 = vmatprep.subr.mxu0 0.0
    %868 = vmatpush1.msra.mxu0 0.0
    %869 = vmatprep.subr.mxu0 0.0
    %870 = vmatpush1.msra.mxu0 0.0
    %871 = vmatprep.subr.mxu0 0.0
    %872 = vmatpush1.msra.mxu0 0.0
    %873 = vmatprep.subr.mxu0 0.0
    %874 = vmatpush1.msra.mxu0 0.0
    %875 = vmatprep.subr.mxu0 0.0
    %876 = vmatpush1.msra.mxu0 0.0
    %877 = vmatprep.subr.mxu0 0.0
    %878 = vmatpush1.msra.mxu0 0.0
    %879 = vmatprep.subr.mxu0 0.0
    %880 = vmatpush1.msra.mxu0 0.0
    %881 = vmatprep.subr.mxu0 0.0
    %882 = vmatpush1.msra.mxu0 0.0
    %883 = vmatprep.subr.mxu0 0.0
    %884 = vmatpush1.msra.mxu0 0.0
    %885 = vmatprep.mubr.f32.mxu0 0.0
    %886 = vmatmul.mubr.f32.gmra.mrb[0].mxu0 %v817
    %v887 = vpop.f32.mrb[0].mxu0
    %v888 = vadd.f32 0.0, %v887
    %v889 = vpop.f32.mrb[0].mxu0
    %890 = vmatprep.mubr.f32.mxu0 0.0
    %891 = vmatmul.mubr.f32.gmra.mrb[0].mxu0 %v818
    %v892 = vpop.f32.mrb[0].mxu0
    %v893 = vadd.f32 0.0, %v892
    %v894 = vpop.f32.mrb[0].mxu0
    %895 = vmatprep.mubr.f32.mxu0 0.0
    %896 = vmatmul.mubr.f32.gmra.mrb[0].mxu0 %v819
    %v897 = vpop.f32.mrb[0].mxu0
    %v898 = vadd.f32 0.0, %v897
    %v899 = vpop.f32.mrb[0].mxu0
    %900 = vmatprep.mubr.f32.mxu0 0.0
    %901 = vmatmul.mubr.f32.gmra.mrb[0].mxu0 %v820
    %v902 = vpop.f32.mrb[0].mxu0
    %v903 = vadd.f32 0.0, %v902
    %v904 = vpop.f32.mrb[0].mxu0
    %905 = vdwg.mxu0
    %s906 = scalar_lea.vmem %s3, 64
    %v907 = vld [vmem:[%s906] sm:$0xff]
    %v908 = vld [vmem:[%s906 + $0x8] sm:$0xff]
    %v909 = vld [vmem:[%s906 + $0x10] sm:$0xff]
    %v910 = vld [vmem:[%s906 + $0x18] sm:$0xff]
    %v912 = vsel %vm258, %v888, 0
    %v915 = vsel %vm258, %v893, 0
    %v918 = vsel %vm258, %v898, 0
    %v921 = vsel %vm258, %v903, 0
    %923 = vmatprep.subr.mxu0 0.0
    %924 = vmatpush1.msra.mxu0 %v907
    %925 = vmatprep.subr.mxu0 0.0
    %926 = vmatpush1.msra.mxu0 %v908
    %927 = vmatprep.subr.mxu0 0.0
    %928 = vmatpush1.msra.mxu0 %v909
    %929 = vmatprep.subr.mxu0 0.0
    %930 = vmatpush1.msra.mxu0 %v910
    %931 = vmatprep.subr.mxu0 0.0
    %932 = vmatpush1.msra.mxu0 0.0
    %933 = vmatprep.subr.mxu0 0.0
    %934 = vmatpush1.msra.mxu0 0.0
    %935 = vmatprep.subr.mxu0 0.0
    %936 = vmatpush1.msra.mxu0 0.0
    %937 = vmatprep.subr.mxu0 0.0
    %938 = vmatpush1.msra.mxu0 0.0
    %939 = vmatprep.subr.mxu0 0.0
    %940 = vmatpush1.msra.mxu0 0.0
    %941 = vmatprep.subr.mxu0 0.0
    %942 = vmatpush1.msra.mxu0 0.0
    %943 = vmatprep.subr.mxu0 0.0
    %944 = vmatpush1.msra.mxu0 0.0
    %945 = vmatprep.subr.mxu0 0.0
    %946 = vmatpush1.msra.mxu0 0.0
    %947 = vmatprep.subr.mxu0 0.0
    %948 = vmatpush1.msra.mxu0 0.0
    %949 = vmatprep.subr.mxu0 0.0
    %950 = vmatpush1.msra.mxu0 0.0
    %951 = vmatprep.subr.mxu0 0.0
    %952 = vmatpush1.msra.mxu0 0.0
    %953 = vmatprep.subr.mxu0 0.0
    %954 = vmatpush1.msra.mxu0 0.0
    %955 = vmatprep.subr.mxu0 0.0
    %956 = vmatpush1.msra.mxu0 0.0
    %957 = vmatprep.subr.mxu0 0.0
    %958 = vmatpush1.msra.mxu0 0.0
    %959 = vmatprep.subr.mxu0 0.0
    %960 = vmatpush1.msra.mxu0 0.0
    %961 = vmatprep.subr.mxu0 0.0
    %962 = vmatpush1.msra.mxu0 0.0
    %963 = vmatprep.subr.mxu0 0.0
    %964 = vmatpush1.msra.mxu0 0.0
    %965 = vmatprep.subr.mxu0 0.0
    %966 = vmatpush1.msra.mxu0 0.0
    %967 = vmatprep.subr.mxu0 0.0
    %968 = vmatpush1.msra.mxu0 0.0
    %969 = vmatprep.subr.mxu0 0.0
    %970 = vmatpush1.msra.mxu0 0.0
    %971 = vmatprep.subr.mxu0 0.0
    %972 = vmatpush1.msra.mxu0 0.0
    %973 = vmatprep.subr.mxu0 0.0
    %974 = vmatpush1.msra.mxu0 0.0
    %975 = vmatprep.subr.mxu0 0.0
    %976 = vmatpush1.msra.mxu0 0.0
    %977 = vmatprep.subr.mxu0 0.0
    %978 = vmatpush1.msra.mxu0 0.0
    %979 = vmatprep.subr.mxu0 0.0
    %980 = vmatpush1.msra.mxu0 0.0
    %981 = vmatprep.subr.mxu0 0.0
    %982 = vmatpush1.msra.mxu0 0.0
    %983 = vmatprep.subr.mxu0 0.0
    %984 = vmatpush1.msra.mxu0 0.0
    %985 = vmatprep.subr.mxu0 0.0
    %986 = vmatpush1.msra.mxu0 0.0
    %987 = vmatprep.mubr.f32.mxu0 0.0
    %988 = vmatmul.mubr.f32.gmra.mrb[0].mxu0 %v912
    %v989 = vpop.f32.mrb[0].mxu0
    %v990 = vadd.f32 0.0, %v989
    %v991 = vpop.f32.mrb[0].mxu0
    %992 = vmatprep.mubr.f32.mxu0 0.0
    %993 = vmatmul.mubr.f32.gmra.mrb[0].mxu0 %v915
    %v994 = vpop.f32.mrb[0].mxu0
    %v995 = vadd.f32 0.0, %v994
    %v996 = vpop.f32.mrb[0].mxu0
    %997 = vmatprep.mubr.f32.mxu0 0.0
    %998 = vmatmul.mubr.f32.gmra.mrb[0].mxu0 %v918
    %v999 = vpop.f32.mrb[0].mxu0
    %v1000 = vadd.f32 0.0, %v999
    %v1001 = vpop.f32.mrb[0].mxu0
    %1002 = vmatprep.mubr.f32.mxu0 0.0
    %1003 = vmatmul.mubr.f32.gmra.mrb[0].mxu0 %v921
    %v1004 = vpop.f32.mrb[0].mxu0
    %v1005 = vadd.f32 0.0, %v1004
    %v1006 = vpop.f32.mrb[0].mxu0
    %1007 = vdwg.mxu0
    %v1008 = vadd.f32 %v798, %v990
    %v1009 = vadd.f32 %v803, %v995
    %v1010 = vadd.f32 %v808, %v1000
    %v1011 = vadd.f32 %v813, %v1005
    %s1012 = scalar_lea.vmem %s2, 96
    %v1013 = vld [vmem:[%s1012] sm:$0xff]
    %v1014 = vld [vmem:[%s1012 + $0x8] sm:$0xff]
    %v1015 = vld [vmem:[%s1012 + $0x10] sm:$0xff]
    %v1016 = vld [vmem:[%s1012 + $0x18] sm:$0xff]
    %1017 = vmatprep.subr.mxu0 0.0
    %1018 = vmatpush1.msra.mxu0 %v418
    %1019 = vmatprep.subr.mxu0 0.0
    %1020 = vmatpush1.msra.mxu0 %v419
    %1021 = vmatprep.subr.mxu0 0.0
    %1022 = vmatpush1.msra.mxu0 %v420
    %1023 = vmatprep.subr.mxu0 0.0
    %1024 = vmatpush1.msra.mxu0 %v421
    %1025 = vmatprep.subr.mxu0 0.0
    %1026 = vmatpush1.msra.mxu0 %v422
    %1027 = vmatprep.subr.mxu0 0.0
    %1028 = vmatpush1.msra.mxu0 %v423
    %1029 = vmatprep.subr.mxu0 0.0
    %1030 = vmatpush1.msra.mxu0 %v424
    %1031 = vmatprep.subr.mxu0 0.0
    %1032 = vmatpush1.msra.mxu0 %v425
    %1033 = vmatprep.subr.mxu0 0.0
    %1034 = vmatpush1.msra.mxu0 %v426
    %1035 = vmatprep.subr.mxu0 0.0
    %1036 = vmatpush1.msra.mxu0 %v427
    %1037 = vmatprep.subr.mxu0 0.0
    %1038 = vmatpush1.msra.mxu0 %v428
    %1039 = vmatprep.subr.mxu0 0.0
    %1040 = vmatpush1.msra.mxu0 %v429
    %1041 = vmatprep.subr.mxu0 0.0
    %1042 = vmatpush1.msra.mxu0 %v430
    %1043 = vmatprep.subr.mxu0 0.0
    %1044 = vmatpush1.msra.mxu0 %v431
    %1045 = vmatprep.subr.mxu0 0.0
    %1046 = vmatpush1.msra.mxu0 %v432
    %1047 = vmatprep.subr.mxu0 0.0
    %1048 = vmatpush1.msra.mxu0 %v433
    %1049 = vmatprep.subr.mxu0 0.0
    %1050 = vmatpush1.msra.mxu0 0.0
    %1051 = vmatprep.subr.mxu0 0.0
    %1052 = vmatpush1.msra.mxu0 0.0
    %1053 = vmatprep.subr.mxu0 0.0
    %1054 = vmatpush1.msra.mxu0 0.0
    %1055 = vmatprep.subr.mxu0 0.0
    %1056 = vmatpush1.msra.mxu0 0.0
    %1057 = vmatprep.subr.mxu0 0.0
    %1058 = vmatpush1.msra.mxu0 0.0
    %1059 = vmatprep.subr.mxu0 0.0
    %1060 = vmatpush1.msra.mxu0 0.0
    %1061 = vmatprep.subr.mxu0 0.0
    %1062 = vmatpush1.msra.mxu0 0.0
    %1063 = vmatprep.subr.mxu0 0.0
    %1064 = vmatpush1.msra.mxu0 0.0
    %1065 = vmatprep.subr.mxu0 0.0
    %1066 = vmatpush1.msra.mxu0 0.0
    %1067 = vmatprep.subr.mxu0 0.0
    %1068 = vmatpush1.msra.mxu0 0.0
    %1069 = vmatprep.subr.mxu0 0.0
    %1070 = vmatpush1.msra.mxu0 0.0
    %1071 = vmatprep.subr.mxu0 0.0
    %1072 = vmatpush1.msra.mxu0 0.0
    %1073 = vmatprep.subr.mxu0 0.0
    %1074 = vmatpush1.msra.mxu0 0.0
    %1075 = vmatprep.subr.mxu0 0.0
    %1076 = vmatpush1.msra.mxu0 0.0
    %1077 = vmatprep.subr.mxu0 0.0
    %1078 = vmatpush1.msra.mxu0 0.0
    %1079 = vmatprep.subr.mxu0 0.0
    %1080 = vmatpush1.msra.mxu0 0.0
    %1081 = vmatprep.mubr.f32.mxu0 0.0
    %1082 = vmatmul.mubr.f32.gmra.mrb[0].mxu0 %v1013
    %v1083 = vpop.f32.mrb[0].mxu0
    %v1084 = vadd.f32 0.0, %v1083
    %v1085 = vpop.f32.mrb[0].mxu0
    %1086 = vmatprep.mubr.f32.mxu0 0.0
    %1087 = vmatmul.mubr.f32.gmra.mrb[0].mxu0 %v1014
    %v1088 = vpop.f32.mrb[0].mxu0
    %v1089 = vadd.f32 0.0, %v1088
    %v1090 = vpop.f32.mrb[0].mxu0
    %1091 = vmatprep.mubr.f32.mxu0 0.0
    %1092 = vmatmul.mubr.f32.gmra.mrb[0].mxu0 %v1015
    %v1093 = vpop.f32.mrb[0].mxu0
    %v1094 = vadd.f32 0.0, %v1093
    %v1095 = vpop.f32.mrb[0].mxu0
    %1096 = vmatprep.mubr.f32.mxu0 0.0
    %1097 = vmatmul.mubr.f32.gmra.mrb[0].mxu0 %v1016
    %v1098 = vpop.f32.mrb[0].mxu0
    %v1099 = vadd.f32 0.0, %v1098
    %v1100 = vpop.f32.mrb[0].mxu0
    %1101 = vdwg.mxu0
    %s1102 = scalar_lea.vmem %s3, 96
    %v1103 = vld [vmem:[%s1102] sm:$0xff]
    %v1104 = vld [vmem:[%s1102 + $0x8] sm:$0xff]
    %v1105 = vld [vmem:[%s1102 + $0x10] sm:$0xff]
    %v1106 = vld [vmem:[%s1102 + $0x18] sm:$0xff]
    %v1108 = vsel %vm258, %v1084, 0
    %v1111 = vsel %vm258, %v1089, 0
    %v1114 = vsel %vm258, %v1094, 0
    %v1117 = vsel %vm258, %v1099, 0
    %1119 = vmatprep.subr.mxu0 0.0
    %1120 = vmatpush1.msra.mxu0 %v1103
    %1121 = vmatprep.subr.mxu0 0.0
    %1122 = vmatpush1.msra.mxu0 %v1104
    %1123 = vmatprep.subr.mxu0 0.0
    %1124 = vmatpush1.msra.mxu0 %v1105
    %1125 = vmatprep.subr.mxu0 0.0
    %1126 = vmatpush1.msra.mxu0 %v1106
    %1127 = vmatprep.subr.mxu0 0.0
    %1128 = vmatpush1.msra.mxu0 0.0
    %1129 = vmatprep.subr.mxu0 0.0
    %1130 = vmatpush1.msra.mxu0 0.0
    %1131 = vmatprep.subr.mxu0 0.0
    %1132 = vmatpush1.msra.mxu0 0.0
    %1133 = vmatprep.subr.mxu0 0.0
    %1134 = vmatpush1.msra.mxu0 0.0
    %1135 = vmatprep.subr.mxu0 0.0
    %1136 = vmatpush1.msra.mxu0 0.0
    %1137 = vmatprep.subr.mxu0 0.0
    %1138 = vmatpush1.msra.mxu0 0.0
    %1139 = vmatprep.subr.mxu0 0.0
    %1140 = vmatpush1.msra.mxu0 0.0
    %1141 = vmatprep.subr.mxu0 0.0
    %1142 = vmatpush1.msra.mxu0 0.0
    %1143 = vmatprep.subr.mxu0 0.0
    %1144 = vmatpush1.msra.mxu0 0.0
    %1145 = vmatprep.subr.mxu0 0.0
    %1146 = vmatpush1.msra.mxu0 0.0
    %1147 = vmatprep.subr.mxu0 0.0
    %1148 = vmatpush1.msra.mxu0 0.0
    %1149 = vmatprep.subr.mxu0 0.0
    %1150 = vmatpush1.msra.mxu0 0.0
    %1151 = vmatprep.subr.mxu0 0.0
    %1152 = vmatpush1.msra.mxu0 0.0
    %1153 = vmatprep.subr.mxu0 0.0
    %1154 = vmatpush1.msra.mxu0 0.0
    %1155 = vmatprep.subr.mxu0 0.0
    %1156 = vmatpush1.msra.mxu0 0.0
    %1157 = vmatprep.subr.mxu0 0.0
    %1158 = vmatpush1.msra.mxu0 0.0
    %1159 = vmatprep.subr.mxu0 0.0
    %1160 = vmatpush1.msra.mxu0 0.0
    %1161 = vmatprep.subr.mxu0 0.0
    %1162 = vmatpush1.msra.mxu0 0.0
    %1163 = vmatprep.subr.mxu0 0.0
    %1164 = vmatpush1.msra.mxu0 0.0
    %1165 = vmatprep.subr.mxu0 0.0
    %1166 = vmatpush1.msra.mxu0 0.0
    %1167 = vmatprep.subr.mxu0 0.0
    %1168 = vmatpush1.msra.mxu0 0.0
    %1169 = vmatprep.subr.mxu0 0.0
    %1170 = vmatpush1.msra.mxu0 0.0
    %1171 = vmatprep.subr.mxu0 0.0
    %1172 = vmatpush1.msra.mxu0 0.0
    %1173 = vmatprep.subr.mxu0 0.0
    %1174 = vmatpush1.msra.mxu0 0.0
    %1175 = vmatprep.subr.mxu0 0.0
    %1176 = vmatpush1.msra.mxu0 0.0
    %1177 = vmatprep.subr.mxu0 0.0
    %1178 = vmatpush1.msra.mxu0 0.0
    %1179 = vmatprep.subr.mxu0 0.0
    %1180 = vmatpush1.msra.mxu0 0.0
    %1181 = vmatprep.subr.mxu0 0.0
    %1182 = vmatpush1.msra.mxu0 0.0
    %1183 = vmatprep.mubr.f32.mxu0 0.0
    %1184 = vmatmul.mubr.f32.gmra.mrb[0].mxu0 %v1108
    %v1185 = vpop.f32.mrb[0].mxu0
    %v1186 = vadd.f32 0.0, %v1185
    %v1187 = vpop.f32.mrb[0].mxu0
    %1188 = vmatprep.mubr.f32.mxu0 0.0
    %1189 = vmatmul.mubr.f32.gmra.mrb[0].mxu0 %v1111
    %v1190 = vpop.f32.mrb[0].mxu0
    %v1191 = vadd.f32 0.0, %v1190
    %v1192 = vpop.f32.mrb[0].mxu0
    %1193 = vmatprep.mubr.f32.mxu0 0.0
    %1194 = vmatmul.mubr.f32.gmra.mrb[0].mxu0 %v1114
    %v1195 = vpop.f32.mrb[0].mxu0
    %v1196 = vadd.f32 0.0, %v1195
    %v1197 = vpop.f32.mrb[0].mxu0
    %1198 = vmatprep.mubr.f32.mxu0 0.0
    %1199 = vmatmul.mubr.f32.gmra.mrb[0].mxu0 %v1117
    %v1200 = vpop.f32.mrb[0].mxu0
    %v1201 = vadd.f32 0.0, %v1200
    %v1202 = vpop.f32.mrb[0].mxu0
    %1203 = vdwg.mxu0
    %v1204 = vadd.f32 %v1008, %v1186
    %v1205 = vadd.f32 %v1009, %v1191
    %v1206 = vadd.f32 %v1010, %v1196
    %v1207 = vadd.f32 %v1011, %v1201
    %s1208 = scalar_lea.vmem %s2, 128
    %v1209 = vld [vmem:[%s1208] sm:$0xff]
    %v1210 = vld [vmem:[%s1208 + $0x8] sm:$0xff]
    %v1211 = vld [vmem:[%s1208 + $0x10] sm:$0xff]
    %v1212 = vld [vmem:[%s1208 + $0x18] sm:$0xff]
    %1213 = vmatprep.subr.mxu0 0.0
    %1214 = vmatpush1.msra.mxu0 %v418
    %1215 = vmatprep.subr.mxu0 0.0
    %1216 = vmatpush1.msra.mxu0 %v419
    %1217 = vmatprep.subr.mxu0 0.0
    %1218 = vmatpush1.msra.mxu0 %v420
    %1219 = vmatprep.subr.mxu0 0.0
    %1220 = vmatpush1.msra.mxu0 %v421
    %1221 = vmatprep.subr.mxu0 0.0
    %1222 = vmatpush1.msra.mxu0 %v422
    %1223 = vmatprep.subr.mxu0 0.0
    %1224 = vmatpush1.msra.mxu0 %v423
    %1225 = vmatprep.subr.mxu0 0.0
    %1226 = vmatpush1.msra.mxu0 %v424
    %1227 = vmatprep.subr.mxu0 0.0
    %1228 = vmatpush1.msra.mxu0 %v425
    %1229 = vmatprep.subr.mxu0 0.0
    %1230 = vmatpush1.msra.mxu0 %v426
    %1231 = vmatprep.subr.mxu0 0.0
    %1232 = vmatpush1.msra.mxu0 %v427
    %1233 = vmatprep.subr.mxu0 0.0
    %1234 = vmatpush1.msra.mxu0 %v428
    %1235 = vmatprep.subr.mxu0 0.0
    %1236 = vmatpush1.msra.mxu0 %v429
    %1237 = vmatprep.subr.mxu0 0.0
    %1238 = vmatpush1.msra.mxu0 %v430
    %1239 = vmatprep.subr.mxu0 0.0
    %1240 = vmatpush1.msra.mxu0 %v431
    %1241 = vmatprep.subr.mxu0 0.0
    %1242 = vmatpush1.msra.mxu0 %v432
    %1243 = vmatprep.subr.mxu0 0.0
    %1244 = vmatpush1.msra.mxu0 %v433
    %1245 = vmatprep.subr.mxu0 0.0
    %1246 = vmatpush1.msra.mxu0 0.0
    %1247 = vmatprep.subr.mxu0 0.0
    %1248 = vmatpush1.msra.mxu0 0.0
    %1249 = vmatprep.subr.mxu0 0.0
    %1250 = vmatpush1.msra.mxu0 0.0
    %1251 = vmatprep.subr.mxu0 0.0
    %1252 = vmatpush1.msra.mxu0 0.0
    %1253 = vmatprep.subr.mxu0 0.0
    %1254 = vmatpush1.msra.mxu0 0.0
    %1255 = vmatprep.subr.mxu0 0.0
    %1256 = vmatpush1.msra.mxu0 0.0
    %1257 = vmatprep.subr.mxu0 0.0
    %1258 = vmatpush1.msra.mxu0 0.0
    %1259 = vmatprep.subr.mxu0 0.0
    %1260 = vmatpush1.msra.mxu0 0.0
    %1261 = vmatprep.subr.mxu0 0.0
    %1262 = vmatpush1.msra.mxu0 0.0
    %1263 = vmatprep.subr.mxu0 0.0
    %1264 = vmatpush1.msra.mxu0 0.0
    %1265 = vmatprep.subr.mxu0 0.0
    %1266 = vmatpush1.msra.mxu0 0.0
    %1267 = vmatprep.subr.mxu0 0.0
    %1268 = vmatpush1.msra.mxu0 0.0
    %1269 = vmatprep.subr.mxu0 0.0
    %1270 = vmatpush1.msra.mxu0 0.0
    %1271 = vmatprep.subr.mxu0 0.0
    %1272 = vmatpush1.msra.mxu0 0.0
    %1273 = vmatprep.subr.mxu0 0.0
    %1274 = vmatpush1.msra.mxu0 0.0
    %1275 = vmatprep.subr.mxu0 0.0
    %1276 = vmatpush1.msra.mxu0 0.0
    %1277 = vmatprep.mubr.f32.mxu0 0.0
    %1278 = vmatmul.mubr.f32.gmra.mrb[0].mxu0 %v1209
    %v1279 = vpop.f32.mrb[0].mxu0
    %v1280 = vadd.f32 0.0, %v1279
    %v1281 = vpop.f32.mrb[0].mxu0
    %1282 = vmatprep.mubr.f32.mxu0 0.0
    %1283 = vmatmul.mubr.f32.gmra.mrb[0].mxu0 %v1210
    %v1284 = vpop.f32.mrb[0].mxu0
    %v1285 = vadd.f32 0.0, %v1284
    %v1286 = vpop.f32.mrb[0].mxu0
    %1287 = vmatprep.mubr.f32.mxu0 0.0
    %1288 = vmatmul.mubr.f32.gmra.mrb[0].mxu0 %v1211
    %v1289 = vpop.f32.mrb[0].mxu0
    %v1290 = vadd.f32 0.0, %v1289
    %v1291 = vpop.f32.mrb[0].mxu0
    %1292 = vmatprep.mubr.f32.mxu0 0.0
    %1293 = vmatmul.mubr.f32.gmra.mrb[0].mxu0 %v1212
    %v1294 = vpop.f32.mrb[0].mxu0
    %v1295 = vadd.f32 0.0, %v1294
    %v1296 = vpop.f32.mrb[0].mxu0
    %1297 = vdwg.mxu0
    %s1298 = scalar_lea.vmem %s3, 128
    %v1299 = vld [vmem:[%s1298] sm:$0xff]
    %v1300 = vld [vmem:[%s1298 + $0x8] sm:$0xff]
    %v1301 = vld [vmem:[%s1298 + $0x10] sm:$0xff]
    %v1302 = vld [vmem:[%s1298 + $0x18] sm:$0xff]
    %v1304 = vsel %vm258, %v1280, 0
    %v1307 = vsel %vm258, %v1285, 0
    %v1310 = vsel %vm258, %v1290, 0
    %v1313 = vsel %vm258, %v1295, 0
    %1315 = vmatprep.subr.mxu0 0.0
    %1316 = vmatpush1.msra.mxu0 %v1299
    %1317 = vmatprep.subr.mxu0 0.0
    %1318 = vmatpush1.msra.mxu0 %v1300
    %1319 = vmatprep.subr.mxu0 0.0
    %1320 = vmatpush1.msra.mxu0 %v1301
    %1321 = vmatprep.subr.mxu0 0.0
    %1322 = vmatpush1.msra.mxu0 %v1302
    %1323 = vmatprep.subr.mxu0 0.0
    %1324 = vmatpush1.msra.mxu0 0.0
    %1325 = vmatprep.subr.mxu0 0.0
    %1326 = vmatpush1.msra.mxu0 0.0
    %1327 = vmatprep.subr.mxu0 0.0
    %1328 = vmatpush1.msra.mxu0 0.0
    %1329 = vmatprep.subr.mxu0 0.0
    %1330 = vmatpush1.msra.mxu0 0.0
    %1331 = vmatprep.subr.mxu0 0.0
    %1332 = vmatpush1.msra.mxu0 0.0
    %1333 = vmatprep.subr.mxu0 0.0
    %1334 = vmatpush1.msra.mxu0 0.0
    %1335 = vmatprep.subr.mxu0 0.0
    %1336 = vmatpush1.msra.mxu0 0.0
    %1337 = vmatprep.subr.mxu0 0.0
    %1338 = vmatpush1.msra.mxu0 0.0
    %1339 = vmatprep.subr.mxu0 0.0
    %1340 = vmatpush1.msra.mxu0 0.0
    %1341 = vmatprep.subr.mxu0 0.0
    %1342 = vmatpush1.msra.mxu0 0.0
    %1343 = vmatprep.subr.mxu0 0.0
    %1344 = vmatpush1.msra.mxu0 0.0
    %1345 = vmatprep.subr.mxu0 0.0
    %1346 = vmatpush1.msra.mxu0 0.0
    %1347 = vmatprep.subr.mxu0 0.0
    %1348 = vmatpush1.msra.mxu0 0.0
    %1349 = vmatprep.subr.mxu0 0.0
    %1350 = vmatpush1.msra.mxu0 0.0
    %1351 = vmatprep.subr.mxu0 0.0
    %1352 = vmatpush1.msra.mxu0 0.0
    %1353 = vmatprep.subr.mxu0 0.0
    %1354 = vmatpush1.msra.mxu0 0.0
    %1355 = vmatprep.subr.mxu0 0.0
    %1356 = vmatpush1.msra.mxu0 0.0
    %1357 = vmatprep.subr.mxu0 0.0
    %1358 = vmatpush1.msra.mxu0 0.0
    %1359 = vmatprep.subr.mxu0 0.0
    %1360 = vmatpush1.msra.mxu0 0.0
    %1361 = vmatprep.subr.mxu0 0.0
    %1362 = vmatpush1.msra.mxu0 0.0
    %1363 = vmatprep.subr.mxu0 0.0
    %1364 = vmatpush1.msra.mxu0 0.0
    %1365 = vmatprep.subr.mxu0 0.0
    %1366 = vmatpush1.msra.mxu0 0.0
    %1367 = vmatprep.subr.mxu0 0.0
    %1368 = vmatpush1.msra.mxu0 0.0
    %1369 = vmatprep.subr.mxu0 0.0
    %1370 = vmatpush1.msra.mxu0 0.0
    %1371 = vmatprep.subr.mxu0 0.0
    %1372 = vmatpush1.msra.mxu0 0.0
    %1373 = vmatprep.subr.mxu0 0.0
    %1374 = vmatpush1.msra.mxu0 0.0
    %1375 = vmatprep.subr.mxu0 0.0
    %1376 = vmatpush1.msra.mxu0 0.0
    %1377 = vmatprep.subr.mxu0 0.0
    %1378 = vmatpush1.msra.mxu0 0.0
    %1379 = vmatprep.mubr.f32.mxu0 0.0
    %1380 = vmatmul.mubr.f32.gmra.mrb[0].mxu0 %v1304
    %v1381 = vpop.f32.mrb[0].mxu0
    %v1382 = vadd.f32 0.0, %v1381
    %v1383 = vpop.f32.mrb[0].mxu0
    %1384 = vmatprep.mubr.f32.mxu0 0.0
    %1385 = vmatmul.mubr.f32.gmra.mrb[0].mxu0 %v1307
    %v1386 = vpop.f32.mrb[0].mxu0
    %v1387 = vadd.f32 0.0, %v1386
    %v1388 = vpop.f32.mrb[0].mxu0
    %1389 = vmatprep.mubr.f32.mxu0 0.0
    %1390 = vmatmul.mubr.f32.gmra.mrb[0].mxu0 %v1310
    %v1391 = vpop.f32.mrb[0].mxu0
    %v1392 = vadd.f32 0.0, %v1391
    %v1393 = vpop.f32.mrb[0].mxu0
    %1394 = vmatprep.mubr.f32.mxu0 0.0
    %1395 = vmatmul.mubr.f32.gmra.mrb[0].mxu0 %v1313
    %v1396 = vpop.f32.mrb[0].mxu0
    %v1397 = vadd.f32 0.0, %v1396
    %v1398 = vpop.f32.mrb[0].mxu0
    %1399 = vdwg.mxu0
    %v1400 = vadd.f32 %v1204, %v1382
    %v1401 = vadd.f32 %v1205, %v1387
    %v1402 = vadd.f32 %v1206, %v1392
    %v1403 = vadd.f32 %v1207, %v1397
    %s1404 = scalar_lea.vmem %s2, 160
    %v1405 = vld [vmem:[%s1404] sm:$0xff]
    %v1406 = vld [vmem:[%s1404 + $0x8] sm:$0xff]
    %v1407 = vld [vmem:[%s1404 + $0x10] sm:$0xff]
    %v1408 = vld [vmem:[%s1404 + $0x18] sm:$0xff]
    %1409 = vmatprep.subr.mxu0 0.0
    %1410 = vmatpush1.msra.mxu0 %v418
    %1411 = vmatprep.subr.mxu0 0.0
    %1412 = vmatpush1.msra.mxu0 %v419
    %1413 = vmatprep.subr.mxu0 0.0
    %1414 = vmatpush1.msra.mxu0 %v420
    %1415 = vmatprep.subr.mxu0 0.0
    %1416 = vmatpush1.msra.mxu0 %v421
    %1417 = vmatprep.subr.mxu0 0.0
    %1418 = vmatpush1.msra.mxu0 %v422
    %1419 = vmatprep.subr.mxu0 0.0
    %1420 = vmatpush1.msra.mxu0 %v423
    %1421 = vmatprep.subr.mxu0 0.0
    %1422 = vmatpush1.msra.mxu0 %v424
    %1423 = vmatprep.subr.mxu0 0.0
    %1424 = vmatpush1.msra.mxu0 %v425
    %1425 = vmatprep.subr.mxu0 0.0
    %1426 = vmatpush1.msra.mxu0 %v426
    %1427 = vmatprep.subr.mxu0 0.0
    %1428 = vmatpush1.msra.mxu0 %v427
    %1429 = vmatprep.subr.mxu0 0.0
    %1430 = vmatpush1.msra.mxu0 %v428
    %1431 = vmatprep.subr.mxu0 0.0
    %1432 = vmatpush1.msra.mxu0 %v429
    %1433 = vmatprep.subr.mxu0 0.0
    %1434 = vmatpush1.msra.mxu0 %v430
    %1435 = vmatprep.subr.mxu0 0.0
    %1436 = vmatpush1.msra.mxu0 %v431
    %1437 = vmatprep.subr.mxu0 0.0
    %1438 = vmatpush1.msra.mxu0 %v432
    %1439 = vmatprep.subr.mxu0 0.0
    %1440 = vmatpush1.msra.mxu0 %v433
    %1441 = vmatprep.subr.mxu0 0.0
    %1442 = vmatpush1.msra.mxu0 0.0
    %1443 = vmatprep.subr.mxu0 0.0
    %1444 = vmatpush1.msra.mxu0 0.0
    %1445 = vmatprep.subr.mxu0 0.0
    %1446 = vmatpush1.msra.mxu0 0.0
    %1447 = vmatprep.subr.mxu0 0.0
    %1448 = vmatpush1.msra.mxu0 0.0
    %1449 = vmatprep.subr.mxu0 0.0
    %1450 = vmatpush1.msra.mxu0 0.0
    %1451 = vmatprep.subr.mxu0 0.0
    %1452 = vmatpush1.msra.mxu0 0.0
    %1453 = vmatprep.subr.mxu0 0.0
    %1454 = vmatpush1.msra.mxu0 0.0
    %1455 = vmatprep.subr.mxu0 0.0
    %1456 = vmatpush1.msra.mxu0 0.0
    %1457 = vmatprep.subr.mxu0 0.0
    %1458 = vmatpush1.msra.mxu0 0.0
    %1459 = vmatprep.subr.mxu0 0.0
    %1460 = vmatpush1.msra.mxu0 0.0
    %1461 = vmatprep.subr.mxu0 0.0
    %1462 = vmatpush1.msra.mxu0 0.0
    %1463 = vmatprep.subr.mxu0 0.0
    %1464 = vmatpush1.msra.mxu0 0.0
    %1465 = vmatprep.subr.mxu0 0.0
    %1466 = vmatpush1.msra.mxu0 0.0
    %1467 = vmatprep.subr.mxu0 0.0
    %1468 = vmatpush1.msra.mxu0 0.0
    %1469 = vmatprep.subr.mxu0 0.0
    %1470 = vmatpush1.msra.mxu0 0.0
    %1471 = vmatprep.subr.mxu0 0.0
    %1472 = vmatpush1.msra.mxu0 0.0
    %1473 = vmatprep.mubr.f32.mxu0 0.0
    %1474 = vmatmul.mubr.f32.gmra.mrb[0].mxu0 %v1405
    %v1475 = vpop.f32.mrb[0].mxu0
    %v1476 = vadd.f32 0.0, %v1475
    %v1477 = vpop.f32.mrb[0].mxu0
    %1478 = vmatprep.mubr.f32.mxu0 0.0
    %1479 = vmatmul.mubr.f32.gmra.mrb[0].mxu0 %v1406
    %v1480 = vpop.f32.mrb[0].mxu0
    %v1481 = vadd.f32 0.0, %v1480
    %v1482 = vpop.f32.mrb[0].mxu0
    %1483 = vmatprep.mubr.f32.mxu0 0.0
    %1484 = vmatmul.mubr.f32.gmra.mrb[0].mxu0 %v1407
    %v1485 = vpop.f32.mrb[0].mxu0
    %v1486 = vadd.f32 0.0, %v1485
    %v1487 = vpop.f32.mrb[0].mxu0
    %1488 = vmatprep.mubr.f32.mxu0 0.0
    %1489 = vmatmul.mubr.f32.gmra.mrb[0].mxu0 %v1408
    %v1490 = vpop.f32.mrb[0].mxu0
    %v1491 = vadd.f32 0.0, %v1490
    %v1492 = vpop.f32.mrb[0].mxu0
    %1493 = vdwg.mxu0
    %s1494 = scalar_lea.vmem %s3, 160
    %v1495 = vld [vmem:[%s1494] sm:$0xff]
    %v1496 = vld [vmem:[%s1494 + $0x8] sm:$0xff]
    %v1497 = vld [vmem:[%s1494 + $0x10] sm:$0xff]
    %v1498 = vld [vmem:[%s1494 + $0x18] sm:$0xff]
    %v1500 = vsel %vm258, %v1476, 0
    %v1503 = vsel %vm258, %v1481, 0
    %v1506 = vsel %vm258, %v1486, 0
    %v1509 = vsel %vm258, %v1491, 0
    %1511 = vmatprep.subr.mxu0 0.0
    %1512 = vmatpush1.msra.mxu0 %v1495
    %1513 = vmatprep.subr.mxu0 0.0
    %1514 = vmatpush1.msra.mxu0 %v1496
    %1515 = vmatprep.subr.mxu0 0.0
    %1516 = vmatpush1.msra.mxu0 %v1497
    %1517 = vmatprep.subr.mxu0 0.0
    %1518 = vmatpush1.msra.mxu0 %v1498
    %1519 = vmatprep.subr.mxu0 0.0
    %1520 = vmatpush1.msra.mxu0 0.0
    %1521 = vmatprep.subr.mxu0 0.0
    %1522 = vmatpush1.msra.mxu0 0.0
    %1523 = vmatprep.subr.mxu0 0.0
    %1524 = vmatpush1.msra.mxu0 0.0
    %1525 = vmatprep.subr.mxu0 0.0
    %1526 = vmatpush1.msra.mxu0 0.0
    %1527 = vmatprep.subr.mxu0 0.0
    %1528 = vmatpush1.msra.mxu0 0.0
    %1529 = vmatprep.subr.mxu0 0.0
    %1530 = vmatpush1.msra.mxu0 0.0
    %1531 = vmatprep.subr.mxu0 0.0
    %1532 = vmatpush1.msra.mxu0 0.0
    %1533 = vmatprep.subr.mxu0 0.0
    %1534 = vmatpush1.msra.mxu0 0.0
    %1535 = vmatprep.subr.mxu0 0.0
    %1536 = vmatpush1.msra.mxu0 0.0
    %1537 = vmatprep.subr.mxu0 0.0
    %1538 = vmatpush1.msra.mxu0 0.0
    %1539 = vmatprep.subr.mxu0 0.0
    %1540 = vmatpush1.msra.mxu0 0.0
    %1541 = vmatprep.subr.mxu0 0.0
    %1542 = vmatpush1.msra.mxu0 0.0
    %1543 = vmatprep.subr.mxu0 0.0
    %1544 = vmatpush1.msra.mxu0 0.0
    %1545 = vmatprep.subr.mxu0 0.0
    %1546 = vmatpush1.msra.mxu0 0.0
    %1547 = vmatprep.subr.mxu0 0.0
    %1548 = vmatpush1.msra.mxu0 0.0
    %1549 = vmatprep.subr.mxu0 0.0
    %1550 = vmatpush1.msra.mxu0 0.0
    %1551 = vmatprep.subr.mxu0 0.0
    %1552 = vmatpush1.msra.mxu0 0.0
    %1553 = vmatprep.subr.mxu0 0.0
    %1554 = vmatpush1.msra.mxu0 0.0
    %1555 = vmatprep.subr.mxu0 0.0
    %1556 = vmatpush1.msra.mxu0 0.0
    %1557 = vmatprep.subr.mxu0 0.0
    %1558 = vmatpush1.msra.mxu0 0.0
    %1559 = vmatprep.subr.mxu0 0.0
    %1560 = vmatpush1.msra.mxu0 0.0
    %1561 = vmatprep.subr.mxu0 0.0
    %1562 = vmatpush1.msra.mxu0 0.0
    %1563 = vmatprep.subr.mxu0 0.0
    %1564 = vmatpush1.msra.mxu0 0.0
    %1565 = vmatprep.subr.mxu0 0.0
    %1566 = vmatpush1.msra.mxu0 0.0
    %1567 = vmatprep.subr.mxu0 0.0
    %1568 = vmatpush1.msra.mxu0 0.0
    %1569 = vmatprep.subr.mxu0 0.0
    %1570 = vmatpush1.msra.mxu0 0.0
    %1571 = vmatprep.subr.mxu0 0.0
    %1572 = vmatpush1.msra.mxu0 0.0
    %1573 = vmatprep.subr.mxu0 0.0
    %1574 = vmatpush1.msra.mxu0 0.0
    %1575 = vmatprep.mubr.f32.mxu0 0.0
    %1576 = vmatmul.mubr.f32.gmra.mrb[0].mxu0 %v1500
    %v1577 = vpop.f32.mrb[0].mxu0
    %v1578 = vadd.f32 0.0, %v1577
    %v1579 = vpop.f32.mrb[0].mxu0
    %1580 = vmatprep.mubr.f32.mxu0 0.0
    %1581 = vmatmul.mubr.f32.gmra.mrb[0].mxu0 %v1503
    %v1582 = vpop.f32.mrb[0].mxu0
    %v1583 = vadd.f32 0.0, %v1582
    %v1584 = vpop.f32.mrb[0].mxu0
    %1585 = vmatprep.mubr.f32.mxu0 0.0
    %1586 = vmatmul.mubr.f32.gmra.mrb[0].mxu0 %v1506
    %v1587 = vpop.f32.mrb[0].mxu0
    %v1588 = vadd.f32 0.0, %v1587
    %v1589 = vpop.f32.mrb[0].mxu0
    %1590 = vmatprep.mubr.f32.mxu0 0.0
    %1591 = vmatmul.mubr.f32.gmra.mrb[0].mxu0 %v1509
    %v1592 = vpop.f32.mrb[0].mxu0
    %v1593 = vadd.f32 0.0, %v1592
    %v1594 = vpop.f32.mrb[0].mxu0
    %1595 = vdwg.mxu0
    %v1596 = vadd.f32 %v1400, %v1578
    %v1597 = vadd.f32 %v1401, %v1583
    %v1598 = vadd.f32 %v1402, %v1588
    %v1599 = vadd.f32 %v1403, %v1593
    %s1600 = scalar_lea.vmem %s2, 192
    %v1601 = vld [vmem:[%s1600] sm:$0xff]
    %v1602 = vld [vmem:[%s1600 + $0x8] sm:$0xff]
    %v1603 = vld [vmem:[%s1600 + $0x10] sm:$0xff]
    %v1604 = vld [vmem:[%s1600 + $0x18] sm:$0xff]
    %1605 = vmatprep.subr.mxu0 0.0
    %1606 = vmatpush1.msra.mxu0 %v418
    %1607 = vmatprep.subr.mxu0 0.0
    %1608 = vmatpush1.msra.mxu0 %v419
    %1609 = vmatprep.subr.mxu0 0.0
    %1610 = vmatpush1.msra.mxu0 %v420
    %1611 = vmatprep.subr.mxu0 0.0
    %1612 = vmatpush1.msra.mxu0 %v421
    %1613 = vmatprep.subr.mxu0 0.0
    %1614 = vmatpush1.msra.mxu0 %v422
    %1615 = vmatprep.subr.mxu0 0.0
    %1616 = vmatpush1.msra.mxu0 %v423
    %1617 = vmatprep.subr.mxu0 0.0
    %1618 = vmatpush1.msra.mxu0 %v424
    %1619 = vmatprep.subr.mxu0 0.0
    %1620 = vmatpush1.msra.mxu0 %v425
    %1621 = vmatprep.subr.mxu0 0.0
    %1622 = vmatpush1.msra.mxu0 %v426
    %1623 = vmatprep.subr.mxu0 0.0
    %1624 = vmatpush1.msra.mxu0 %v427
    %1625 = vmatprep.subr.mxu0 0.0
    %1626 = vmatpush1.msra.mxu0 %v428
    %1627 = vmatprep.subr.mxu0 0.0
    %1628 = vmatpush1.msra.mxu0 %v429
    %1629 = vmatprep.subr.mxu0 0.0
    %1630 = vmatpush1.msra.mxu0 %v430
    %1631 = vmatprep.subr.mxu0 0.0
    %1632 = vmatpush1.msra.mxu0 %v431
    %1633 = vmatprep.subr.mxu0 0.0
    %1634 = vmatpush1.msra.mxu0 %v432
    %1635 = vmatprep.subr.mxu0 0.0
    %1636 = vmatpush1.msra.mxu0 %v433
    %1637 = vmatprep.subr.mxu0 0.0
    %1638 = vmatpush1.msra.mxu0 0.0
    %1639 = vmatprep.subr.mxu0 0.0
    %1640 = vmatpush1.msra.mxu0 0.0
    %1641 = vmatprep.subr.mxu0 0.0
    %1642 = vmatpush1.msra.mxu0 0.0
    %1643 = vmatprep.subr.mxu0 0.0
    %1644 = vmatpush1.msra.mxu0 0.0
    %1645 = vmatprep.subr.mxu0 0.0
    %1646 = vmatpush1.msra.mxu0 0.0
    %1647 = vmatprep.subr.mxu0 0.0
    %1648 = vmatpush1.msra.mxu0 0.0
    %1649 = vmatprep.subr.mxu0 0.0
    %1650 = vmatpush1.msra.mxu0 0.0
    %1651 = vmatprep.subr.mxu0 0.0
    %1652 = vmatpush1.msra.mxu0 0.0
    %1653 = vmatprep.subr.mxu0 0.0
    %1654 = vmatpush1.msra.mxu0 0.0
    %1655 = vmatprep.subr.mxu0 0.0
    %1656 = vmatpush1.msra.mxu0 0.0
    %1657 = vmatprep.subr.mxu0 0.0
    %1658 = vmatpush1.msra.mxu0 0.0
    %1659 = vmatprep.subr.mxu0 0.0
    %1660 = vmatpush1.msra.mxu0 0.0
    %1661 = vmatprep.subr.mxu0 0.0
    %1662 = vmatpush1.msra.mxu0 0.0
    %1663 = vmatprep.subr.mxu0 0.0
    %1664 = vmatpush1.msra.mxu0 0.0
    %1665 = vmatprep.subr.mxu0 0.0
    %1666 = vmatpush1.msra.mxu0 0.0
    %1667 = vmatprep.subr.mxu0 0.0
    %1668 = vmatpush1.msra.mxu0 0.0
    %1669 = vmatprep.mubr.f32.mxu0 0.0
    %1670 = vmatmul.mubr.f32.gmra.mrb[0].mxu0 %v1601
    %v1671 = vpop.f32.mrb[0].mxu0
    %v1672 = vadd.f32 0.0, %v1671
    %v1673 = vpop.f32.mrb[0].mxu0
    %1674 = vmatprep.mubr.f32.mxu0 0.0
    %1675 = vmatmul.mubr.f32.gmra.mrb[0].mxu0 %v1602
    %v1676 = vpop.f32.mrb[0].mxu0
    %v1677 = vadd.f32 0.0, %v1676
    %v1678 = vpop.f32.mrb[0].mxu0
    %1679 = vmatprep.mubr.f32.mxu0 0.0
    %1680 = vmatmul.mubr.f32.gmra.mrb[0].mxu0 %v1603
    %v1681 = vpop.f32.mrb[0].mxu0
    %v1682 = vadd.f32 0.0, %v1681
    %v1683 = vpop.f32.mrb[0].mxu0
    %1684 = vmatprep.mubr.f32.mxu0 0.0
    %1685 = vmatmul.mubr.f32.gmra.mrb[0].mxu0 %v1604
    %v1686 = vpop.f32.mrb[0].mxu0
    %v1687 = vadd.f32 0.0, %v1686
    %v1688 = vpop.f32.mrb[0].mxu0
    %1689 = vdwg.mxu0
    %s1690 = scalar_lea.vmem %s3, 192
    %v1691 = vld [vmem:[%s1690] sm:$0xff]
    %v1692 = vld [vmem:[%s1690 + $0x8] sm:$0xff]
    %v1693 = vld [vmem:[%s1690 + $0x10] sm:$0xff]
    %v1694 = vld [vmem:[%s1690 + $0x18] sm:$0xff]
    %v1696 = vsel %vm258, %v1672, 0
    %v1699 = vsel %vm258, %v1677, 0
    %v1702 = vsel %vm258, %v1682, 0
    %v1705 = vsel %vm258, %v1687, 0
    %1707 = vmatprep.subr.mxu0 0.0
    %1708 = vmatpush1.msra.mxu0 %v1691
    %1709 = vmatprep.subr.mxu0 0.0
    %1710 = vmatpush1.msra.mxu0 %v1692
    %1711 = vmatprep.subr.mxu0 0.0
    %1712 = vmatpush1.msra.mxu0 %v1693
    %1713 = vmatprep.subr.mxu0 0.0
    %1714 = vmatpush1.msra.mxu0 %v1694
    %1715 = vmatprep.subr.mxu0 0.0
    %1716 = vmatpush1.msra.mxu0 0.0
    %1717 = vmatprep.subr.mxu0 0.0
    %1718 = vmatpush1.msra.mxu0 0.0
    %1719 = vmatprep.subr.mxu0 0.0
    %1720 = vmatpush1.msra.mxu0 0.0
    %1721 = vmatprep.subr.mxu0 0.0
    %1722 = vmatpush1.msra.mxu0 0.0
    %1723 = vmatprep.subr.mxu0 0.0
    %1724 = vmatpush1.msra.mxu0 0.0
    %1725 = vmatprep.subr.mxu0 0.0
    %1726 = vmatpush1.msra.mxu0 0.0
    %1727 = vmatprep.subr.mxu0 0.0
    %1728 = vmatpush1.msra.mxu0 0.0
    %1729 = vmatprep.subr.mxu0 0.0
    %1730 = vmatpush1.msra.mxu0 0.0
    %1731 = vmatprep.subr.mxu0 0.0
    %1732 = vmatpush1.msra.mxu0 0.0
    %1733 = vmatprep.subr.mxu0 0.0
    %1734 = vmatpush1.msra.mxu0 0.0
    %1735 = vmatprep.subr.mxu0 0.0
    %1736 = vmatpush1.msra.mxu0 0.0
    %1737 = vmatprep.subr.mxu0 0.0
    %1738 = vmatpush1.msra.mxu0 0.0
    %1739 = vmatprep.subr.mxu0 0.0
    %1740 = vmatpush1.msra.mxu0 0.0
    %1741 = vmatprep.subr.mxu0 0.0
    %1742 = vmatpush1.msra.mxu0 0.0
    %1743 = vmatprep.subr.mxu0 0.0
    %1744 = vmatpush1.msra.mxu0 0.0
    %1745 = vmatprep.subr.mxu0 0.0
    %1746 = vmatpush1.msra.mxu0 0.0
    %1747 = vmatprep.subr.mxu0 0.0
    %1748 = vmatpush1.msra.mxu0 0.0
    %1749 = vmatprep.subr.mxu0 0.0
    %1750 = vmatpush1.msra.mxu0 0.0
    %1751 = vmatprep.subr.mxu0 0.0
    %1752 = vmatpush1.msra.mxu0 0.0
    %1753 = vmatprep.subr.mxu0 0.0
    %1754 = vmatpush1.msra.mxu0 0.0
    %1755 = vmatprep.subr.mxu0 0.0
    %1756 = vmatpush1.msra.mxu0 0.0
    %1757 = vmatprep.subr.mxu0 0.0
    %1758 = vmatpush1.msra.mxu0 0.0
    %1759 = vmatprep.subr.mxu0 0.0
    %1760 = vmatpush1.msra.mxu0 0.0
    %1761 = vmatprep.subr.mxu0 0.0
    %1762 = vmatpush1.msra.mxu0 0.0
    %1763 = vmatprep.subr.mxu0 0.0
    %1764 = vmatpush1.msra.mxu0 0.0
    %1765 = vmatprep.subr.mxu0 0.0
    %1766 = vmatpush1.msra.mxu0 0.0
    %1767 = vmatprep.subr.mxu0 0.0
    %1768 = vmatpush1.msra.mxu0 0.0
    %1769 = vmatprep.subr.mxu0 0.0
    %1770 = vmatpush1.msra.mxu0 0.0
    %1771 = vmatprep.mubr.f32.mxu0 0.0
    %1772 = vmatmul.mubr.f32.gmra.mrb[0].mxu0 %v1696
    %v1773 = vpop.f32.mrb[0].mxu0
    %v1774 = vadd.f32 0.0, %v1773
    %v1775 = vpop.f32.mrb[0].mxu0
    %1776 = vmatprep.mubr.f32.mxu0 0.0
    %1777 = vmatmul.mubr.f32.gmra.mrb[0].mxu0 %v1699
    %v1778 = vpop.f32.mrb[0].mxu0
    %v1779 = vadd.f32 0.0, %v1778
    %v1780 = vpop.f32.mrb[0].mxu0
    %1781 = vmatprep.mubr.f32.mxu0 0.0
    %1782 = vmatmul.mubr.f32.gmra.mrb[0].mxu0 %v1702
    %v1783 = vpop.f32.mrb[0].mxu0
    %v1784 = vadd.f32 0.0, %v1783
    %v1785 = vpop.f32.mrb[0].mxu0
    %1786 = vmatprep.mubr.f32.mxu0 0.0
    %1787 = vmatmul.mubr.f32.gmra.mrb[0].mxu0 %v1705
    %v1788 = vpop.f32.mrb[0].mxu0
    %v1789 = vadd.f32 0.0, %v1788
    %v1790 = vpop.f32.mrb[0].mxu0
    %1791 = vdwg.mxu0
    %v1792 = vadd.f32 %v1596, %v1774
    %v1793 = vadd.f32 %v1597, %v1779
    %v1794 = vadd.f32 %v1598, %v1784
    %v1795 = vadd.f32 %v1599, %v1789
    %s1796 = scalar_lea.vmem %s2, 224
    %v1797 = vld [vmem:[%s1796] sm:$0xff]
    %v1798 = vld [vmem:[%s1796 + $0x8] sm:$0xff]
    %v1799 = vld [vmem:[%s1796 + $0x10] sm:$0xff]
    %v1800 = vld [vmem:[%s1796 + $0x18] sm:$0xff]
    %1801 = vmatprep.subr.mxu0 0.0
    %1802 = vmatpush1.msra.mxu0 %v418
    %1803 = vmatprep.subr.mxu0 0.0
    %1804 = vmatpush1.msra.mxu0 %v419
    %1805 = vmatprep.subr.mxu0 0.0
    %1806 = vmatpush1.msra.mxu0 %v420
    %1807 = vmatprep.subr.mxu0 0.0
    %1808 = vmatpush1.msra.mxu0 %v421
    %1809 = vmatprep.subr.mxu0 0.0
    %1810 = vmatpush1.msra.mxu0 %v422
    %1811 = vmatprep.subr.mxu0 0.0
    %1812 = vmatpush1.msra.mxu0 %v423
    %1813 = vmatprep.subr.mxu0 0.0
    %1814 = vmatpush1.msra.mxu0 %v424
    %1815 = vmatprep.subr.mxu0 0.0
    %1816 = vmatpush1.msra.mxu0 %v425
    %1817 = vmatprep.subr.mxu0 0.0
    %1818 = vmatpush1.msra.mxu0 %v426
    %1819 = vmatprep.subr.mxu0 0.0
    %1820 = vmatpush1.msra.mxu0 %v427
    %1821 = vmatprep.subr.mxu0 0.0
    %1822 = vmatpush1.msra.mxu0 %v428
    %1823 = vmatprep.subr.mxu0 0.0
    %1824 = vmatpush1.msra.mxu0 %v429
    %1825 = vmatprep.subr.mxu0 0.0
    %1826 = vmatpush1.msra.mxu0 %v430
    %1827 = vmatprep.subr.mxu0 0.0
    %1828 = vmatpush1.msra.mxu0 %v431
    %1829 = vmatprep.subr.mxu0 0.0
    %1830 = vmatpush1.msra.mxu0 %v432
    %1831 = vmatprep.subr.mxu0 0.0
    %1832 = vmatpush1.msra.mxu0 %v433
    %1833 = vmatprep.subr.mxu0 0.0
    %1834 = vmatpush1.msra.mxu0 0.0
    %1835 = vmatprep.subr.mxu0 0.0
    %1836 = vmatpush1.msra.mxu0 0.0
    %1837 = vmatprep.subr.mxu0 0.0
    %1838 = vmatpush1.msra.mxu0 0.0
    %1839 = vmatprep.subr.mxu0 0.0
    %1840 = vmatpush1.msra.mxu0 0.0
    %1841 = vmatprep.subr.mxu0 0.0
    %1842 = vmatpush1.msra.mxu0 0.0
    %1843 = vmatprep.subr.mxu0 0.0
    %1844 = vmatpush1.msra.mxu0 0.0
    %1845 = vmatprep.subr.mxu0 0.0
    %1846 = vmatpush1.msra.mxu0 0.0
    %1847 = vmatprep.subr.mxu0 0.0
    %1848 = vmatpush1.msra.mxu0 0.0
    %1849 = vmatprep.subr.mxu0 0.0
    %1850 = vmatpush1.msra.mxu0 0.0
    %1851 = vmatprep.subr.mxu0 0.0
    %1852 = vmatpush1.msra.mxu0 0.0
    %1853 = vmatprep.subr.mxu0 0.0
    %1854 = vmatpush1.msra.mxu0 0.0
    %1855 = vmatprep.subr.mxu0 0.0
    %1856 = vmatpush1.msra.mxu0 0.0
    %1857 = vmatprep.subr.mxu0 0.0
    %1858 = vmatpush1.msra.mxu0 0.0
    %1859 = vmatprep.subr.mxu0 0.0
    %1860 = vmatpush1.msra.mxu0 0.0
    %1861 = vmatprep.subr.mxu0 0.0
    %1862 = vmatpush1.msra.mxu0 0.0
    %1863 = vmatprep.subr.mxu0 0.0
    %1864 = vmatpush1.msra.mxu0 0.0
    %1865 = vmatprep.mubr.f32.mxu0 0.0
    %1866 = vmatmul.mubr.f32.gmra.mrb[0].mxu0 %v1797
    %v1867 = vpop.f32.mrb[0].mxu0
    %v1868 = vadd.f32 0.0, %v1867
    %v1869 = vpop.f32.mrb[0].mxu0
    %1870 = vmatprep.mubr.f32.mxu0 0.0
    %1871 = vmatmul.mubr.f32.gmra.mrb[0].mxu0 %v1798
    %v1872 = vpop.f32.mrb[0].mxu0
    %v1873 = vadd.f32 0.0, %v1872
    %v1874 = vpop.f32.mrb[0].mxu0
    %1875 = vmatprep.mubr.f32.mxu0 0.0
    %1876 = vmatmul.mubr.f32.gmra.mrb[0].mxu0 %v1799
    %v1877 = vpop.f32.mrb[0].mxu0
    %v1878 = vadd.f32 0.0, %v1877
    %v1879 = vpop.f32.mrb[0].mxu0
    %1880 = vmatprep.mubr.f32.mxu0 0.0
    %1881 = vmatmul.mubr.f32.gmra.mrb[0].mxu0 %v1800
    %v1882 = vpop.f32.mrb[0].mxu0
    %v1883 = vadd.f32 0.0, %v1882
    %v1884 = vpop.f32.mrb[0].mxu0
    %1885 = vdwg.mxu0
    %s1886 = scalar_lea.vmem %s3, 224
    %v1887 = vld [vmem:[%s1886] sm:$0xff]
    %v1888 = vld [vmem:[%s1886 + $0x8] sm:$0xff]
    %v1889 = vld [vmem:[%s1886 + $0x10] sm:$0xff]
    %v1890 = vld [vmem:[%s1886 + $0x18] sm:$0xff]
    %v1892 = vsel %vm258, %v1868, 0
    %v1895 = vsel %vm258, %v1873, 0
    %v1898 = vsel %vm258, %v1878, 0
    %v1901 = vsel %vm258, %v1883, 0
    %1903 = vmatprep.subr.mxu0 0.0
    %1904 = vmatpush1.msra.mxu0 %v1887
    %1905 = vmatprep.subr.mxu0 0.0
    %1906 = vmatpush1.msra.mxu0 %v1888
    %1907 = vmatprep.subr.mxu0 0.0
    %1908 = vmatpush1.msra.mxu0 %v1889
    %1909 = vmatprep.subr.mxu0 0.0
    %1910 = vmatpush1.msra.mxu0 %v1890
    %1911 = vmatprep.subr.mxu0 0.0
    %1912 = vmatpush1.msra.mxu0 0.0
    %1913 = vmatprep.subr.mxu0 0.0
    %1914 = vmatpush1.msra.mxu0 0.0
    %1915 = vmatprep.subr.mxu0 0.0
    %1916 = vmatpush1.msra.mxu0 0.0
    %1917 = vmatprep.subr.mxu0 0.0
    %1918 = vmatpush1.msra.mxu0 0.0
    %1919 = vmatprep.subr.mxu0 0.0
    %1920 = vmatpush1.msra.mxu0 0.0
    %1921 = vmatprep.subr.mxu0 0.0
    %1922 = vmatpush1.msra.mxu0 0.0
    %1923 = vmatprep.subr.mxu0 0.0
    %1924 = vmatpush1.msra.mxu0 0.0
    %1925 = vmatprep.subr.mxu0 0.0
    %1926 = vmatpush1.msra.mxu0 0.0
    %1927 = vmatprep.subr.mxu0 0.0
    %1928 = vmatpush1.msra.mxu0 0.0
    %1929 = vmatprep.subr.mxu0 0.0
    %1930 = vmatpush1.msra.mxu0 0.0
    %1931 = vmatprep.subr.mxu0 0.0
    %1932 = vmatpush1.msra.mxu0 0.0
    %1933 = vmatprep.subr.mxu0 0.0
    %1934 = vmatpush1.msra.mxu0 0.0
    %1935 = vmatprep.subr.mxu0 0.0
    %1936 = vmatpush1.msra.mxu0 0.0
    %1937 = vmatprep.subr.mxu0 0.0
    %1938 = vmatpush1.msra.mxu0 0.0
    %1939 = vmatprep.subr.mxu0 0.0
    %1940 = vmatpush1.msra.mxu0 0.0
    %1941 = vmatprep.subr.mxu0 0.0
    %1942 = vmatpush1.msra.mxu0 0.0
    %1943 = vmatprep.subr.mxu0 0.0
    %1944 = vmatpush1.msra.mxu0 0.0
    %1945 = vmatprep.subr.mxu0 0.0
    %1946 = vmatpush1.msra.mxu0 0.0
    %1947 = vmatprep.subr.mxu0 0.0
    %1948 = vmatpush1.msra.mxu0 0.0
    %1949 = vmatprep.subr.mxu0 0.0
    %1950 = vmatpush1.msra.mxu0 0.0
    %1951 = vmatprep.subr.mxu0 0.0
    %1952 = vmatpush1.msra.mxu0 0.0
    %1953 = vmatprep.subr.mxu0 0.0
    %1954 = vmatpush1.msra.mxu0 0.0
    %1955 = vmatprep.subr.mxu0 0.0
    %1956 = vmatpush1.msra.mxu0 0.0
    %1957 = vmatprep.subr.mxu0 0.0
    %1958 = vmatpush1.msra.mxu0 0.0
    %1959 = vmatprep.subr.mxu0 0.0
    %1960 = vmatpush1.msra.mxu0 0.0
    %1961 = vmatprep.subr.mxu0 0.0
    %1962 = vmatpush1.msra.mxu0 0.0
    %1963 = vmatprep.subr.mxu0 0.0
    %1964 = vmatpush1.msra.mxu0 0.0
    %1965 = vmatprep.subr.mxu0 0.0
    %1966 = vmatpush1.msra.mxu0 0.0
    %1967 = vmatprep.mubr.f32.mxu0 0.0
    %1968 = vmatmul.mubr.f32.gmra.mrb[0].mxu0 %v1892
    %v1969 = vpop.f32.mrb[0].mxu0
    %v1970 = vadd.f32 0.0, %v1969
    %v1971 = vpop.f32.mrb[0].mxu0
    %1972 = vmatprep.mubr.f32.mxu0 0.0
    %1973 = vmatmul.mubr.f32.gmra.mrb[0].mxu0 %v1895
    %v1974 = vpop.f32.mrb[0].mxu0
    %v1975 = vadd.f32 0.0, %v1974
    %v1976 = vpop.f32.mrb[0].mxu0
    %1977 = vmatprep.mubr.f32.mxu0 0.0
    %1978 = vmatmul.mubr.f32.gmra.mrb[0].mxu0 %v1898
    %v1979 = vpop.f32.mrb[0].mxu0
    %v1980 = vadd.f32 0.0, %v1979
    %v1981 = vpop.f32.mrb[0].mxu0
    %1982 = vmatprep.mubr.f32.mxu0 0.0
    %1983 = vmatmul.mubr.f32.gmra.mrb[0].mxu0 %v1901
    %v1984 = vpop.f32.mrb[0].mxu0
    %v1985 = vadd.f32 0.0, %v1984
    %v1986 = vpop.f32.mrb[0].mxu0
    %1987 = vdwg.mxu0
    %v1988 = vadd.f32 %v1792, %v1970
    %v1989 = vadd.f32 %v1793, %v1975
    %v1990 = vadd.f32 %v1794, %v1980
    %v1991 = vadd.f32 %v1795, %v1985
    %s1992 = scalar_lea.vmem %s2, 256
    %v1993 = vld [vmem:[%s1992] sm:$0xff]
    %v1994 = vld [vmem:[%s1992 + $0x8] sm:$0xff]
    %v1995 = vld [vmem:[%s1992 + $0x10] sm:$0xff]
    %v1996 = vld [vmem:[%s1992 + $0x18] sm:$0xff]
    %1997 = vmatprep.subr.mxu0 0.0
    %1998 = vmatpush1.msra.mxu0 %v418
    %1999 = vmatprep.subr.mxu0 0.0
    %2000 = vmatpush1.msra.mxu0 %v419
    %2001 = vmatprep.subr.mxu0 0.0
    %2002 = vmatpush1.msra.mxu0 %v420
    %2003 = vmatprep.subr.mxu0 0.0
    %2004 = vmatpush1.msra.mxu0 %v421
    %2005 = vmatprep.subr.mxu0 0.0
    %2006 = vmatpush1.msra.mxu0 %v422
    %2007 = vmatprep.subr.mxu0 0.0
    %2008 = vmatpush1.msra.mxu0 %v423
    %2009 = vmatprep.subr.mxu0 0.0
    %2010 = vmatpush1.msra.mxu0 %v424
    %2011 = vmatprep.subr.mxu0 0.0
    %2012 = vmatpush1.msra.mxu0 %v425
    %2013 = vmatprep.subr.mxu0 0.0
    %2014 = vmatpush1.msra.mxu0 %v426
    %2015 = vmatprep.subr.mxu0 0.0
    %2016 = vmatpush1.msra.mxu0 %v427
    %2017 = vmatprep.subr.mxu0 0.0
    %2018 = vmatpush1.msra.mxu0 %v428
    %2019 = vmatprep.subr.mxu0 0.0
    %2020 = vmatpush1.msra.mxu0 %v429
    %2021 = vmatprep.subr.mxu0 0.0
    %2022 = vmatpush1.msra.mxu0 %v430
    %2023 = vmatprep.subr.mxu0 0.0
    %2024 = vmatpush1.msra.mxu0 %v431
    %2025 = vmatprep.subr.mxu0 0.0
    %2026 = vmatpush1.msra.mxu0 %v432
    %2027 = vmatprep.subr.mxu0 0.0
    %2028 = vmatpush1.msra.mxu0 %v433
    %2029 = vmatprep.subr.mxu0 0.0
    %2030 = vmatpush1.msra.mxu0 0.0
    %2031 = vmatprep.subr.mxu0 0.0
    %2032 = vmatpush1.msra.mxu0 0.0
    %2033 = vmatprep.subr.mxu0 0.0
    %2034 = vmatpush1.msra.mxu0 0.0
    %2035 = vmatprep.subr.mxu0 0.0
    %2036 = vmatpush1.msra.mxu0 0.0
    %2037 = vmatprep.subr.mxu0 0.0
    %2038 = vmatpush1.msra.mxu0 0.0
    %2039 = vmatprep.subr.mxu0 0.0
    %2040 = vmatpush1.msra.mxu0 0.0
    %2041 = vmatprep.subr.mxu0 0.0
    %2042 = vmatpush1.msra.mxu0 0.0
    %2043 = vmatprep.subr.mxu0 0.0
    %2044 = vmatpush1.msra.mxu0 0.0
    %2045 = vmatprep.subr.mxu0 0.0
    %2046 = vmatpush1.msra.mxu0 0.0
    %2047 = vmatprep.subr.mxu0 0.0
    %2048 = vmatpush1.msra.mxu0 0.0
    %2049 = vmatprep.subr.mxu0 0.0
    %2050 = vmatpush1.msra.mxu0 0.0
    %2051 = vmatprep.subr.mxu0 0.0
    %2052 = vmatpush1.msra.mxu0 0.0
    %2053 = vmatprep.subr.mxu0 0.0
    %2054 = vmatpush1.msra.mxu0 0.0
    %2055 = vmatprep.subr.mxu0 0.0
    %2056 = vmatpush1.msra.mxu0 0.0
    %2057 = vmatprep.subr.mxu0 0.0
    %2058 = vmatpush1.msra.mxu0 0.0
    %2059 = vmatprep.subr.mxu0 0.0
    %2060 = vmatpush1.msra.mxu0 0.0
    %2061 = vmatprep.mubr.f32.mxu0 0.0
    %2062 = vmatmul.mubr.f32.gmra.mrb[0].mxu0 %v1993
    %v2063 = vpop.f32.mrb[0].mxu0
    %v2064 = vadd.f32 0.0, %v2063
    %v2065 = vpop.f32.mrb[0].mxu0
    %2066 = vmatprep.mubr.f32.mxu0 0.0
    %2067 = vmatmul.mubr.f32.gmra.mrb[0].mxu0 %v1994
    %v2068 = vpop.f32.mrb[0].mxu0
    %v2069 = vadd.f32 0.0, %v2068
    %v2070 = vpop.f32.mrb[0].mxu0
    %2071 = vmatprep.mubr.f32.mxu0 0.0
    %2072 = vmatmul.mubr.f32.gmra.mrb[0].mxu0 %v1995
    %v2073 = vpop.f32.mrb[0].mxu0
    %v2074 = vadd.f32 0.0, %v2073
    %v2075 = vpop.f32.mrb[0].mxu0
    %2076 = vmatprep.mubr.f32.mxu0 0.0
    %2077 = vmatmul.mubr.f32.gmra.mrb[0].mxu0 %v1996
    %v2078 = vpop.f32.mrb[0].mxu0
    %v2079 = vadd.f32 0.0, %v2078
    %v2080 = vpop.f32.mrb[0].mxu0
    %2081 = vdwg.mxu0
    %s2082 = scalar_lea.vmem %s3, 256
    %v2083 = vld [vmem:[%s2082] sm:$0xff]
    %v2084 = vld [vmem:[%s2082 + $0x8] sm:$0xff]
    %v2085 = vld [vmem:[%s2082 + $0x10] sm:$0xff]
    %v2086 = vld [vmem:[%s2082 + $0x18] sm:$0xff]
    %v2088 = vsel %vm258, %v2064, 0
    %v2091 = vsel %vm258, %v2069, 0
    %v2094 = vsel %vm258, %v2074, 0
    %v2097 = vsel %vm258, %v2079, 0
    %2099 = vmatprep.subr.mxu0 0.0
    %2100 = vmatpush1.msra.mxu0 %v2083
    %2101 = vmatprep.subr.mxu0 0.0
    %2102 = vmatpush1.msra.mxu0 %v2084
    %2103 = vmatprep.subr.mxu0 0.0
    %2104 = vmatpush1.msra.mxu0 %v2085
    %2105 = vmatprep.subr.mxu0 0.0
    %2106 = vmatpush1.msra.mxu0 %v2086
    %2107 = vmatprep.subr.mxu0 0.0
    %2108 = vmatpush1.msra.mxu0 0.0
    %2109 = vmatprep.subr.mxu0 0.0
    %2110 = vmatpush1.msra.mxu0 0.0
    %2111 = vmatprep.subr.mxu0 0.0
    %2112 = vmatpush1.msra.mxu0 0.0
    %2113 = vmatprep.subr.mxu0 0.0
    %2114 = vmatpush1.msra.mxu0 0.0
    %2115 = vmatprep.subr.mxu0 0.0
    %2116 = vmatpush1.msra.mxu0 0.0
    %2117 = vmatprep.subr.mxu0 0.0
    %2118 = vmatpush1.msra.mxu0 0.0
    %2119 = vmatprep.subr.mxu0 0.0
    %2120 = vmatpush1.msra.mxu0 0.0
    %2121 = vmatprep.subr.mxu0 0.0
    %2122 = vmatpush1.msra.mxu0 0.0
    %2123 = vmatprep.subr.mxu0 0.0
    %2124 = vmatpush1.msra.mxu0 0.0
    %2125 = vmatprep.subr.mxu0 0.0
    %2126 = vmatpush1.msra.mxu0 0.0
    %2127 = vmatprep.subr.mxu0 0.0
    %2128 = vmatpush1.msra.mxu0 0.0
    %2129 = vmatprep.subr.mxu0 0.0
    %2130 = vmatpush1.msra.mxu0 0.0
    %2131 = vmatprep.subr.mxu0 0.0
    %2132 = vmatpush1.msra.mxu0 0.0
    %2133 = vmatprep.subr.mxu0 0.0
    %2134 = vmatpush1.msra.mxu0 0.0
    %2135 = vmatprep.subr.mxu0 0.0
    %2136 = vmatpush1.msra.mxu0 0.0
    %2137 = vmatprep.subr.mxu0 0.0
    %2138 = vmatpush1.msra.mxu0 0.0
    %2139 = vmatprep.subr.mxu0 0.0
    %2140 = vmatpush1.msra.mxu0 0.0
    %2141 = vmatprep.subr.mxu0 0.0
    %2142 = vmatpush1.msra.mxu0 0.0
    %2143 = vmatprep.subr.mxu0 0.0
    %2144 = vmatpush1.msra.mxu0 0.0
    %2145 = vmatprep.subr.mxu0 0.0
    %2146 = vmatpush1.msra.mxu0 0.0
    %2147 = vmatprep.subr.mxu0 0.0
    %2148 = vmatpush1.msra.mxu0 0.0
    %2149 = vmatprep.subr.mxu0 0.0
    %2150 = vmatpush1.msra.mxu0 0.0
    %2151 = vmatprep.subr.mxu0 0.0
    %2152 = vmatpush1.msra.mxu0 0.0
    %2153 = vmatprep.subr.mxu0 0.0
    %2154 = vmatpush1.msra.mxu0 0.0
    %2155 = vmatprep.subr.mxu0 0.0
    %2156 = vmatpush1.msra.mxu0 0.0
    %2157 = vmatprep.subr.mxu0 0.0
    %2158 = vmatpush1.msra.mxu0 0.0
    %2159 = vmatprep.subr.mxu0 0.0
    %2160 = vmatpush1.msra.mxu0 0.0
    %2161 = vmatprep.subr.mxu0 0.0
    %2162 = vmatpush1.msra.mxu0 0.0
    %2163 = vmatprep.mubr.f32.mxu0 0.0
    %2164 = vmatmul.mubr.f32.gmra.mrb[0].mxu0 %v2088
    %v2165 = vpop.f32.mrb[0].mxu0
    %v2166 = vadd.f32 0.0, %v2165
    %v2167 = vpop.f32.mrb[0].mxu0
    %2168 = vmatprep.mubr.f32.mxu0 0.0
    %2169 = vmatmul.mubr.f32.gmra.mrb[0].mxu0 %v2091
    %v2170 = vpop.f32.mrb[0].mxu0
    %v2171 = vadd.f32 0.0, %v2170
    %v2172 = vpop.f32.mrb[0].mxu0
    %2173 = vmatprep.mubr.f32.mxu0 0.0
    %2174 = vmatmul.mubr.f32.gmra.mrb[0].mxu0 %v2094
    %v2175 = vpop.f32.mrb[0].mxu0
    %v2176 = vadd.f32 0.0, %v2175
    %v2177 = vpop.f32.mrb[0].mxu0
    %2178 = vmatprep.mubr.f32.mxu0 0.0
    %2179 = vmatmul.mubr.f32.gmra.mrb[0].mxu0 %v2097
    %v2180 = vpop.f32.mrb[0].mxu0
    %v2181 = vadd.f32 0.0, %v2180
    %v2182 = vpop.f32.mrb[0].mxu0
    %2183 = vdwg.mxu0
    %v2184 = vadd.f32 %v1988, %v2166
    %v2185 = vadd.f32 %v1989, %v2171
    %v2186 = vadd.f32 %v1990, %v2176
    %v2187 = vadd.f32 %v1991, %v2181
    %v2188 = vsel %vm258, %v2184, 0.0
    %v2189 = vsel %vm258, %v2185, 0.0
    %v2190 = vadd.f32 %v2188, %v2189
    %v2191 = vsel %vm258, %v2186, 0.0
    %v2192 = vadd.f32 %v2190, %v2191
    %v2193 = vsel %vm258, %v2187, 0.0
    %v2194 = vadd.f32 %v2192, %v2193
    %v2195 = vrot.slane %v2194, 4
    %v2196 = vadd.f32 %v2194, %v2195
    %v2197 = vrot.slane %v2196, 2
    %v2198 = vadd.f32 %v2196, %v2197
    %v2199 = vrot.slane %v2198, 1
    %v2200 = vadd.f32 %v2198, %v2199
    %v2201 = vmul.f32 %v2200, 0.03125
    %v2202 = vmul.f32 %v2184, %v2184
    %v2203 = vmul.f32 %v2185, %v2185
    %v2204 = vmul.f32 %v2186, %v2186
    %v2205 = vmul.f32 %v2187, %v2187
    %v2206 = vsel %vm258, %v2202, 0.0
    %v2207 = vsel %vm258, %v2203, 0.0
    %v2208 = vadd.f32 %v2206, %v2207
    %v2209 = vsel %vm258, %v2204, 0.0
    %v2210 = vadd.f32 %v2208, %v2209
    %v2211 = vsel %vm258, %v2205, 0.0
    %v2212 = vadd.f32 %v2210, %v2211
    %v2213 = vrot.slane %v2212, 4
    %v2214 = vadd.f32 %v2212, %v2213
    %v2215 = vrot.slane %v2214, 2
    %v2216 = vadd.f32 %v2214, %v2215
    %v2217 = vrot.slane %v2216, 1
    %v2218 = vadd.f32 %v2216, %v2217
    %v2219 = vmul.f32 %v2218, 0.03125
    %v2220 = vmul.f32 %v2201, %v2201
    %v2221 = vsub.f32 %v2219, %v2220
    %s2222 = scalar_lea.vmem %s8, 1
    %v2223 = vld [vmem:[%s2222] sm:$0x1]
    %v2224 = vadd.f32 %v2221, 1e-05
    %v2225 = vrsqrt.pop %v2224
    %v2226 = vmul.f32 %v2223, %v2225
    %v2227 = vsub.f32 %v2184, %v2201
    %v2228 = vsub.f32 %v2185, %v2201
    %v2229 = vsub.f32 %v2186, %v2201
    %v2230 = vsub.f32 %v2187, %v2201
    %v2232 = vlaneseq
    %v2233 = vshrl.u32 %v2232, 7
    %v2234 = vsub.s32 0, %v2233
    %v2235 = vrot.slane %v2226, %v2234
    %v2237 = vmul.f32 %v2227, %v2235
    %v2238 = vmul.f32 %v2228, %v2235
    %v2239 = vmul.f32 %v2229, %v2235
    %v2240 = vmul.f32 %v2230, %v2235
    %s2241 = scalar_lea.vmem %s9, 1
    %v2242 = vld [vmem:[%s2241] sm:$0x1]
    %v2244 = vlaneseq
    %v2245 = vshrl.u32 %v2244, 7
    %v2246 = vsub.s32 0, %v2245
    %v2247 = vrot.slane %v2242, %v2246
    %v2249 = vadd.f32 %v2237, %v2247
    %v2250 = vadd.f32 %v2238, %v2247
    %v2251 = vadd.f32 %v2239, %v2247
    %v2252 = vadd.f32 %v2240, %v2247
    %v2253 = vmax.f32 %v2249, 0.0
    %v2254 = vmax.f32 %v2250, 0.0
    %v2255 = vmax.f32 %v2251, 0.0
    %v2256 = vmax.f32 %v2252, 0.0
    %v2257 = vld [vmem:[%s4] sm:$0xff]
    %v2259 = vsel %vm258, %v2257, 0
    %2261 = vmatprep.subr.mxu0 0.0
    %2262 = vmatpush1.msra.mxu0 %v2253
    %2263 = vmatprep.subr.mxu0 0.0
    %2264 = vmatpush1.msra.mxu0 %v2254
    %2265 = vmatprep.subr.mxu0 0.0
    %2266 = vmatpush1.msra.mxu0 %v2255
    %2267 = vmatprep.subr.mxu0 0.0
    %2268 = vmatpush1.msra.mxu0 %v2256
    %2269 = vmatprep.subr.mxu0 0.0
    %2270 = vmatpush1.msra.mxu0 0.0
    %2271 = vmatprep.subr.mxu0 0.0
    %2272 = vmatpush1.msra.mxu0 0.0
    %2273 = vmatprep.subr.mxu0 0.0
    %2274 = vmatpush1.msra.mxu0 0.0
    %2275 = vmatprep.subr.mxu0 0.0
    %2276 = vmatpush1.msra.mxu0 0.0
    %2277 = vmatprep.subr.mxu0 0.0
    %2278 = vmatpush1.msra.mxu0 0.0
    %2279 = vmatprep.subr.mxu0 0.0
    %2280 = vmatpush1.msra.mxu0 0.0
    %2281 = vmatprep.subr.mxu0 0.0
    %2282 = vmatpush1.msra.mxu0 0.0
    %2283 = vmatprep.subr.mxu0 0.0
    %2284 = vmatpush1.msra.mxu0 0.0
    %2285 = vmatprep.subr.mxu0 0.0
    %2286 = vmatpush1.msra.mxu0 0.0
    %2287 = vmatprep.subr.mxu0 0.0
    %2288 = vmatpush1.msra.mxu0 0.0
    %2289 = vmatprep.subr.mxu0 0.0
    %2290 = vmatpush1.msra.mxu0 0.0
    %2291 = vmatprep.subr.mxu0 0.0
    %2292 = vmatpush1.msra.mxu0 0.0
    %2293 = vmatprep.subr.mxu0 0.0
    %2294 = vmatpush1.msra.mxu0 0.0
    %2295 = vmatprep.subr.mxu0 0.0
    %2296 = vmatpush1.msra.mxu0 0.0
    %2297 = vmatprep.subr.mxu0 0.0
    %2298 = vmatpush1.msra.mxu0 0.0
    %2299 = vmatprep.subr.mxu0 0.0
    %2300 = vmatpush1.msra.mxu0 0.0
    %2301 = vmatprep.subr.mxu0 0.0
    %2302 = vmatpush1.msra.mxu0 0.0
    %2303 = vmatprep.subr.mxu0 0.0
    %2304 = vmatpush1.msra.mxu0 0.0
    %2305 = vmatprep.subr.mxu0 0.0
    %2306 = vmatpush1.msra.mxu0 0.0
    %2307 = vmatprep.subr.mxu0 0.0
    %2308 = vmatpush1.msra.mxu0 0.0
    %2309 = vmatprep.subr.mxu0 0.0
    %2310 = vmatpush1.msra.mxu0 0.0
    %2311 = vmatprep.subr.mxu0 0.0
    %2312 = vmatpush1.msra.mxu0 0.0
    %2313 = vmatprep.subr.mxu0 0.0
    %2314 = vmatpush1.msra.mxu0 0.0
    %2315 = vmatprep.subr.mxu0 0.0
    %2316 = vmatpush1.msra.mxu0 0.0
    %2317 = vmatprep.subr.mxu0 0.0
    %2318 = vmatpush1.msra.mxu0 0.0
    %2319 = vmatprep.subr.mxu0 0.0
    %2320 = vmatpush1.msra.mxu0 0.0
    %2321 = vmatprep.subr.mxu0 0.0
    %2322 = vmatpush1.msra.mxu0 0.0
    %2323 = vmatprep.subr.mxu0 0.0
    %2324 = vmatpush1.msra.mxu0 0.0
    %2325 = vmatprep.mubr.f32.mxu0 0.0
    %2326 = vmatmul.mubr.f32.gmra.mrb[0].mxu0 %v2259
    %v2327 = vpop.f32.mrb[0].mxu0
    %v2328 = vadd.f32 0.0, %v2327
    %v2329 = vpop.f32.mrb[0].mxu0
    %2330 = vdwg.mxu0
    %v2331 = vld [vmem:[%s5] sm:$0xff]
    %v2332 = vld [vmem:[%s5 + $0x8] sm:$0xff]
    %v2333 = vld [vmem:[%s5 + $0x10] sm:$0xff]
    %v2334 = vld [vmem:[%s5 + $0x18] sm:$0xff]
    %s2335 = scalar_lea.vmem %s4, 8
    %v2336 = vld [vmem:[%s2335] sm:$0xff]
    %v2338 = vsel %vm258, %v2336, 0
    %2340 = vmatprep.subr.mxu0 0.0
    %2341 = vmatpush1.msra.mxu0 %v2253
    %2342 = vmatprep.subr.mxu0 0.0
    %2343 = vmatpush1.msra.mxu0 %v2254
    %2344 = vmatprep.subr.mxu0 0.0
    %2345 = vmatpush1.msra.mxu0 %v2255
    %2346 = vmatprep.subr.mxu0 0.0
    %2347 = vmatpush1.msra.mxu0 %v2256
    %2348 = vmatprep.subr.mxu0 0.0
    %2349 = vmatpush1.msra.mxu0 0.0
    %2350 = vmatprep.subr.mxu0 0.0
    %2351 = vmatpush1.msra.mxu0 0.0
    %2352 = vmatprep.subr.mxu0 0.0
    %2353 = vmatpush1.msra.mxu0 0.0
    %2354 = vmatprep.subr.mxu0 0.0
    %2355 = vmatpush1.msra.mxu0 0.0
    %2356 = vmatprep.subr.mxu0 0.0
    %2357 = vmatpush1.msra.mxu0 0.0
    %2358 = vmatprep.subr.mxu0 0.0
    %2359 = vmatpush1.msra.mxu0 0.0
    %2360 = vmatprep.subr.mxu0 0.0
    %2361 = vmatpush1.msra.mxu0 0.0
    %2362 = vmatprep.subr.mxu0 0.0
    %2363 = vmatpush1.msra.mxu0 0.0
    %2364 = vmatprep.subr.mxu0 0.0
    %2365 = vmatpush1.msra.mxu0 0.0
    %2366 = vmatprep.subr.mxu0 0.0
    %2367 = vmatpush1.msra.mxu0 0.0
    %2368 = vmatprep.subr.mxu0 0.0
    %2369 = vmatpush1.msra.mxu0 0.0
    %2370 = vmatprep.subr.mxu0 0.0
    %2371 = vmatpush1.msra.mxu0 0.0
    %2372 = vmatprep.subr.mxu0 0.0
    %2373 = vmatpush1.msra.mxu0 0.0
    %2374 = vmatprep.subr.mxu0 0.0
    %2375 = vmatpush1.msra.mxu0 0.0
    %2376 = vmatprep.subr.mxu0 0.0
    %2377 = vmatpush1.msra.mxu0 0.0
    %2378 = vmatprep.subr.mxu0 0.0
    %2379 = vmatpush1.msra.mxu0 0.0
    %2380 = vmatprep.subr.mxu0 0.0
    %2381 = vmatpush1.msra.mxu0 0.0
    %2382 = vmatprep.subr.mxu0 0.0
    %2383 = vmatpush1.msra.mxu0 0.0
    %2384 = vmatprep.subr.mxu0 0.0
    %2385 = vmatpush1.msra.mxu0 0.0
    %2386 = vmatprep.subr.mxu0 0.0
    %2387 = vmatpush1.msra.mxu0 0.0
    %2388 = vmatprep.subr.mxu0 0.0
    %2389 = vmatpush1.msra.mxu0 0.0
    %2390 = vmatprep.subr.mxu0 0.0
    %2391 = vmatpush1.msra.mxu0 0.0
    %2392 = vmatprep.subr.mxu0 0.0
    %2393 = vmatpush1.msra.mxu0 0.0
    %2394 = vmatprep.subr.mxu0 0.0
    %2395 = vmatpush1.msra.mxu0 0.0
    %2396 = vmatprep.subr.mxu0 0.0
    %2397 = vmatpush1.msra.mxu0 0.0
    %2398 = vmatprep.subr.mxu0 0.0
    %2399 = vmatpush1.msra.mxu0 0.0
    %2400 = vmatprep.subr.mxu0 0.0
    %2401 = vmatpush1.msra.mxu0 0.0
    %2402 = vmatprep.subr.mxu0 0.0
    %2403 = vmatpush1.msra.mxu0 0.0
    %2404 = vmatprep.mubr.f32.mxu0 0.0
    %2405 = vmatmul.mubr.f32.gmra.mrb[0].mxu0 %v2338
    %v2406 = vpop.f32.mrb[0].mxu0
    %v2407 = vadd.f32 0.0, %v2406
    %v2408 = vpop.f32.mrb[0].mxu0
    %2409 = vdwg.mxu0
    %s2410 = scalar_lea.vmem %s5, 32
    %v2411 = vld [vmem:[%s2410] sm:$0xff]
    %v2412 = vld [vmem:[%s2410 + $0x8] sm:$0xff]
    %v2413 = vld [vmem:[%s2410 + $0x10] sm:$0xff]
    %v2414 = vld [vmem:[%s2410 + $0x18] sm:$0xff]
    %v2416 = vsel %vm258, %v2407, 0
    %2418 = vmatprep.subr.mxu0 0.0
    %2419 = vmatpush1.msra.mxu0 %v2411
    %2420 = vmatprep.subr.mxu0 0.0
    %2421 = vmatpush1.msra.mxu0 %v2412
    %2422 = vmatprep.subr.mxu0 0.0
    %2423 = vmatpush1.msra.mxu0 %v2413
    %2424 = vmatprep.subr.mxu0 0.0
    %2425 = vmatpush1.msra.mxu0 %v2414
    %2426 = vmatprep.subr.mxu0 0.0
    %2427 = vmatpush1.msra.mxu0 0.0
    %2428 = vmatprep.subr.mxu0 0.0
    %2429 = vmatpush1.msra.mxu0 0.0
    %2430 = vmatprep.subr.mxu0 0.0
    %2431 = vmatpush1.msra.mxu0 0.0
    %2432 = vmatprep.subr.mxu0 0.0
    %2433 = vmatpush1.msra.mxu0 0.0
    %2434 = vmatprep.subr.mxu0 0.0
    %2435 = vmatpush1.msra.mxu0 0.0
    %2436 = vmatprep.subr.mxu0 0.0
    %2437 = vmatpush1.msra.mxu0 0.0
    %2438 = vmatprep.subr.mxu0 0.0
    %2439 = vmatpush1.msra.mxu0 0.0
    %2440 = vmatprep.subr.mxu0 0.0
    %2441 = vmatpush1.msra.mxu0 0.0
    %2442 = vmatprep.subr.mxu0 0.0
    %2443 = vmatpush1.msra.mxu0 0.0
    %2444 = vmatprep.subr.mxu0 0.0
    %2445 = vmatpush1.msra.mxu0 0.0
    %2446 = vmatprep.subr.mxu0 0.0
    %2447 = vmatpush1.msra.mxu0 0.0
    %2448 = vmatprep.subr.mxu0 0.0
    %2449 = vmatpush1.msra.mxu0 0.0
    %2450 = vmatprep.subr.mxu0 0.0
    %2451 = vmatpush1.msra.mxu0 0.0
    %2452 = vmatprep.subr.mxu0 0.0
    %2453 = vmatpush1.msra.mxu0 0.0
    %2454 = vmatprep.subr.mxu0 0.0
    %2455 = vmatpush1.msra.mxu0 0.0
    %2456 = vmatprep.subr.mxu0 0.0
    %2457 = vmatpush1.msra.mxu0 0.0
    %2458 = vmatprep.subr.mxu0 0.0
    %2459 = vmatpush1.msra.mxu0 0.0
    %2460 = vmatprep.subr.mxu0 0.0
    %2461 = vmatpush1.msra.mxu0 0.0
    %2462 = vmatprep.subr.mxu0 0.0
    %2463 = vmatpush1.msra.mxu0 0.0
    %2464 = vmatprep.subr.mxu0 0.0
    %2465 = vmatpush1.msra.mxu0 0.0
    %2466 = vmatprep.subr.mxu0 0.0
    %2467 = vmatpush1.msra.mxu0 0.0
    %2468 = vmatprep.subr.mxu0 0.0
    %2469 = vmatpush1.msra.mxu0 0.0
    %2470 = vmatprep.subr.mxu0 0.0
    %2471 = vmatpush1.msra.mxu0 0.0
    %2472 = vmatprep.subr.mxu0 0.0
    %2473 = vmatpush1.msra.mxu0 0.0
    %2474 = vmatprep.subr.mxu0 0.0
    %2475 = vmatpush1.msra.mxu0 0.0
    %2476 = vmatprep.subr.mxu0 0.0
    %2477 = vmatpush1.msra.mxu0 0.0
    %2478 = vmatprep.subr.mxu0 0.0
    %2479 = vmatpush1.msra.mxu0 0.0
    %2480 = vmatprep.subr.mxu0 0.0
    %2481 = vmatpush1.msra.mxu0 0.0
    %2482 = vmatprep.mubr.f32.mxu0 0.0
    %2483 = vmatmul.mubr.f32.gmra.mrb[0].mxu0 %v2416
    %v2484 = vpop.f32.mrb[0].mxu0
    %v2485 = vadd.f32 0.0, %v2484
    %v2486 = vpop.f32.mrb[0].mxu0
    %2487 = vdwg.mxu0
    %v2489 = vsel %vm258, %v2328, 0
    %2491 = vmatprep.subr.mxu0 0.0
    %2492 = vmatpush1.msra.mxu0 %v2331
    %2493 = vmatprep.subr.mxu0 0.0
    %2494 = vmatpush1.msra.mxu0 %v2332
    %2495 = vmatprep.subr.mxu0 0.0
    %2496 = vmatpush1.msra.mxu0 %v2333
    %2497 = vmatprep.subr.mxu0 0.0
    %2498 = vmatpush1.msra.mxu0 %v2334
    %2499 = vmatprep.subr.mxu0 0.0
    %2500 = vmatpush1.msra.mxu0 0.0
    %2501 = vmatprep.subr.mxu0 0.0
    %2502 = vmatpush1.msra.mxu0 0.0
    %2503 = vmatprep.subr.mxu0 0.0
    %2504 = vmatpush1.msra.mxu0 0.0
    %2505 = vmatprep.subr.mxu0 0.0
    %2506 = vmatpush1.msra.mxu0 0.0
    %2507 = vmatprep.subr.mxu0 0.0
    %2508 = vmatpush1.msra.mxu0 0.0
    %2509 = vmatprep.subr.mxu0 0.0
    %2510 = vmatpush1.msra.mxu0 0.0
    %2511 = vmatprep.subr.mxu0 0.0
    %2512 = vmatpush1.msra.mxu0 0.0
    %2513 = vmatprep.subr.mxu0 0.0
    %2514 = vmatpush1.msra.mxu0 0.0
    %2515 = vmatprep.subr.mxu0 0.0
    %2516 = vmatpush1.msra.mxu0 0.0
    %2517 = vmatprep.subr.mxu0 0.0
    %2518 = vmatpush1.msra.mxu0 0.0
    %2519 = vmatprep.subr.mxu0 0.0
    %2520 = vmatpush1.msra.mxu0 0.0
    %2521 = vmatprep.subr.mxu0 0.0
    %2522 = vmatpush1.msra.mxu0 0.0
    %2523 = vmatprep.subr.mxu0 0.0
    %2524 = vmatpush1.msra.mxu0 0.0
    %2525 = vmatprep.subr.mxu0 0.0
    %2526 = vmatpush1.msra.mxu0 0.0
    %2527 = vmatprep.subr.mxu0 0.0
    %2528 = vmatpush1.msra.mxu0 0.0
    %2529 = vmatprep.subr.mxu0 0.0
    %2530 = vmatpush1.msra.mxu0 0.0
    %2531 = vmatprep.subr.mxu0 0.0
    %2532 = vmatpush1.msra.mxu0 0.0
    %2533 = vmatprep.subr.mxu0 0.0
    %2534 = vmatpush1.msra.mxu0 0.0
    %2535 = vmatprep.subr.mxu0 0.0
    %2536 = vmatpush1.msra.mxu0 0.0
    %2537 = vmatprep.subr.mxu0 0.0
    %2538 = vmatpush1.msra.mxu0 0.0
    %2539 = vmatprep.subr.mxu0 0.0
    %2540 = vmatpush1.msra.mxu0 0.0
    %2541 = vmatprep.subr.mxu0 0.0
    %2542 = vmatpush1.msra.mxu0 0.0
    %2543 = vmatprep.subr.mxu0 0.0
    %2544 = vmatpush1.msra.mxu0 0.0
    %2545 = vmatprep.subr.mxu0 0.0
    %2546 = vmatpush1.msra.mxu0 0.0
    %2547 = vmatprep.subr.mxu0 0.0
    %2548 = vmatpush1.msra.mxu0 0.0
    %2549 = vmatprep.subr.mxu0 0.0
    %2550 = vmatpush1.msra.mxu0 0.0
    %2551 = vmatprep.subr.mxu0 0.0
    %2552 = vmatpush1.msra.mxu0 0.0
    %2553 = vmatprep.subr.mxu0 0.0
    %2554 = vmatpush1.msra.mxu0 0.0
    %2555 = vmatprep.mubr.f32.mxu0 0.0
    %2556 = vmatmul.mubr.f32.gmra.mrb[0].mxu0 %v2489
    %v2557 = vpop.f32.mrb[0].mxu0
    %v2558 = vadd.f32 %v2485, %v2557
    %v2559 = vpop.f32.mrb[0].mxu0
    %2560 = vdwg.mxu0
    %s2561 = scalar_lea.vmem %s4, 16
    %v2562 = vld [vmem:[%s2561] sm:$0xff]
    %v2564 = vsel %vm258, %v2562, 0
    %2566 = vmatprep.subr.mxu0 0.0
    %2567 = vmatpush1.msra.mxu0 %v2253
    %2568 = vmatprep.subr.mxu0 0.0
    %2569 = vmatpush1.msra.mxu0 %v2254
    %2570 = vmatprep.subr.mxu0 0.0
    %2571 = vmatpush1.msra.mxu0 %v2255
    %2572 = vmatprep.subr.mxu0 0.0
    %2573 = vmatpush1.msra.mxu0 %v2256
    %2574 = vmatprep.subr.mxu0 0.0
    %2575 = vmatpush1.msra.mxu0 0.0
    %2576 = vmatprep.subr.mxu0 0.0
    %2577 = vmatpush1.msra.mxu0 0.0
    %2578 = vmatprep.subr.mxu0 0.0
    %2579 = vmatpush1.msra.mxu0 0.0
    %2580 = vmatprep.subr.mxu0 0.0
    %2581 = vmatpush1.msra.mxu0 0.0
    %2582 = vmatprep.subr.mxu0 0.0
    %2583 = vmatpush1.msra.mxu0 0.0
    %2584 = vmatprep.subr.mxu0 0.0
    %2585 = vmatpush1.msra.mxu0 0.0
    %2586 = vmatprep.subr.mxu0 0.0
    %2587 = vmatpush1.msra.mxu0 0.0
    %2588 = vmatprep.subr.mxu0 0.0
    %2589 = vmatpush1.msra.mxu0 0.0
    %2590 = vmatprep.subr.mxu0 0.0
    %2591 = vmatpush1.msra.mxu0 0.0
    %2592 = vmatprep.subr.mxu0 0.0
    %2593 = vmatpush1.msra.mxu0 0.0
    %2594 = vmatprep.subr.mxu0 0.0
    %2595 = vmatpush1.msra.mxu0 0.0
    %2596 = vmatprep.subr.mxu0 0.0
    %2597 = vmatpush1.msra.mxu0 0.0
    %2598 = vmatprep.subr.mxu0 0.0
    %2599 = vmatpush1.msra.mxu0 0.0
    %2600 = vmatprep.subr.mxu0 0.0
    %2601 = vmatpush1.msra.mxu0 0.0
    %2602 = vmatprep.subr.mxu0 0.0
    %2603 = vmatpush1.msra.mxu0 0.0
    %2604 = vmatprep.subr.mxu0 0.0
    %2605 = vmatpush1.msra.mxu0 0.0
    %2606 = vmatprep.subr.mxu0 0.0
    %2607 = vmatpush1.msra.mxu0 0.0
    %2608 = vmatprep.subr.mxu0 0.0
    %2609 = vmatpush1.msra.mxu0 0.0
    %2610 = vmatprep.subr.mxu0 0.0
    %2611 = vmatpush1.msra.mxu0 0.0
    %2612 = vmatprep.subr.mxu0 0.0
    %2613 = vmatpush1.msra.mxu0 0.0
    %2614 = vmatprep.subr.mxu0 0.0
    %2615 = vmatpush1.msra.mxu0 0.0
    %2616 = vmatprep.subr.mxu0 0.0
    %2617 = vmatpush1.msra.mxu0 0.0
    %2618 = vmatprep.subr.mxu0 0.0
    %2619 = vmatpush1.msra.mxu0 0.0
    %2620 = vmatprep.subr.mxu0 0.0
    %2621 = vmatpush1.msra.mxu0 0.0
    %2622 = vmatprep.subr.mxu0 0.0
    %2623 = vmatpush1.msra.mxu0 0.0
    %2624 = vmatprep.subr.mxu0 0.0
    %2625 = vmatpush1.msra.mxu0 0.0
    %2626 = vmatprep.subr.mxu0 0.0
    %2627 = vmatpush1.msra.mxu0 0.0
    %2628 = vmatprep.subr.mxu0 0.0
    %2629 = vmatpush1.msra.mxu0 0.0
    %2630 = vmatprep.mubr.f32.mxu0 0.0
    %2631 = vmatmul.mubr.f32.gmra.mrb[0].mxu0 %v2564
    %v2632 = vpop.f32.mrb[0].mxu0
    %v2633 = vadd.f32 0.0, %v2632
    %v2634 = vpop.f32.mrb[0].mxu0
    %2635 = vdwg.mxu0
    %s2636 = scalar_lea.vmem %s5, 64
    %v2637 = vld [vmem:[%s2636] sm:$0xff]
    %v2638 = vld [vmem:[%s2636 + $0x8] sm:$0xff]
    %v2639 = vld [vmem:[%s2636 + $0x10] sm:$0xff]
    %v2640 = vld [vmem:[%s2636 + $0x18] sm:$0xff]
    %v2642 = vsel %vm258, %v2633, 0
    %2644 = vmatprep.subr.mxu0 0.0
    %2645 = vmatpush1.msra.mxu0 %v2637
    %2646 = vmatprep.subr.mxu0 0.0
    %2647 = vmatpush1.msra.mxu0 %v2638
    %2648 = vmatprep.subr.mxu0 0.0
    %2649 = vmatpush1.msra.mxu0 %v2639
    %2650 = vmatprep.subr.mxu0 0.0
    %2651 = vmatpush1.msra.mxu0 %v2640
    %2652 = vmatprep.subr.mxu0 0.0
    %2653 = vmatpush1.msra.mxu0 0.0
    %2654 = vmatprep.subr.mxu0 0.0
    %2655 = vmatpush1.msra.mxu0 0.0
    %2656 = vmatprep.subr.mxu0 0.0
    %2657 = vmatpush1.msra.mxu0 0.0
    %2658 = vmatprep.subr.mxu0 0.0
    %2659 = vmatpush1.msra.mxu0 0.0
    %2660 = vmatprep.subr.mxu0 0.0
    %2661 = vmatpush1.msra.mxu0 0.0
    %2662 = vmatprep.subr.mxu0 0.0
    %2663 = vmatpush1.msra.mxu0 0.0
    %2664 = vmatprep.subr.mxu0 0.0
    %2665 = vmatpush1.msra.mxu0 0.0
    %2666 = vmatprep.subr.mxu0 0.0
    %2667 = vmatpush1.msra.mxu0 0.0
    %2668 = vmatprep.subr.mxu0 0.0
    %2669 = vmatpush1.msra.mxu0 0.0
    %2670 = vmatprep.subr.mxu0 0.0
    %2671 = vmatpush1.msra.mxu0 0.0
    %2672 = vmatprep.subr.mxu0 0.0
    %2673 = vmatpush1.msra.mxu0 0.0
    %2674 = vmatprep.subr.mxu0 0.0
    %2675 = vmatpush1.msra.mxu0 0.0
    %2676 = vmatprep.subr.mxu0 0.0
    %2677 = vmatpush1.msra.mxu0 0.0
    %2678 = vmatprep.subr.mxu0 0.0
    %2679 = vmatpush1.msra.mxu0 0.0
    %2680 = vmatprep.subr.mxu0 0.0
    %2681 = vmatpush1.msra.mxu0 0.0
    %2682 = vmatprep.subr.mxu0 0.0
    %2683 = vmatpush1.msra.mxu0 0.0
    %2684 = vmatprep.subr.mxu0 0.0
    %2685 = vmatpush1.msra.mxu0 0.0
    %2686 = vmatprep.subr.mxu0 0.0
    %2687 = vmatpush1.msra.mxu0 0.0
    %2688 = vmatprep.subr.mxu0 0.0
    %2689 = vmatpush1.msra.mxu0 0.0
    %2690 = vmatprep.subr.mxu0 0.0
    %2691 = vmatpush1.msra.mxu0 0.0
    %2692 = vmatprep.subr.mxu0 0.0
    %2693 = vmatpush1.msra.mxu0 0.0
    %2694 = vmatprep.subr.mxu0 0.0
    %2695 = vmatpush1.msra.mxu0 0.0
    %2696 = vmatprep.subr.mxu0 0.0
    %2697 = vmatpush1.msra.mxu0 0.0
    %2698 = vmatprep.subr.mxu0 0.0
    %2699 = vmatpush1.msra.mxu0 0.0
    %2700 = vmatprep.subr.mxu0 0.0
    %2701 = vmatpush1.msra.mxu0 0.0
    %2702 = vmatprep.subr.mxu0 0.0
    %2703 = vmatpush1.msra.mxu0 0.0
    %2704 = vmatprep.subr.mxu0 0.0
    %2705 = vmatpush1.msra.mxu0 0.0
    %2706 = vmatprep.subr.mxu0 0.0
    %2707 = vmatpush1.msra.mxu0 0.0
    %2708 = vmatprep.mubr.f32.mxu0 0.0
    %2709 = vmatmul.mubr.f32.gmra.mrb[0].mxu0 %v2642
    %v2710 = vpop.f32.mrb[0].mxu0
    %v2711 = vadd.f32 0.0, %v2710
    %v2712 = vpop.f32.mrb[0].mxu0
    %2713 = vdwg.mxu0
    %v2714 = vadd.f32 %v2558, %v2711
    %s2715 = scalar_lea.vmem %s4, 24
    %v2716 = vld [vmem:[%s2715] sm:$0xff]
    %v2718 = vsel %vm258, %v2716, 0
    %2720 = vmatprep.subr.mxu0 0.0
    %2721 = vmatpush1.msra.mxu0 %v2253
    %2722 = vmatprep.subr.mxu0 0.0
    %2723 = vmatpush1.msra.mxu0 %v2254
    %2724 = vmatprep.subr.mxu0 0.0
    %2725 = vmatpush1.msra.mxu0 %v2255
    %2726 = vmatprep.subr.mxu0 0.0
    %2727 = vmatpush1.msra.mxu0 %v2256
    %2728 = vmatprep.subr.mxu0 0.0
    %2729 = vmatpush1.msra.mxu0 0.0
    %2730 = vmatprep.subr.mxu0 0.0
    %2731 = vmatpush1.msra.mxu0 0.0
    %2732 = vmatprep.subr.mxu0 0.0
    %2733 = vmatpush1.msra.mxu0 0.0
    %2734 = vmatprep.subr.mxu0 0.0
    %2735 = vmatpush1.msra.mxu0 0.0
    %2736 = vmatprep.subr.mxu0 0.0
    %2737 = vmatpush1.msra.mxu0 0.0
    %2738 = vmatprep.subr.mxu0 0.0
    %2739 = vmatpush1.msra.mxu0 0.0
    %2740 = vmatprep.subr.mxu0 0.0
    %2741 = vmatpush1.msra.mxu0 0.0
    %2742 = vmatprep.subr.mxu0 0.0
    %2743 = vmatpush1.msra.mxu0 0.0
    %2744 = vmatprep.subr.mxu0 0.0
    %2745 = vmatpush1.msra.mxu0 0.0
    %2746 = vmatprep.subr.mxu0 0.0
    %2747 = vmatpush1.msra.mxu0 0.0
    %2748 = vmatprep.subr.mxu0 0.0
    %2749 = vmatpush1.msra.mxu0 0.0
    %2750 = vmatprep.subr.mxu0 0.0
    %2751 = vmatpush1.msra.mxu0 0.0
    %2752 = vmatprep.subr.mxu0 0.0
    %2753 = vmatpush1.msra.mxu0 0.0
    %2754 = vmatprep.subr.mxu0 0.0
    %2755 = vmatpush1.msra.mxu0 0.0
    %2756 = vmatprep.subr.mxu0 0.0
    %2757 = vmatpush1.msra.mxu0 0.0
    %2758 = vmatprep.subr.mxu0 0.0
    %2759 = vmatpush1.msra.mxu0 0.0
    %2760 = vmatprep.subr.mxu0 0.0
    %2761 = vmatpush1.msra.mxu0 0.0
    %2762 = vmatprep.subr.mxu0 0.0
    %2763 = vmatpush1.msra.mxu0 0.0
    %2764 = vmatprep.subr.mxu0 0.0
    %2765 = vmatpush1.msra.mxu0 0.0
    %2766 = vmatprep.subr.mxu0 0.0
    %2767 = vmatpush1.msra.mxu0 0.0
    %2768 = vmatprep.subr.mxu0 0.0
    %2769 = vmatpush1.msra.mxu0 0.0
    %2770 = vmatprep.subr.mxu0 0.0
    %2771 = vmatpush1.msra.mxu0 0.0
    %2772 = vmatprep.subr.mxu0 0.0
    %2773 = vmatpush1.msra.mxu0 0.0
    %2774 = vmatprep.subr.mxu0 0.0
    %2775 = vmatpush1.msra.mxu0 0.0
    %2776 = vmatprep.subr.mxu0 0.0
    %2777 = vmatpush1.msra.mxu0 0.0
    %2778 = vmatprep.subr.mxu0 0.0
    %2779 = vmatpush1.msra.mxu0 0.0
    %2780 = vmatprep.subr.mxu0 0.0
    %2781 = vmatpush1.msra.mxu0 0.0
    %2782 = vmatprep.subr.mxu0 0.0
    %2783 = vmatpush1.msra.mxu0 0.0
    %2784 = vmatprep.mubr.f32.mxu0 0.0
    %2785 = vmatmul.mubr.f32.gmra.mrb[0].mxu0 %v2718
    %v2786 = vpop.f32.mrb[0].mxu0
    %v2787 = vadd.f32 0.0, %v2786
    %v2788 = vpop.f32.mrb[0].mxu0
    %2789 = vdwg.mxu0
    %s2790 = scalar_lea.vmem %s5, 96
    %v2791 = vld [vmem:[%s2790] sm:$0xff]
    %v2792 = vld [vmem:[%s2790 + $0x8] sm:$0xff]
    %v2793 = vld [vmem:[%s2790 + $0x10] sm:$0xff]
    %v2794 = vld [vmem:[%s2790 + $0x18] sm:$0xff]
    %v2796 = vsel %vm258, %v2787, 0
    %2798 = vmatprep.subr.mxu0 0.0
    %2799 = vmatpush1.msra.mxu0 %v2791
    %2800 = vmatprep.subr.mxu0 0.0
    %2801 = vmatpush1.msra.mxu0 %v2792
    %2802 = vmatprep.subr.mxu0 0.0
    %2803 = vmatpush1.msra.mxu0 %v2793
    %2804 = vmatprep.subr.mxu0 0.0
    %2805 = vmatpush1.msra.mxu0 %v2794
    %2806 = vmatprep.subr.mxu0 0.0
    %2807 = vmatpush1.msra.mxu0 0.0
    %2808 = vmatprep.subr.mxu0 0.0
    %2809 = vmatpush1.msra.mxu0 0.0
    %2810 = vmatprep.subr.mxu0 0.0
    %2811 = vmatpush1.msra.mxu0 0.0
    %2812 = vmatprep.subr.mxu0 0.0
    %2813 = vmatpush1.msra.mxu0 0.0
    %2814 = vmatprep.subr.mxu0 0.0
    %2815 = vmatpush1.msra.mxu0 0.0
    %2816 = vmatprep.subr.mxu0 0.0
    %2817 = vmatpush1.msra.mxu0 0.0
    %2818 = vmatprep.subr.mxu0 0.0
    %2819 = vmatpush1.msra.mxu0 0.0
    %2820 = vmatprep.subr.mxu0 0.0
    %2821 = vmatpush1.msra.mxu0 0.0
    %2822 = vmatprep.subr.mxu0 0.0
    %2823 = vmatpush1.msra.mxu0 0.0
    %2824 = vmatprep.subr.mxu0 0.0
    %2825 = vmatpush1.msra.mxu0 0.0
    %2826 = vmatprep.subr.mxu0 0.0
    %2827 = vmatpush1.msra.mxu0 0.0
    %2828 = vmatprep.subr.mxu0 0.0
    %2829 = vmatpush1.msra.mxu0 0.0
    %2830 = vmatprep.subr.mxu0 0.0
    %2831 = vmatpush1.msra.mxu0 0.0
    %2832 = vmatprep.subr.mxu0 0.0
    %2833 = vmatpush1.msra.mxu0 0.0
    %2834 = vmatprep.subr.mxu0 0.0
    %2835 = vmatpush1.msra.mxu0 0.0
    %2836 = vmatprep.subr.mxu0 0.0
    %2837 = vmatpush1.msra.mxu0 0.0
    %2838 = vmatprep.subr.mxu0 0.0
    %2839 = vmatpush1.msra.mxu0 0.0
    %2840 = vmatprep.subr.mxu0 0.0
    %2841 = vmatpush1.msra.mxu0 0.0
    %2842 = vmatprep.subr.mxu0 0.0
    %2843 = vmatpush1.msra.mxu0 0.0
    %2844 = vmatprep.subr.mxu0 0.0
    %2845 = vmatpush1.msra.mxu0 0.0
    %2846 = vmatprep.subr.mxu0 0.0
    %2847 = vmatpush1.msra.mxu0 0.0
    %2848 = vmatprep.subr.mxu0 0.0
    %2849 = vmatpush1.msra.mxu0 0.0
    %2850 = vmatprep.subr.mxu0 0.0
    %2851 = vmatpush1.msra.mxu0 0.0
    %2852 = vmatprep.subr.mxu0 0.0
    %2853 = vmatpush1.msra.mxu0 0.0
    %2854 = vmatprep.subr.mxu0 0.0
    %2855 = vmatpush1.msra.mxu0 0.0
    %2856 = vmatprep.subr.mxu0 0.0
    %2857 = vmatpush1.msra.mxu0 0.0
    %2858 = vmatprep.subr.mxu0 0.0
    %2859 = vmatpush1.msra.mxu0 0.0
    %2860 = vmatprep.subr.mxu0 0.0
    %2861 = vmatpush1.msra.mxu0 0.0
    %2862 = vmatprep.mubr.f32.mxu0 0.0
    %2863 = vmatmul.mubr.f32.gmra.mrb[0].mxu0 %v2796
    %v2864 = vpop.f32.mrb[0].mxu0
    %v2865 = vadd.f32 0.0, %v2864
    %v2866 = vpop.f32.mrb[0].mxu0
    %2867 = vdwg.mxu0
    %v2868 = vadd.f32 %v2714, %v2865
    %s2869 = scalar_lea.vmem %s4, 32
    %v2870 = vld [vmem:[%s2869] sm:$0xff]
    %v2872 = vsel %vm258, %v2870, 0
    %2874 = vmatprep.subr.mxu0 0.0
    %2875 = vmatpush1.msra.mxu0 %v2253
    %2876 = vmatprep.subr.mxu0 0.0
    %2877 = vmatpush1.msra.mxu0 %v2254
    %2878 = vmatprep.subr.mxu0 0.0
    %2879 = vmatpush1.msra.mxu0 %v2255
    %2880 = vmatprep.subr.mxu0 0.0
    %2881 = vmatpush1.msra.mxu0 %v2256
    %2882 = vmatprep.subr.mxu0 0.0
    %2883 = vmatpush1.msra.mxu0 0.0
    %2884 = vmatprep.subr.mxu0 0.0
    %2885 = vmatpush1.msra.mxu0 0.0
    %2886 = vmatprep.subr.mxu0 0.0
    %2887 = vmatpush1.msra.mxu0 0.0
    %2888 = vmatprep.subr.mxu0 0.0
    %2889 = vmatpush1.msra.mxu0 0.0
    %2890 = vmatprep.subr.mxu0 0.0
    %2891 = vmatpush1.msra.mxu0 0.0
    %2892 = vmatprep.subr.mxu0 0.0
    %2893 = vmatpush1.msra.mxu0 0.0
    %2894 = vmatprep.subr.mxu0 0.0
    %2895 = vmatpush1.msra.mxu0 0.0
    %2896 = vmatprep.subr.mxu0 0.0
    %2897 = vmatpush1.msra.mxu0 0.0
    %2898 = vmatprep.subr.mxu0 0.0
    %2899 = vmatpush1.msra.mxu0 0.0
    %2900 = vmatprep.subr.mxu0 0.0
    %2901 = vmatpush1.msra.mxu0 0.0
    %2902 = vmatprep.subr.mxu0 0.0
    %2903 = vmatpush1.msra.mxu0 0.0
    %2904 = vmatprep.subr.mxu0 0.0
    %2905 = vmatpush1.msra.mxu0 0.0
    %2906 = vmatprep.subr.mxu0 0.0
    %2907 = vmatpush1.msra.mxu0 0.0
    %2908 = vmatprep.subr.mxu0 0.0
    %2909 = vmatpush1.msra.mxu0 0.0
    %2910 = vmatprep.subr.mxu0 0.0
    %2911 = vmatpush1.msra.mxu0 0.0
    %2912 = vmatprep.subr.mxu0 0.0
    %2913 = vmatpush1.msra.mxu0 0.0
    %2914 = vmatprep.subr.mxu0 0.0
    %2915 = vmatpush1.msra.mxu0 0.0
    %2916 = vmatprep.subr.mxu0 0.0
    %2917 = vmatpush1.msra.mxu0 0.0
    %2918 = vmatprep.subr.mxu0 0.0
    %2919 = vmatpush1.msra.mxu0 0.0
    %2920 = vmatprep.subr.mxu0 0.0
    %2921 = vmatpush1.msra.mxu0 0.0
    %2922 = vmatprep.subr.mxu0 0.0
    %2923 = vmatpush1.msra.mxu0 0.0
    %2924 = vmatprep.subr.mxu0 0.0
    %2925 = vmatpush1.msra.mxu0 0.0
    %2926 = vmatprep.subr.mxu0 0.0
    %2927 = vmatpush1.msra.mxu0 0.0
    %2928 = vmatprep.subr.mxu0 0.0
    %2929 = vmatpush1.msra.mxu0 0.0
    %2930 = vmatprep.subr.mxu0 0.0
    %2931 = vmatpush1.msra.mxu0 0.0
    %2932 = vmatprep.subr.mxu0 0.0
    %2933 = vmatpush1.msra.mxu0 0.0
    %2934 = vmatprep.subr.mxu0 0.0
    %2935 = vmatpush1.msra.mxu0 0.0
    %2936 = vmatprep.subr.mxu0 0.0
    %2937 = vmatpush1.msra.mxu0 0.0
    %2938 = vmatprep.mubr.f32.mxu0 0.0
    %2939 = vmatmul.mubr.f32.gmra.mrb[0].mxu0 %v2872
    %v2940 = vpop.f32.mrb[0].mxu0
    %v2941 = vadd.f32 0.0, %v2940
    %v2942 = vpop.f32.mrb[0].mxu0
    %2943 = vdwg.mxu0
    %s2944 = scalar_lea.vmem %s5, 128
    %v2945 = vld [vmem:[%s2944] sm:$0xff]
    %v2946 = vld [vmem:[%s2944 + $0x8] sm:$0xff]
    %v2947 = vld [vmem:[%s2944 + $0x10] sm:$0xff]
    %v2948 = vld [vmem:[%s2944 + $0x18] sm:$0xff]
    %v2950 = vsel %vm258, %v2941, 0
    %2952 = vmatprep.subr.mxu0 0.0
    %2953 = vmatpush1.msra.mxu0 %v2945
    %2954 = vmatprep.subr.mxu0 0.0
    %2955 = vmatpush1.msra.mxu0 %v2946
    %2956 = vmatprep.subr.mxu0 0.0
    %2957 = vmatpush1.msra.mxu0 %v2947
    %2958 = vmatprep.subr.mxu0 0.0
    %2959 = vmatpush1.msra.mxu0 %v2948
    %2960 = vmatprep.subr.mxu0 0.0
    %2961 = vmatpush1.msra.mxu0 0.0
    %2962 = vmatprep.subr.mxu0 0.0
    %2963 = vmatpush1.msra.mxu0 0.0
    %2964 = vmatprep.subr.mxu0 0.0
    %2965 = vmatpush1.msra.mxu0 0.0
    %2966 = vmatprep.subr.mxu0 0.0
    %2967 = vmatpush1.msra.mxu0 0.0
    %2968 = vmatprep.subr.mxu0 0.0
    %2969 = vmatpush1.msra.mxu0 0.0
    %2970 = vmatprep.subr.mxu0 0.0
    %2971 = vmatpush1.msra.mxu0 0.0
    %2972 = vmatprep.subr.mxu0 0.0
    %2973 = vmatpush1.msra.mxu0 0.0
    %2974 = vmatprep.subr.mxu0 0.0
    %2975 = vmatpush1.msra.mxu0 0.0
    %2976 = vmatprep.subr.mxu0 0.0
    %2977 = vmatpush1.msra.mxu0 0.0
    %2978 = vmatprep.subr.mxu0 0.0
    %2979 = vmatpush1.msra.mxu0 0.0
    %2980 = vmatprep.subr.mxu0 0.0
    %2981 = vmatpush1.msra.mxu0 0.0
    %2982 = vmatprep.subr.mxu0 0.0
    %2983 = vmatpush1.msra.mxu0 0.0
    %2984 = vmatprep.subr.mxu0 0.0
    %2985 = vmatpush1.msra.mxu0 0.0
    %2986 = vmatprep.subr.mxu0 0.0
    %2987 = vmatpush1.msra.mxu0 0.0
    %2988 = vmatprep.subr.mxu0 0.0
    %2989 = vmatpush1.msra.mxu0 0.0
    %2990 = vmatprep.subr.mxu0 0.0
    %2991 = vmatpush1.msra.mxu0 0.0
    %2992 = vmatprep.subr.mxu0 0.0
    %2993 = vmatpush1.msra.mxu0 0.0
    %2994 = vmatprep.subr.mxu0 0.0
    %2995 = vmatpush1.msra.mxu0 0.0
    %2996 = vmatprep.subr.mxu0 0.0
    %2997 = vmatpush1.msra.mxu0 0.0
    %2998 = vmatprep.subr.mxu0 0.0
    %2999 = vmatpush1.msra.mxu0 0.0
    %3000 = vmatprep.subr.mxu0 0.0
    %3001 = vmatpush1.msra.mxu0 0.0
    %3002 = vmatprep.subr.mxu0 0.0
    %3003 = vmatpush1.msra.mxu0 0.0
    %3004 = vmatprep.subr.mxu0 0.0
    %3005 = vmatpush1.msra.mxu0 0.0
    %3006 = vmatprep.subr.mxu0 0.0
    %3007 = vmatpush1.msra.mxu0 0.0
    %3008 = vmatprep.subr.mxu0 0.0
    %3009 = vmatpush1.msra.mxu0 0.0
    %3010 = vmatprep.subr.mxu0 0.0
    %3011 = vmatpush1.msra.mxu0 0.0
    %3012 = vmatprep.subr.mxu0 0.0
    %3013 = vmatpush1.msra.mxu0 0.0
    %3014 = vmatprep.subr.mxu0 0.0
    %3015 = vmatpush1.msra.mxu0 0.0
    %3016 = vmatprep.mubr.f32.mxu0 0.0
    %3017 = vmatmul.mubr.f32.gmra.mrb[0].mxu0 %v2950
    %v3018 = vpop.f32.mrb[0].mxu0
    %v3019 = vadd.f32 0.0, %v3018
    %v3020 = vpop.f32.mrb[0].mxu0
    %3021 = vdwg.mxu0
    %v3022 = vadd.f32 %v2868, %v3019
    %s3023 = scalar_lea.vmem %s4, 40
    %v3024 = vld [vmem:[%s3023] sm:$0xff]
    %v3026 = vsel %vm258, %v3024, 0
    %3028 = vmatprep.subr.mxu0 0.0
    %3029 = vmatpush1.msra.mxu0 %v2253
    %3030 = vmatprep.subr.mxu0 0.0
    %3031 = vmatpush1.msra.mxu0 %v2254
    %3032 = vmatprep.subr.mxu0 0.0
    %3033 = vmatpush1.msra.mxu0 %v2255
    %3034 = vmatprep.subr.mxu0 0.0
    %3035 = vmatpush1.msra.mxu0 %v2256
    %3036 = vmatprep.subr.mxu0 0.0
    %3037 = vmatpush1.msra.mxu0 0.0
    %3038 = vmatprep.subr.mxu0 0.0
    %3039 = vmatpush1.msra.mxu0 0.0
    %3040 = vmatprep.subr.mxu0 0.0
    %3041 = vmatpush1.msra.mxu0 0.0
    %3042 = vmatprep.subr.mxu0 0.0
    %3043 = vmatpush1.msra.mxu0 0.0
    %3044 = vmatprep.subr.mxu0 0.0
    %3045 = vmatpush1.msra.mxu0 0.0
    %3046 = vmatprep.subr.mxu0 0.0
    %3047 = vmatpush1.msra.mxu0 0.0
    %3048 = vmatprep.subr.mxu0 0.0
    %3049 = vmatpush1.msra.mxu0 0.0
    %3050 = vmatprep.subr.mxu0 0.0
    %3051 = vmatpush1.msra.mxu0 0.0
    %3052 = vmatprep.subr.mxu0 0.0
    %3053 = vmatpush1.msra.mxu0 0.0
    %3054 = vmatprep.subr.mxu0 0.0
    %3055 = vmatpush1.msra.mxu0 0.0
    %3056 = vmatprep.subr.mxu0 0.0
    %3057 = vmatpush1.msra.mxu0 0.0
    %3058 = vmatprep.subr.mxu0 0.0
    %3059 = vmatpush1.msra.mxu0 0.0
    %3060 = vmatprep.subr.mxu0 0.0
    %3061 = vmatpush1.msra.mxu0 0.0
    %3062 = vmatprep.subr.mxu0 0.0
    %3063 = vmatpush1.msra.mxu0 0.0
    %3064 = vmatprep.subr.mxu0 0.0
    %3065 = vmatpush1.msra.mxu0 0.0
    %3066 = vmatprep.subr.mxu0 0.0
    %3067 = vmatpush1.msra.mxu0 0.0
    %3068 = vmatprep.subr.mxu0 0.0
    %3069 = vmatpush1.msra.mxu0 0.0
    %3070 = vmatprep.subr.mxu0 0.0
    %3071 = vmatpush1.msra.mxu0 0.0
    %3072 = vmatprep.subr.mxu0 0.0
    %3073 = vmatpush1.msra.mxu0 0.0
    %3074 = vmatprep.subr.mxu0 0.0
    %3075 = vmatpush1.msra.mxu0 0.0
    %3076 = vmatprep.subr.mxu0 0.0
    %3077 = vmatpush1.msra.mxu0 0.0
    %3078 = vmatprep.subr.mxu0 0.0
    %3079 = vmatpush1.msra.mxu0 0.0
    %3080 = vmatprep.subr.mxu0 0.0
    %3081 = vmatpush1.msra.mxu0 0.0
    %3082 = vmatprep.subr.mxu0 0.0
    %3083 = vmatpush1.msra.mxu0 0.0
    %3084 = vmatprep.subr.mxu0 0.0
    %3085 = vmatpush1.msra.mxu0 0.0
    %3086 = vmatprep.subr.mxu0 0.0
    %3087 = vmatpush1.msra.mxu0 0.0
    %3088 = vmatprep.subr.mxu0 0.0
    %3089 = vmatpush1.msra.mxu0 0.0
    %3090 = vmatprep.subr.mxu0 0.0
    %3091 = vmatpush1.msra.mxu0 0.0
    %3092 = vmatprep.mubr.f32.mxu0 0.0
    %3093 = vmatmul.mubr.f32.gmra.mrb[0].mxu0 %v3026
    %v3094 = vpop.f32.mrb[0].mxu0
    %v3095 = vadd.f32 0.0, %v3094
    %v3096 = vpop.f32.mrb[0].mxu0
    %3097 = vdwg.mxu0
    %s3098 = scalar_lea.vmem %s5, 160
    %v3099 = vld [vmem:[%s3098] sm:$0xff]
    %v3100 = vld [vmem:[%s3098 + $0x8] sm:$0xff]
    %v3101 = vld [vmem:[%s3098 + $0x10] sm:$0xff]
    %v3102 = vld [vmem:[%s3098 + $0x18] sm:$0xff]
    %v3104 = vsel %vm258, %v3095, 0
    %3106 = vmatprep.subr.mxu0 0.0
    %3107 = vmatpush1.msra.mxu0 %v3099
    %3108 = vmatprep.subr.mxu0 0.0
    %3109 = vmatpush1.msra.mxu0 %v3100
    %3110 = vmatprep.subr.mxu0 0.0
    %3111 = vmatpush1.msra.mxu0 %v3101
    %3112 = vmatprep.subr.mxu0 0.0
    %3113 = vmatpush1.msra.mxu0 %v3102
    %3114 = vmatprep.subr.mxu0 0.0
    %3115 = vmatpush1.msra.mxu0 0.0
    %3116 = vmatprep.subr.mxu0 0.0
    %3117 = vmatpush1.msra.mxu0 0.0
    %3118 = vmatprep.subr.mxu0 0.0
    %3119 = vmatpush1.msra.mxu0 0.0
    %3120 = vmatprep.subr.mxu0 0.0
    %3121 = vmatpush1.msra.mxu0 0.0
    %3122 = vmatprep.subr.mxu0 0.0
    %3123 = vmatpush1.msra.mxu0 0.0
    %3124 = vmatprep.subr.mxu0 0.0
    %3125 = vmatpush1.msra.mxu0 0.0
    %3126 = vmatprep.subr.mxu0 0.0
    %3127 = vmatpush1.msra.mxu0 0.0
    %3128 = vmatprep.subr.mxu0 0.0
    %3129 = vmatpush1.msra.mxu0 0.0
    %3130 = vmatprep.subr.mxu0 0.0
    %3131 = vmatpush1.msra.mxu0 0.0
    %3132 = vmatprep.subr.mxu0 0.0
    %3133 = vmatpush1.msra.mxu0 0.0
    %3134 = vmatprep.subr.mxu0 0.0
    %3135 = vmatpush1.msra.mxu0 0.0
    %3136 = vmatprep.subr.mxu0 0.0
    %3137 = vmatpush1.msra.mxu0 0.0
    %3138 = vmatprep.subr.mxu0 0.0
    %3139 = vmatpush1.msra.mxu0 0.0
    %3140 = vmatprep.subr.mxu0 0.0
    %3141 = vmatpush1.msra.mxu0 0.0
    %3142 = vmatprep.subr.mxu0 0.0
    %3143 = vmatpush1.msra.mxu0 0.0
    %3144 = vmatprep.subr.mxu0 0.0
    %3145 = vmatpush1.msra.mxu0 0.0
    %3146 = vmatprep.subr.mxu0 0.0
    %3147 = vmatpush1.msra.mxu0 0.0
    %3148 = vmatprep.subr.mxu0 0.0
    %3149 = vmatpush1.msra.mxu0 0.0
    %3150 = vmatprep.subr.mxu0 0.0
    %3151 = vmatpush1.msra.mxu0 0.0
    %3152 = vmatprep.subr.mxu0 0.0
    %3153 = vmatpush1.msra.mxu0 0.0
    %3154 = vmatprep.subr.mxu0 0.0
    %3155 = vmatpush1.msra.mxu0 0.0
    %3156 = vmatprep.subr.mxu0 0.0
    %3157 = vmatpush1.msra.mxu0 0.0
    %3158 = vmatprep.subr.mxu0 0.0
    %3159 = vmatpush1.msra.mxu0 0.0
    %3160 = vmatprep.subr.mxu0 0.0
    %3161 = vmatpush1.msra.mxu0 0.0
    %3162 = vmatprep.subr.mxu0 0.0
    %3163 = vmatpush1.msra.mxu0 0.0
    %3164 = vmatprep.subr.mxu0 0.0
    %3165 = vmatpush1.msra.mxu0 0.0
    %3166 = vmatprep.subr.mxu0 0.0
    %3167 = vmatpush1.msra.mxu0 0.0
    %3168 = vmatprep.subr.mxu0 0.0
    %3169 = vmatpush1.msra.mxu0 0.0
    %3170 = vmatprep.mubr.f32.mxu0 0.0
    %3171 = vmatmul.mubr.f32.gmra.mrb[0].mxu0 %v3104
    %v3172 = vpop.f32.mrb[0].mxu0
    %v3173 = vadd.f32 0.0, %v3172
    %v3174 = vpop.f32.mrb[0].mxu0
    %3175 = vdwg.mxu0
    %v3176 = vadd.f32 %v3022, %v3173
    %s3177 = scalar_lea.vmem %s4, 48
    %v3178 = vld [vmem:[%s3177] sm:$0xff]
    %v3180 = vsel %vm258, %v3178, 0
    %3182 = vmatprep.subr.mxu0 0.0
    %3183 = vmatpush1.msra.mxu0 %v2253
    %3184 = vmatprep.subr.mxu0 0.0
    %3185 = vmatpush1.msra.mxu0 %v2254
    %3186 = vmatprep.subr.mxu0 0.0
    %3187 = vmatpush1.msra.mxu0 %v2255
    %3188 = vmatprep.subr.mxu0 0.0
    %3189 = vmatpush1.msra.mxu0 %v2256
    %3190 = vmatprep.subr.mxu0 0.0
    %3191 = vmatpush1.msra.mxu0 0.0
    %3192 = vmatprep.subr.mxu0 0.0
    %3193 = vmatpush1.msra.mxu0 0.0
    %3194 = vmatprep.subr.mxu0 0.0
    %3195 = vmatpush1.msra.mxu0 0.0
    %3196 = vmatprep.subr.mxu0 0.0
    %3197 = vmatpush1.msra.mxu0 0.0
    %3198 = vmatprep.subr.mxu0 0.0
    %3199 = vmatpush1.msra.mxu0 0.0
    %3200 = vmatprep.subr.mxu0 0.0
    %3201 = vmatpush1.msra.mxu0 0.0
    %3202 = vmatprep.subr.mxu0 0.0
    %3203 = vmatpush1.msra.mxu0 0.0
    %3204 = vmatprep.subr.mxu0 0.0
    %3205 = vmatpush1.msra.mxu0 0.0
    %3206 = vmatprep.subr.mxu0 0.0
    %3207 = vmatpush1.msra.mxu0 0.0
    %3208 = vmatprep.subr.mxu0 0.0
    %3209 = vmatpush1.msra.mxu0 0.0
    %3210 = vmatprep.subr.mxu0 0.0
    %3211 = vmatpush1.msra.mxu0 0.0
    %3212 = vmatprep.subr.mxu0 0.0
    %3213 = vmatpush1.msra.mxu0 0.0
    %3214 = vmatprep.subr.mxu0 0.0
    %3215 = vmatpush1.msra.mxu0 0.0
    %3216 = vmatprep.subr.mxu0 0.0
    %3217 = vmatpush1.msra.mxu0 0.0
    %3218 = vmatprep.subr.mxu0 0.0
    %3219 = vmatpush1.msra.mxu0 0.0
    %3220 = vmatprep.subr.mxu0 0.0
    %3221 = vmatpush1.msra.mxu0 0.0
    %3222 = vmatprep.subr.mxu0 0.0
    %3223 = vmatpush1.msra.mxu0 0.0
    %3224 = vmatprep.subr.mxu0 0.0
    %3225 = vmatpush1.msra.mxu0 0.0
    %3226 = vmatprep.subr.mxu0 0.0
    %3227 = vmatpush1.msra.mxu0 0.0
    %3228 = vmatprep.subr.mxu0 0.0
    %3229 = vmatpush1.msra.mxu0 0.0
    %3230 = vmatprep.subr.mxu0 0.0
    %3231 = vmatpush1.msra.mxu0 0.0
    %3232 = vmatprep.subr.mxu0 0.0
    %3233 = vmatpush1.msra.mxu0 0.0
    %3234 = vmatprep.subr.mxu0 0.0
    %3235 = vmatpush1.msra.mxu0 0.0
    %3236 = vmatprep.subr.mxu0 0.0
    %3237 = vmatpush1.msra.mxu0 0.0
    %3238 = vmatprep.subr.mxu0 0.0
    %3239 = vmatpush1.msra.mxu0 0.0
    %3240 = vmatprep.subr.mxu0 0.0
    %3241 = vmatpush1.msra.mxu0 0.0
    %3242 = vmatprep.subr.mxu0 0.0
    %3243 = vmatpush1.msra.mxu0 0.0
    %3244 = vmatprep.subr.mxu0 0.0
    %3245 = vmatpush1.msra.mxu0 0.0
    %3246 = vmatprep.mubr.f32.mxu0 0.0
    %3247 = vmatmul.mubr.f32.gmra.mrb[0].mxu0 %v3180
    %v3248 = vpop.f32.mrb[0].mxu0
    %v3249 = vadd.f32 0.0, %v3248
    %v3250 = vpop.f32.mrb[0].mxu0
    %3251 = vdwg.mxu0
    %s3252 = scalar_lea.vmem %s5, 192
    %v3253 = vld [vmem:[%s3252] sm:$0xff]
    %v3254 = vld [vmem:[%s3252 + $0x8] sm:$0xff]
    %v3255 = vld [vmem:[%s3252 + $0x10] sm:$0xff]
    %v3256 = vld [vmem:[%s3252 + $0x18] sm:$0xff]
    %v3258 = vsel %vm258, %v3249, 0
    %3260 = vmatprep.subr.mxu0 0.0
    %3261 = vmatpush1.msra.mxu0 %v3253
    %3262 = vmatprep.subr.mxu0 0.0
    %3263 = vmatpush1.msra.mxu0 %v3254
    %3264 = vmatprep.subr.mxu0 0.0
    %3265 = vmatpush1.msra.mxu0 %v3255
    %3266 = vmatprep.subr.mxu0 0.0
    %3267 = vmatpush1.msra.mxu0 %v3256
    %3268 = vmatprep.subr.mxu0 0.0
    %3269 = vmatpush1.msra.mxu0 0.0
    %3270 = vmatprep.subr.mxu0 0.0
    %3271 = vmatpush1.msra.mxu0 0.0
    %3272 = vmatprep.subr.mxu0 0.0
    %3273 = vmatpush1.msra.mxu0 0.0
    %3274 = vmatprep.subr.mxu0 0.0
    %3275 = vmatpush1.msra.mxu0 0.0
    %3276 = vmatprep.subr.mxu0 0.0
    %3277 = vmatpush1.msra.mxu0 0.0
    %3278 = vmatprep.subr.mxu0 0.0
    %3279 = vmatpush1.msra.mxu0 0.0
    %3280 = vmatprep.subr.mxu0 0.0
    %3281 = vmatpush1.msra.mxu0 0.0
    %3282 = vmatprep.subr.mxu0 0.0
    %3283 = vmatpush1.msra.mxu0 0.0
    %3284 = vmatprep.subr.mxu0 0.0
    %3285 = vmatpush1.msra.mxu0 0.0
    %3286 = vmatprep.subr.mxu0 0.0
    %3287 = vmatpush1.msra.mxu0 0.0
    %3288 = vmatprep.subr.mxu0 0.0
    %3289 = vmatpush1.msra.mxu0 0.0
    %3290 = vmatprep.subr.mxu0 0.0
    %3291 = vmatpush1.msra.mxu0 0.0
    %3292 = vmatprep.subr.mxu0 0.0
    %3293 = vmatpush1.msra.mxu0 0.0
    %3294 = vmatprep.subr.mxu0 0.0
    %3295 = vmatpush1.msra.mxu0 0.0
    %3296 = vmatprep.subr.mxu0 0.0
    %3297 = vmatpush1.msra.mxu0 0.0
    %3298 = vmatprep.subr.mxu0 0.0
    %3299 = vmatpush1.msra.mxu0 0.0
    %3300 = vmatprep.subr.mxu0 0.0
    %3301 = vmatpush1.msra.mxu0 0.0
    %3302 = vmatprep.subr.mxu0 0.0
    %3303 = vmatpush1.msra.mxu0 0.0
    %3304 = vmatprep.subr.mxu0 0.0
    %3305 = vmatpush1.msra.mxu0 0.0
    %3306 = vmatprep.subr.mxu0 0.0
    %3307 = vmatpush1.msra.mxu0 0.0
    %3308 = vmatprep.subr.mxu0 0.0
    %3309 = vmatpush1.msra.mxu0 0.0
    %3310 = vmatprep.subr.mxu0 0.0
    %3311 = vmatpush1.msra.mxu0 0.0
    %3312 = vmatprep.subr.mxu0 0.0
    %3313 = vmatpush1.msra.mxu0 0.0
    %3314 = vmatprep.subr.mxu0 0.0
    %3315 = vmatpush1.msra.mxu0 0.0
    %3316 = vmatprep.subr.mxu0 0.0
    %3317 = vmatpush1.msra.mxu0 0.0
    %3318 = vmatprep.subr.mxu0 0.0
    %3319 = vmatpush1.msra.mxu0 0.0
    %3320 = vmatprep.subr.mxu0 0.0
    %3321 = vmatpush1.msra.mxu0 0.0
    %3322 = vmatprep.subr.mxu0 0.0
    %3323 = vmatpush1.msra.mxu0 0.0
    %3324 = vmatprep.mubr.f32.mxu0 0.0
    %3325 = vmatmul.mubr.f32.gmra.mrb[0].mxu0 %v3258
    %v3326 = vpop.f32.mrb[0].mxu0
    %v3327 = vadd.f32 0.0, %v3326
    %v3328 = vpop.f32.mrb[0].mxu0
    %3329 = vdwg.mxu0
    %v3330 = vadd.f32 %v3176, %v3327
    %s3331 = scalar_lea.vmem %s4, 56
    %v3332 = vld [vmem:[%s3331] sm:$0xff]
    %v3334 = vsel %vm258, %v3332, 0
    %3336 = vmatprep.subr.mxu0 0.0
    %3337 = vmatpush1.msra.mxu0 %v2253
    %3338 = vmatprep.subr.mxu0 0.0
    %3339 = vmatpush1.msra.mxu0 %v2254
    %3340 = vmatprep.subr.mxu0 0.0
    %3341 = vmatpush1.msra.mxu0 %v2255
    %3342 = vmatprep.subr.mxu0 0.0
    %3343 = vmatpush1.msra.mxu0 %v2256
    %3344 = vmatprep.subr.mxu0 0.0
    %3345 = vmatpush1.msra.mxu0 0.0
    %3346 = vmatprep.subr.mxu0 0.0
    %3347 = vmatpush1.msra.mxu0 0.0
    %3348 = vmatprep.subr.mxu0 0.0
    %3349 = vmatpush1.msra.mxu0 0.0
    %3350 = vmatprep.subr.mxu0 0.0
    %3351 = vmatpush1.msra.mxu0 0.0
    %3352 = vmatprep.subr.mxu0 0.0
    %3353 = vmatpush1.msra.mxu0 0.0
    %3354 = vmatprep.subr.mxu0 0.0
    %3355 = vmatpush1.msra.mxu0 0.0
    %3356 = vmatprep.subr.mxu0 0.0
    %3357 = vmatpush1.msra.mxu0 0.0
    %3358 = vmatprep.subr.mxu0 0.0
    %3359 = vmatpush1.msra.mxu0 0.0
    %3360 = vmatprep.subr.mxu0 0.0
    %3361 = vmatpush1.msra.mxu0 0.0
    %3362 = vmatprep.subr.mxu0 0.0
    %3363 = vmatpush1.msra.mxu0 0.0
    %3364 = vmatprep.subr.mxu0 0.0
    %3365 = vmatpush1.msra.mxu0 0.0
    %3366 = vmatprep.subr.mxu0 0.0
    %3367 = vmatpush1.msra.mxu0 0.0
    %3368 = vmatprep.subr.mxu0 0.0
    %3369 = vmatpush1.msra.mxu0 0.0
    %3370 = vmatprep.subr.mxu0 0.0
    %3371 = vmatpush1.msra.mxu0 0.0
    %3372 = vmatprep.subr.mxu0 0.0
    %3373 = vmatpush1.msra.mxu0 0.0
    %3374 = vmatprep.subr.mxu0 0.0
    %3375 = vmatpush1.msra.mxu0 0.0
    %3376 = vmatprep.subr.mxu0 0.0
    %3377 = vmatpush1.msra.mxu0 0.0
    %3378 = vmatprep.subr.mxu0 0.0
    %3379 = vmatpush1.msra.mxu0 0.0
    %3380 = vmatprep.subr.mxu0 0.0
    %3381 = vmatpush1.msra.mxu0 0.0
    %3382 = vmatprep.subr.mxu0 0.0
    %3383 = vmatpush1.msra.mxu0 0.0
    %3384 = vmatprep.subr.mxu0 0.0
    %3385 = vmatpush1.msra.mxu0 0.0
    %3386 = vmatprep.subr.mxu0 0.0
    %3387 = vmatpush1.msra.mxu0 0.0
    %3388 = vmatprep.subr.mxu0 0.0
    %3389 = vmatpush1.msra.mxu0 0.0
    %3390 = vmatprep.subr.mxu0 0.0
    %3391 = vmatpush1.msra.mxu0 0.0
    %3392 = vmatprep.subr.mxu0 0.0
    %3393 = vmatpush1.msra.mxu0 0.0
    %3394 = vmatprep.subr.mxu0 0.0
    %3395 = vmatpush1.msra.mxu0 0.0
    %3396 = vmatprep.subr.mxu0 0.0
    %3397 = vmatpush1.msra.mxu0 0.0
    %3398 = vmatprep.subr.mxu0 0.0
    %3399 = vmatpush1.msra.mxu0 0.0
    %3400 = vmatprep.mubr.f32.mxu0 0.0
    %3401 = vmatmul.mubr.f32.gmra.mrb[0].mxu0 %v3334
    %v3402 = vpop.f32.mrb[0].mxu0
    %v3403 = vadd.f32 0.0, %v3402
    %v3404 = vpop.f32.mrb[0].mxu0
    %3405 = vdwg.mxu0
    %s3406 = scalar_lea.vmem %s5, 224
    %v3407 = vld [vmem:[%s3406] sm:$0xff]
    %v3408 = vld [vmem:[%s3406 + $0x8] sm:$0xff]
    %v3409 = vld [vmem:[%s3406 + $0x10] sm:$0xff]
    %v3410 = vld [vmem:[%s3406 + $0x18] sm:$0xff]
    %v3412 = vsel %vm258, %v3403, 0
    %3414 = vmatprep.subr.mxu0 0.0
    %3415 = vmatpush1.msra.mxu0 %v3407
    %3416 = vmatprep.subr.mxu0 0.0
    %3417 = vmatpush1.msra.mxu0 %v3408
    %3418 = vmatprep.subr.mxu0 0.0
    %3419 = vmatpush1.msra.mxu0 %v3409
    %3420 = vmatprep.subr.mxu0 0.0
    %3421 = vmatpush1.msra.mxu0 %v3410
    %3422 = vmatprep.subr.mxu0 0.0
    %3423 = vmatpush1.msra.mxu0 0.0
    %3424 = vmatprep.subr.mxu0 0.0
    %3425 = vmatpush1.msra.mxu0 0.0
    %3426 = vmatprep.subr.mxu0 0.0
    %3427 = vmatpush1.msra.mxu0 0.0
    %3428 = vmatprep.subr.mxu0 0.0
    %3429 = vmatpush1.msra.mxu0 0.0
    %3430 = vmatprep.subr.mxu0 0.0
    %3431 = vmatpush1.msra.mxu0 0.0
    %3432 = vmatprep.subr.mxu0 0.0
    %3433 = vmatpush1.msra.mxu0 0.0
    %3434 = vmatprep.subr.mxu0 0.0
    %3435 = vmatpush1.msra.mxu0 0.0
    %3436 = vmatprep.subr.mxu0 0.0
    %3437 = vmatpush1.msra.mxu0 0.0
    %3438 = vmatprep.subr.mxu0 0.0
    %3439 = vmatpush1.msra.mxu0 0.0
    %3440 = vmatprep.subr.mxu0 0.0
    %3441 = vmatpush1.msra.mxu0 0.0
    %3442 = vmatprep.subr.mxu0 0.0
    %3443 = vmatpush1.msra.mxu0 0.0
    %3444 = vmatprep.subr.mxu0 0.0
    %3445 = vmatpush1.msra.mxu0 0.0
    %3446 = vmatprep.subr.mxu0 0.0
    %3447 = vmatpush1.msra.mxu0 0.0
    %3448 = vmatprep.subr.mxu0 0.0
    %3449 = vmatpush1.msra.mxu0 0.0
    %3450 = vmatprep.subr.mxu0 0.0
    %3451 = vmatpush1.msra.mxu0 0.0
    %3452 = vmatprep.subr.mxu0 0.0
    %3453 = vmatpush1.msra.mxu0 0.0
    %3454 = vmatprep.subr.mxu0 0.0
    %3455 = vmatpush1.msra.mxu0 0.0
    %3456 = vmatprep.subr.mxu0 0.0
    %3457 = vmatpush1.msra.mxu0 0.0
    %3458 = vmatprep.subr.mxu0 0.0
    %3459 = vmatpush1.msra.mxu0 0.0
    %3460 = vmatprep.subr.mxu0 0.0
    %3461 = vmatpush1.msra.mxu0 0.0
    %3462 = vmatprep.subr.mxu0 0.0
    %3463 = vmatpush1.msra.mxu0 0.0
    %3464 = vmatprep.subr.mxu0 0.0
    %3465 = vmatpush1.msra.mxu0 0.0
    %3466 = vmatprep.subr.mxu0 0.0
    %3467 = vmatpush1.msra.mxu0 0.0
    %3468 = vmatprep.subr.mxu0 0.0
    %3469 = vmatpush1.msra.mxu0 0.0
    %3470 = vmatprep.subr.mxu0 0.0
    %3471 = vmatpush1.msra.mxu0 0.0
    %3472 = vmatprep.subr.mxu0 0.0
    %3473 = vmatpush1.msra.mxu0 0.0
    %3474 = vmatprep.subr.mxu0 0.0
    %3475 = vmatpush1.msra.mxu0 0.0
    %3476 = vmatprep.subr.mxu0 0.0
    %3477 = vmatpush1.msra.mxu0 0.0
    %3478 = vmatprep.mubr.f32.mxu0 0.0
    %3479 = vmatmul.mubr.f32.gmra.mrb[0].mxu0 %v3412
    %v3480 = vpop.f32.mrb[0].mxu0
    %v3481 = vadd.f32 0.0, %v3480
    %v3482 = vpop.f32.mrb[0].mxu0
    %3483 = vdwg.mxu0
    %v3484 = vadd.f32 %v3330, %v3481
    %s3485 = scalar_lea.vmem %s4, 64
    %v3486 = vld [vmem:[%s3485] sm:$0xff]
    %v3488 = vsel %vm258, %v3486, 0
    %3490 = vmatprep.subr.mxu0 0.0
    %3491 = vmatpush1.msra.mxu0 %v2253
    %3492 = vmatprep.subr.mxu0 0.0
    %3493 = vmatpush1.msra.mxu0 %v2254
    %3494 = vmatprep.subr.mxu0 0.0
    %3495 = vmatpush1.msra.mxu0 %v2255
    %3496 = vmatprep.subr.mxu0 0.0
    %3497 = vmatpush1.msra.mxu0 %v2256
    %3498 = vmatprep.subr.mxu0 0.0
    %3499 = vmatpush1.msra.mxu0 0.0
    %3500 = vmatprep.subr.mxu0 0.0
    %3501 = vmatpush1.msra.mxu0 0.0
    %3502 = vmatprep.subr.mxu0 0.0
    %3503 = vmatpush1.msra.mxu0 0.0
    %3504 = vmatprep.subr.mxu0 0.0
    %3505 = vmatpush1.msra.mxu0 0.0
    %3506 = vmatprep.subr.mxu0 0.0
    %3507 = vmatpush1.msra.mxu0 0.0
    %3508 = vmatprep.subr.mxu0 0.0
    %3509 = vmatpush1.msra.mxu0 0.0
    %3510 = vmatprep.subr.mxu0 0.0
    %3511 = vmatpush1.msra.mxu0 0.0
    %3512 = vmatprep.subr.mxu0 0.0
    %3513 = vmatpush1.msra.mxu0 0.0
    %3514 = vmatprep.subr.mxu0 0.0
    %3515 = vmatpush1.msra.mxu0 0.0
    %3516 = vmatprep.subr.mxu0 0.0
    %3517 = vmatpush1.msra.mxu0 0.0
    %3518 = vmatprep.subr.mxu0 0.0
    %3519 = vmatpush1.msra.mxu0 0.0
    %3520 = vmatprep.subr.mxu0 0.0
    %3521 = vmatpush1.msra.mxu0 0.0
    %3522 = vmatprep.subr.mxu0 0.0
    %3523 = vmatpush1.msra.mxu0 0.0
    %3524 = vmatprep.subr.mxu0 0.0
    %3525 = vmatpush1.msra.mxu0 0.0
    %3526 = vmatprep.subr.mxu0 0.0
    %3527 = vmatpush1.msra.mxu0 0.0
    %3528 = vmatprep.subr.mxu0 0.0
    %3529 = vmatpush1.msra.mxu0 0.0
    %3530 = vmatprep.subr.mxu0 0.0
    %3531 = vmatpush1.msra.mxu0 0.0
    %3532 = vmatprep.subr.mxu0 0.0
    %3533 = vmatpush1.msra.mxu0 0.0
    %3534 = vmatprep.subr.mxu0 0.0
    %3535 = vmatpush1.msra.mxu0 0.0
    %3536 = vmatprep.subr.mxu0 0.0
    %3537 = vmatpush1.msra.mxu0 0.0
    %3538 = vmatprep.subr.mxu0 0.0
    %3539 = vmatpush1.msra.mxu0 0.0
    %3540 = vmatprep.subr.mxu0 0.0
    %3541 = vmatpush1.msra.mxu0 0.0
    %3542 = vmatprep.subr.mxu0 0.0
    %3543 = vmatpush1.msra.mxu0 0.0
    %3544 = vmatprep.subr.mxu0 0.0
    %3545 = vmatpush1.msra.mxu0 0.0
    %3546 = vmatprep.subr.mxu0 0.0
    %3547 = vmatpush1.msra.mxu0 0.0
    %3548 = vmatprep.subr.mxu0 0.0
    %3549 = vmatpush1.msra.mxu0 0.0
    %3550 = vmatprep.subr.mxu0 0.0
    %3551 = vmatpush1.msra.mxu0 0.0
    %3552 = vmatprep.subr.mxu0 0.0
    %3553 = vmatpush1.msra.mxu0 0.0
    %3554 = vmatprep.mubr.f32.mxu0 0.0
    %3555 = vmatmul.mubr.f32.gmra.mrb[0].mxu0 %v3488
    %v3556 = vpop.f32.mrb[0].mxu0
    %v3557 = vadd.f32 0.0, %v3556
    %v3558 = vpop.f32.mrb[0].mxu0
    %3559 = vdwg.mxu0
    %s3560 = scalar_lea.vmem %s5, 256
    %v3561 = vld [vmem:[%s3560] sm:$0xff]
    %v3562 = vld [vmem:[%s3560 + $0x8] sm:$0xff]
    %v3563 = vld [vmem:[%s3560 + $0x10] sm:$0xff]
    %v3564 = vld [vmem:[%s3560 + $0x18] sm:$0xff]
    %v3566 = vsel %vm258, %v3557, 0
    %3568 = vmatprep.subr.mxu0 0.0
    %3569 = vmatpush1.msra.mxu0 %v3561
    %3570 = vmatprep.subr.mxu0 0.0
    %3571 = vmatpush1.msra.mxu0 %v3562
    %3572 = vmatprep.subr.mxu0 0.0
    %3573 = vmatpush1.msra.mxu0 %v3563
    %3574 = vmatprep.subr.mxu0 0.0
    %3575 = vmatpush1.msra.mxu0 %v3564
    %3576 = vmatprep.subr.mxu0 0.0
    %3577 = vmatpush1.msra.mxu0 0.0
    %3578 = vmatprep.subr.mxu0 0.0
    %3579 = vmatpush1.msra.mxu0 0.0
    %3580 = vmatprep.subr.mxu0 0.0
    %3581 = vmatpush1.msra.mxu0 0.0
    %3582 = vmatprep.subr.mxu0 0.0
    %3583 = vmatpush1.msra.mxu0 0.0
    %3584 = vmatprep.subr.mxu0 0.0
    %3585 = vmatpush1.msra.mxu0 0.0
    %3586 = vmatprep.subr.mxu0 0.0
    %3587 = vmatpush1.msra.mxu0 0.0
    %3588 = vmatprep.subr.mxu0 0.0
    %3589 = vmatpush1.msra.mxu0 0.0
    %3590 = vmatprep.subr.mxu0 0.0
    %3591 = vmatpush1.msra.mxu0 0.0
    %3592 = vmatprep.subr.mxu0 0.0
    %3593 = vmatpush1.msra.mxu0 0.0
    %3594 = vmatprep.subr.mxu0 0.0
    %3595 = vmatpush1.msra.mxu0 0.0
    %3596 = vmatprep.subr.mxu0 0.0
    %3597 = vmatpush1.msra.mxu0 0.0
    %3598 = vmatprep.subr.mxu0 0.0
    %3599 = vmatpush1.msra.mxu0 0.0
    %3600 = vmatprep.subr.mxu0 0.0
    %3601 = vmatpush1.msra.mxu0 0.0
    %3602 = vmatprep.subr.mxu0 0.0
    %3603 = vmatpush1.msra.mxu0 0.0
    %3604 = vmatprep.subr.mxu0 0.0
    %3605 = vmatpush1.msra.mxu0 0.0
    %3606 = vmatprep.subr.mxu0 0.0
    %3607 = vmatpush1.msra.mxu0 0.0
    %3608 = vmatprep.subr.mxu0 0.0
    %3609 = vmatpush1.msra.mxu0 0.0
    %3610 = vmatprep.subr.mxu0 0.0
    %3611 = vmatpush1.msra.mxu0 0.0
    %3612 = vmatprep.subr.mxu0 0.0
    %3613 = vmatpush1.msra.mxu0 0.0
    %3614 = vmatprep.subr.mxu0 0.0
    %3615 = vmatpush1.msra.mxu0 0.0
    %3616 = vmatprep.subr.mxu0 0.0
    %3617 = vmatpush1.msra.mxu0 0.0
    %3618 = vmatprep.subr.mxu0 0.0
    %3619 = vmatpush1.msra.mxu0 0.0
    %3620 = vmatprep.subr.mxu0 0.0
    %3621 = vmatpush1.msra.mxu0 0.0
    %3622 = vmatprep.subr.mxu0 0.0
    %3623 = vmatpush1.msra.mxu0 0.0
    %3624 = vmatprep.subr.mxu0 0.0
    %3625 = vmatpush1.msra.mxu0 0.0
    %3626 = vmatprep.subr.mxu0 0.0
    %3627 = vmatpush1.msra.mxu0 0.0
    %3628 = vmatprep.subr.mxu0 0.0
    %3629 = vmatpush1.msra.mxu0 0.0
    %3630 = vmatprep.subr.mxu0 0.0
    %3631 = vmatpush1.msra.mxu0 0.0
    %3632 = vmatprep.mubr.f32.mxu0 0.0
    %3633 = vmatmul.mubr.f32.gmra.mrb[0].mxu0 %v3566
    %v3634 = vpop.f32.mrb[0].mxu0
    %v3635 = vadd.f32 0.0, %v3634
    %v3636 = vpop.f32.mrb[0].mxu0
    %3637 = vdwg.mxu0
    %v3638 = vadd.f32 %v3484, %v3635
    %v3639 = vsel %vm258, %v3638, 0.0
    %v3640 = vrot.slane %v3639, 4
    %v3641 = vadd.f32 %v3639, %v3640
    %v3642 = vrot.slane %v3641, 2
    %v3643 = vadd.f32 %v3641, %v3642
    %v3644 = vrot.slane %v3643, 1
    %v3645 = vadd.f32 %v3643, %v3644
    %v3646 = vmul.f32 %v3645, 0.125
    %v3647 = vmul.f32 %v3638, %v3638
    %v3648 = vsel %vm258, %v3647, 0.0
    %v3649 = vrot.slane %v3648, 4
    %v3650 = vadd.f32 %v3648, %v3649
    %v3651 = vrot.slane %v3650, 2
    %v3652 = vadd.f32 %v3650, %v3651
    %v3653 = vrot.slane %v3652, 1
    %v3654 = vadd.f32 %v3652, %v3653
    %v3655 = vmul.f32 %v3654, 0.125
    %v3656 = vmul.f32 %v3646, %v3646
    %v3657 = vsub.f32 %v3655, %v3656
    %s3658 = scalar_lea.vmem %s8, 2
    %v3659 = vld [vmem:[%s3658] sm:$0x1]
    %v3660 = vadd.f32 %v3657, 1e-05
    %v3661 = vrsqrt.pop %v3660
    %v3662 = vmul.f32 %v3659, %v3661
    %v3663 = vsub.f32 %v3638, %v3646
    %v3665 = vlaneseq
    %v3666 = vshrl.u32 %v3665, 7
    %v3667 = vsub.s32 0, %v3666
    %v3668 = vrot.slane %v3662, %v3667
    %v3670 = vmul.f32 %v3663, %v3668
    %s3671 = scalar_lea.vmem %s9, 2
    %v3672 = vld [vmem:[%s3671] sm:$0x1]
    %v3674 = vlaneseq
    %v3675 = vshrl.u32 %v3674, 7
    %v3676 = vsub.s32 0, %v3675
    %v3677 = vrot.slane %v3672, %v3676
    %v3679 = vadd.f32 %v3670, %v3677
    %v3680 = vmax.f32 %v3679, 0.0
    %v3681 = vld [vmem:[%s6] sm:$0x3]
    %vm3682 = vcmask 64512
    %v3684 = vsel %vm3682, %v3681, 0
    %3686 = vmatprep.subr.mxu0 0.0
    %3687 = vmatpush1.msra.mxu0 %v3680
    %3688 = vmatprep.subr.mxu0 0.0
    %3689 = vmatpush1.msra.mxu0 0.0
    %3690 = vmatprep.subr.mxu0 0.0
    %3691 = vmatpush1.msra.mxu0 0.0
    %3692 = vmatprep.subr.mxu0 0.0
    %3693 = vmatpush1.msra.mxu0 0.0
    %3694 = vmatprep.subr.mxu0 0.0
    %3695 = vmatpush1.msra.mxu0 0.0
    %3696 = vmatprep.subr.mxu0 0.0
    %3697 = vmatpush1.msra.mxu0 0.0
    %3698 = vmatprep.subr.mxu0 0.0
    %3699 = vmatpush1.msra.mxu0 0.0
    %3700 = vmatprep.subr.mxu0 0.0
    %3701 = vmatpush1.msra.mxu0 0.0
    %3702 = vmatprep.subr.mxu0 0.0
    %3703 = vmatpush1.msra.mxu0 0.0
    %3704 = vmatprep.subr.mxu0 0.0
    %3705 = vmatpush1.msra.mxu0 0.0
    %3706 = vmatprep.subr.mxu0 0.0
    %3707 = vmatpush1.msra.mxu0 0.0
    %3708 = vmatprep.subr.mxu0 0.0
    %3709 = vmatpush1.msra.mxu0 0.0
    %3710 = vmatprep.subr.mxu0 0.0
    %3711 = vmatpush1.msra.mxu0 0.0
    %3712 = vmatprep.subr.mxu0 0.0
    %3713 = vmatpush1.msra.mxu0 0.0
    %3714 = vmatprep.subr.mxu0 0.0
    %3715 = vmatpush1.msra.mxu0 0.0
    %3716 = vmatprep.subr.mxu0 0.0
    %3717 = vmatpush1.msra.mxu0 0.0
    %3718 = vmatprep.subr.mxu0 0.0
    %3719 = vmatpush1.msra.mxu0 0.0
    %3720 = vmatprep.subr.mxu0 0.0
    %3721 = vmatpush1.msra.mxu0 0.0
    %3722 = vmatprep.subr.mxu0 0.0
    %3723 = vmatpush1.msra.mxu0 0.0
    %3724 = vmatprep.subr.mxu0 0.0
    %3725 = vmatpush1.msra.mxu0 0.0
    %3726 = vmatprep.subr.mxu0 0.0
    %3727 = vmatpush1.msra.mxu0 0.0
    %3728 = vmatprep.subr.mxu0 0.0
    %3729 = vmatpush1.msra.mxu0 0.0
    %3730 = vmatprep.subr.mxu0 0.0
    %3731 = vmatpush1.msra.mxu0 0.0
    %3732 = vmatprep.subr.mxu0 0.0
    %3733 = vmatpush1.msra.mxu0 0.0
    %3734 = vmatprep.subr.mxu0 0.0
    %3735 = vmatpush1.msra.mxu0 0.0
    %3736 = vmatprep.subr.mxu0 0.0
    %3737 = vmatpush1.msra.mxu0 0.0
    %3738 = vmatprep.subr.mxu0 0.0
    %3739 = vmatpush1.msra.mxu0 0.0
    %3740 = vmatprep.subr.mxu0 0.0
    %3741 = vmatpush1.msra.mxu0 0.0
    %3742 = vmatprep.subr.mxu0 0.0
    %3743 = vmatpush1.msra.mxu0 0.0
    %3744 = vmatprep.subr.mxu0 0.0
    %3745 = vmatpush1.msra.mxu0 0.0
    %3746 = vmatprep.subr.mxu0 0.0
    %3747 = vmatpush1.msra.mxu0 0.0
    %3748 = vmatprep.subr.mxu0 0.0
    %3749 = vmatpush1.msra.mxu0 0.0
    %3750 = vmatprep.mubr.f32.mxu0 0.0
    %3751 = vmatmul.mubr.f32.gmra.mrb[0].mxu0 %v3684
    %v3752 = vpop.f32.mrb[0].mxu0
    %v3753 = vadd.f32 0.0, %v3752
    %v3754 = vpop.f32.mrb[0].mxu0
    %3755 = vdwg.mxu0
    %v3756 = vld [vmem:[%s7] sm:$0xff]
    %v3757 = vld [vmem:[%s7 + $0x8] sm:$0xff]
    %v3758 = vld [vmem:[%s7 + $0x10] sm:$0xff]
    %v3759 = vld [vmem:[%s7 + $0x18] sm:$0xff]
    %s3760 = scalar_lea.vmem %s6, 2
    %v3761 = vld [vmem:[%s3760] sm:$0x3]
    %v3763 = vsel %vm3682, %v3761, 0
    %3765 = vmatprep.subr.mxu0 0.0
    %3766 = vmatpush1.msra.mxu0 %v3680
    %3767 = vmatprep.subr.mxu0 0.0
    %3768 = vmatpush1.msra.mxu0 0.0
    %3769 = vmatprep.subr.mxu0 0.0
    %3770 = vmatpush1.msra.mxu0 0.0
    %3771 = vmatprep.subr.mxu0 0.0
    %3772 = vmatpush1.msra.mxu0 0.0
    %3773 = vmatprep.subr.mxu0 0.0
    %3774 = vmatpush1.msra.mxu0 0.0
    %3775 = vmatprep.subr.mxu0 0.0
    %3776 = vmatpush1.msra.mxu0 0.0
    %3777 = vmatprep.subr.mxu0 0.0
    %3778 = vmatpush1.msra.mxu0 0.0
    %3779 = vmatprep.subr.mxu0 0.0
    %3780 = vmatpush1.msra.mxu0 0.0
    %3781 = vmatprep.subr.mxu0 0.0
    %3782 = vmatpush1.msra.mxu0 0.0
    %3783 = vmatprep.subr.mxu0 0.0
    %3784 = vmatpush1.msra.mxu0 0.0
    %3785 = vmatprep.subr.mxu0 0.0
    %3786 = vmatpush1.msra.mxu0 0.0
    %3787 = vmatprep.subr.mxu0 0.0
    %3788 = vmatpush1.msra.mxu0 0.0
    %3789 = vmatprep.subr.mxu0 0.0
    %3790 = vmatpush1.msra.mxu0 0.0
    %3791 = vmatprep.subr.mxu0 0.0
    %3792 = vmatpush1.msra.mxu0 0.0
    %3793 = vmatprep.subr.mxu0 0.0
    %3794 = vmatpush1.msra.mxu0 0.0
    %3795 = vmatprep.subr.mxu0 0.0
    %3796 = vmatpush1.msra.mxu0 0.0
    %3797 = vmatprep.subr.mxu0 0.0
    %3798 = vmatpush1.msra.mxu0 0.0
    %3799 = vmatprep.subr.mxu0 0.0
    %3800 = vmatpush1.msra.mxu0 0.0
    %3801 = vmatprep.subr.mxu0 0.0
    %3802 = vmatpush1.msra.mxu0 0.0
    %3803 = vmatprep.subr.mxu0 0.0
    %3804 = vmatpush1.msra.mxu0 0.0
    %3805 = vmatprep.subr.mxu0 0.0
    %3806 = vmatpush1.msra.mxu0 0.0
    %3807 = vmatprep.subr.mxu0 0.0
    %3808 = vmatpush1.msra.mxu0 0.0
    %3809 = vmatprep.subr.mxu0 0.0
    %3810 = vmatpush1.msra.mxu0 0.0
    %3811 = vmatprep.subr.mxu0 0.0
    %3812 = vmatpush1.msra.mxu0 0.0
    %3813 = vmatprep.subr.mxu0 0.0
    %3814 = vmatpush1.msra.mxu0 0.0
    %3815 = vmatprep.subr.mxu0 0.0
    %3816 = vmatpush1.msra.mxu0 0.0
    %3817 = vmatprep.subr.mxu0 0.0
    %3818 = vmatpush1.msra.mxu0 0.0
    %3819 = vmatprep.subr.mxu0 0.0
    %3820 = vmatpush1.msra.mxu0 0.0
    %3821 = vmatprep.subr.mxu0 0.0
    %3822 = vmatpush1.msra.mxu0 0.0
    %3823 = vmatprep.subr.mxu0 0.0
    %3824 = vmatpush1.msra.mxu0 0.0
    %3825 = vmatprep.subr.mxu0 0.0
    %3826 = vmatpush1.msra.mxu0 0.0
    %3827 = vmatprep.subr.mxu0 0.0
    %3828 = vmatpush1.msra.mxu0 0.0
    %3829 = vmatprep.mubr.f32.mxu0 0.0
    %3830 = vmatmul.mubr.f32.gmra.mrb[0].mxu0 %v3763
    %v3831 = vpop.f32.mrb[0].mxu0
    %v3832 = vadd.f32 0.0, %v3831
    %v3833 = vpop.f32.mrb[0].mxu0
    %3834 = vdwg.mxu0
    %s3835 = scalar_lea.vmem %s7, 32
    %v3836 = vld [vmem:[%s3835] sm:$0xff]
    %v3837 = vld [vmem:[%s3835 + $0x8] sm:$0xff]
    %v3838 = vld [vmem:[%s3835 + $0x10] sm:$0xff]
    %v3839 = vld [vmem:[%s3835 + $0x18] sm:$0xff]
    %v3841 = vsel %vm258, %v3832, 0
    %3843 = vmatprep.subr.mxu0 0.0
    %3844 = vmatpush1.msra.mxu0 %v3836
    %3845 = vmatprep.subr.mxu0 0.0
    %3846 = vmatpush1.msra.mxu0 %v3837
    %3847 = vmatprep.subr.mxu0 0.0
    %3848 = vmatpush1.msra.mxu0 %v3838
    %3849 = vmatprep.subr.mxu0 0.0
    %3850 = vmatpush1.msra.mxu0 %v3839
    %3851 = vmatprep.subr.mxu0 0.0
    %3852 = vmatpush1.msra.mxu0 0.0
    %3853 = vmatprep.subr.mxu0 0.0
    %3854 = vmatpush1.msra.mxu0 0.0
    %3855 = vmatprep.subr.mxu0 0.0
    %3856 = vmatpush1.msra.mxu0 0.0
    %3857 = vmatprep.subr.mxu0 0.0
    %3858 = vmatpush1.msra.mxu0 0.0
    %3859 = vmatprep.subr.mxu0 0.0
    %3860 = vmatpush1.msra.mxu0 0.0
    %3861 = vmatprep.subr.mxu0 0.0
    %3862 = vmatpush1.msra.mxu0 0.0
    %3863 = vmatprep.subr.mxu0 0.0
    %3864 = vmatpush1.msra.mxu0 0.0
    %3865 = vmatprep.subr.mxu0 0.0
    %3866 = vmatpush1.msra.mxu0 0.0
    %3867 = vmatprep.subr.mxu0 0.0
    %3868 = vmatpush1.msra.mxu0 0.0
    %3869 = vmatprep.subr.mxu0 0.0
    %3870 = vmatpush1.msra.mxu0 0.0
    %3871 = vmatprep.subr.mxu0 0.0
    %3872 = vmatpush1.msra.mxu0 0.0
    %3873 = vmatprep.subr.mxu0 0.0
    %3874 = vmatpush1.msra.mxu0 0.0
    %3875 = vmatprep.subr.mxu0 0.0
    %3876 = vmatpush1.msra.mxu0 0.0
    %3877 = vmatprep.subr.mxu0 0.0
    %3878 = vmatpush1.msra.mxu0 0.0
    %3879 = vmatprep.subr.mxu0 0.0
    %3880 = vmatpush1.msra.mxu0 0.0
    %3881 = vmatprep.subr.mxu0 0.0
    %3882 = vmatpush1.msra.mxu0 0.0
    %3883 = vmatprep.subr.mxu0 0.0
    %3884 = vmatpush1.msra.mxu0 0.0
    %3885 = vmatprep.subr.mxu0 0.0
    %3886 = vmatpush1.msra.mxu0 0.0
    %3887 = vmatprep.subr.mxu0 0.0
    %3888 = vmatpush1.msra.mxu0 0.0
    %3889 = vmatprep.subr.mxu0 0.0
    %3890 = vmatpush1.msra.mxu0 0.0
    %3891 = vmatprep.subr.mxu0 0.0
    %3892 = vmatpush1.msra.mxu0 0.0
    %3893 = vmatprep.subr.mxu0 0.0
    %3894 = vmatpush1.msra.mxu0 0.0
    %3895 = vmatprep.subr.mxu0 0.0
    %3896 = vmatpush1.msra.mxu0 0.0
    %3897 = vmatprep.subr.mxu0 0.0
    %3898 = vmatpush1.msra.mxu0 0.0
    %3899 = vmatprep.subr.mxu0 0.0
    %3900 = vmatpush1.msra.mxu0 0.0
    %3901 = vmatprep.subr.mxu0 0.0
    %3902 = vmatpush1.msra.mxu0 0.0
    %3903 = vmatprep.subr.mxu0 0.0
    %3904 = vmatpush1.msra.mxu0 0.0
    %3905 = vmatprep.subr.mxu0 0.0
    %3906 = vmatpush1.msra.mxu0 0.0
    %3907 = vmatprep.mubr.f32.mxu0 0.0
    %3908 = vmatmul.mubr.f32.gmra.mrb[0].mxu0 %v3841
    %v3909 = vpop.f32.mrb[0].mxu0
    %v3910 = vadd.f32 0.0, %v3909
    %v3911 = vpop.f32.mrb[0].mxu0
    %3912 = vdwg.mxu0
    %v3914 = vsel %vm258, %v3753, 0
    %3916 = vmatprep.subr.mxu0 0.0
    %3917 = vmatpush1.msra.mxu0 %v3756
    %3918 = vmatprep.subr.mxu0 0.0
    %3919 = vmatpush1.msra.mxu0 %v3757
    %3920 = vmatprep.subr.mxu0 0.0
    %3921 = vmatpush1.msra.mxu0 %v3758
    %3922 = vmatprep.subr.mxu0 0.0
    %3923 = vmatpush1.msra.mxu0 %v3759
    %3924 = vmatprep.subr.mxu0 0.0
    %3925 = vmatpush1.msra.mxu0 0.0
    %3926 = vmatprep.subr.mxu0 0.0
    %3927 = vmatpush1.msra.mxu0 0.0
    %3928 = vmatprep.subr.mxu0 0.0
    %3929 = vmatpush1.msra.mxu0 0.0
    %3930 = vmatprep.subr.mxu0 0.0
    %3931 = vmatpush1.msra.mxu0 0.0
    %3932 = vmatprep.subr.mxu0 0.0
    %3933 = vmatpush1.msra.mxu0 0.0
    %3934 = vmatprep.subr.mxu0 0.0
    %3935 = vmatpush1.msra.mxu0 0.0
    %3936 = vmatprep.subr.mxu0 0.0
    %3937 = vmatpush1.msra.mxu0 0.0
    %3938 = vmatprep.subr.mxu0 0.0
    %3939 = vmatpush1.msra.mxu0 0.0
    %3940 = vmatprep.subr.mxu0 0.0
    %3941 = vmatpush1.msra.mxu0 0.0
    %3942 = vmatprep.subr.mxu0 0.0
    %3943 = vmatpush1.msra.mxu0 0.0
    %3944 = vmatprep.subr.mxu0 0.0
    %3945 = vmatpush1.msra.mxu0 0.0
    %3946 = vmatprep.subr.mxu0 0.0
    %3947 = vmatpush1.msra.mxu0 0.0
    %3948 = vmatprep.subr.mxu0 0.0
    %3949 = vmatpush1.msra.mxu0 0.0
    %3950 = vmatprep.subr.mxu0 0.0
    %3951 = vmatpush1.msra.mxu0 0.0
    %3952 = vmatprep.subr.mxu0 0.0
    %3953 = vmatpush1.msra.mxu0 0.0
    %3954 = vmatprep.subr.mxu0 0.0
    %3955 = vmatpush1.msra.mxu0 0.0
    %3956 = vmatprep.subr.mxu0 0.0
    %3957 = vmatpush1.msra.mxu0 0.0
    %3958 = vmatprep.subr.mxu0 0.0
    %3959 = vmatpush1.msra.mxu0 0.0
    %3960 = vmatprep.subr.mxu0 0.0
    %3961 = vmatpush1.msra.mxu0 0.0
    %3962 = vmatprep.subr.mxu0 0.0
    %3963 = vmatpush1.msra.mxu0 0.0
    %3964 = vmatprep.subr.mxu0 0.0
    %3965 = vmatpush1.msra.mxu0 0.0
    %3966 = vmatprep.subr.mxu0 0.0
    %3967 = vmatpush1.msra.mxu0 0.0
    %3968 = vmatprep.subr.mxu0 0.0
    %3969 = vmatpush1.msra.mxu0 0.0
    %3970 = vmatprep.subr.mxu0 0.0
    %3971 = vmatpush1.msra.mxu0 0.0
    %3972 = vmatprep.subr.mxu0 0.0
    %3973 = vmatpush1.msra.mxu0 0.0
    %3974 = vmatprep.subr.mxu0 0.0
    %3975 = vmatpush1.msra.mxu0 0.0
    %3976 = vmatprep.subr.mxu0 0.0
    %3977 = vmatpush1.msra.mxu0 0.0
    %3978 = vmatprep.subr.mxu0 0.0
    %3979 = vmatpush1.msra.mxu0 0.0
    %3980 = vmatprep.mubr.f32.mxu0 0.0
    %3981 = vmatmul.mubr.f32.gmra.mrb[0].mxu0 %v3914
    %v3982 = vpop.f32.mrb[0].mxu0
    %v3983 = vadd.f32 %v3910, %v3982
    %v3984 = vpop.f32.mrb[0].mxu0
    %3985 = vdwg.mxu0
    %s3986 = scalar_lea.vmem %s6, 4
    %v3987 = vld [vmem:[%s3986] sm:$0x3]
    %v3989 = vsel %vm3682, %v3987, 0
    %3991 = vmatprep.subr.mxu0 0.0
    %3992 = vmatpush1.msra.mxu0 %v3680
    %3993 = vmatprep.subr.mxu0 0.0
    %3994 = vmatpush1.msra.mxu0 0.0
    %3995 = vmatprep.subr.mxu0 0.0
    %3996 = vmatpush1.msra.mxu0 0.0
    %3997 = vmatprep.subr.mxu0 0.0
    %3998 = vmatpush1.msra.mxu0 0.0
    %3999 = vmatprep.subr.mxu0 0.0
    %4000 = vmatpush1.msra.mxu0 0.0
    %4001 = vmatprep.subr.mxu0 0.0
    %4002 = vmatpush1.msra.mxu0 0.0
    %4003 = vmatprep.subr.mxu0 0.0
    %4004 = vmatpush1.msra.mxu0 0.0
    %4005 = vmatprep.subr.mxu0 0.0
    %4006 = vmatpush1.msra.mxu0 0.0
    %4007 = vmatprep.subr.mxu0 0.0
    %4008 = vmatpush1.msra.mxu0 0.0
    %4009 = vmatprep.subr.mxu0 0.0
    %4010 = vmatpush1.msra.mxu0 0.0
    %4011 = vmatprep.subr.mxu0 0.0
    %4012 = vmatpush1.msra.mxu0 0.0
    %4013 = vmatprep.subr.mxu0 0.0
    %4014 = vmatpush1.msra.mxu0 0.0
    %4015 = vmatprep.subr.mxu0 0.0
    %4016 = vmatpush1.msra.mxu0 0.0
    %4017 = vmatprep.subr.mxu0 0.0
    %4018 = vmatpush1.msra.mxu0 0.0
    %4019 = vmatprep.subr.mxu0 0.0
    %4020 = vmatpush1.msra.mxu0 0.0
    %4021 = vmatprep.subr.mxu0 0.0
    %4022 = vmatpush1.msra.mxu0 0.0
    %4023 = vmatprep.subr.mxu0 0.0
    %4024 = vmatpush1.msra.mxu0 0.0
    %4025 = vmatprep.subr.mxu0 0.0
    %4026 = vmatpush1.msra.mxu0 0.0
    %4027 = vmatprep.subr.mxu0 0.0
    %4028 = vmatpush1.msra.mxu0 0.0
    %4029 = vmatprep.subr.mxu0 0.0
    %4030 = vmatpush1.msra.mxu0 0.0
    %4031 = vmatprep.subr.mxu0 0.0
    %4032 = vmatpush1.msra.mxu0 0.0
    %4033 = vmatprep.subr.mxu0 0.0
    %4034 = vmatpush1.msra.mxu0 0.0
    %4035 = vmatprep.subr.mxu0 0.0
    %4036 = vmatpush1.msra.mxu0 0.0
    %4037 = vmatprep.subr.mxu0 0.0
    %4038 = vmatpush1.msra.mxu0 0.0
    %4039 = vmatprep.subr.mxu0 0.0
    %4040 = vmatpush1.msra.mxu0 0.0
    %4041 = vmatprep.subr.mxu0 0.0
    %4042 = vmatpush1.msra.mxu0 0.0
    %4043 = vmatprep.subr.mxu0 0.0
    %4044 = vmatpush1.msra.mxu0 0.0
    %4045 = vmatprep.subr.mxu0 0.0
    %4046 = vmatpush1.msra.mxu0 0.0
    %4047 = vmatprep.subr.mxu0 0.0
    %4048 = vmatpush1.msra.mxu0 0.0
    %4049 = vmatprep.subr.mxu0 0.0
    %4050 = vmatpush1.msra.mxu0 0.0
    %4051 = vmatprep.subr.mxu0 0.0
    %4052 = vmatpush1.msra.mxu0 0.0
    %4053 = vmatprep.subr.mxu0 0.0
    %4054 = vmatpush1.msra.mxu0 0.0
    %4055 = vmatprep.mubr.f32.mxu0 0.0
    %4056 = vmatmul.mubr.f32.gmra.mrb[0].mxu0 %v3989
    %v4057 = vpop.f32.mrb[0].mxu0
    %v4058 = vadd.f32 0.0, %v4057
    %v4059 = vpop.f32.mrb[0].mxu0
    %4060 = vdwg.mxu0
    %s4061 = scalar_lea.vmem %s7, 64
    %v4062 = vld [vmem:[%s4061] sm:$0xff]
    %v4063 = vld [vmem:[%s4061 + $0x8] sm:$0xff]
    %v4064 = vld [vmem:[%s4061 + $0x10] sm:$0xff]
    %v4065 = vld [vmem:[%s4061 + $0x18] sm:$0xff]
    %v4067 = vsel %vm258, %v4058, 0
    %4069 = vmatprep.subr.mxu0 0.0
    %4070 = vmatpush1.msra.mxu0 %v4062
    %4071 = vmatprep.subr.mxu0 0.0
    %4072 = vmatpush1.msra.mxu0 %v4063
    %4073 = vmatprep.subr.mxu0 0.0
    %4074 = vmatpush1.msra.mxu0 %v4064
    %4075 = vmatprep.subr.mxu0 0.0
    %4076 = vmatpush1.msra.mxu0 %v4065
    %4077 = vmatprep.subr.mxu0 0.0
    %4078 = vmatpush1.msra.mxu0 0.0
    %4079 = vmatprep.subr.mxu0 0.0
    %4080 = vmatpush1.msra.mxu0 0.0
    %4081 = vmatprep.subr.mxu0 0.0
    %4082 = vmatpush1.msra.mxu0 0.0
    %4083 = vmatprep.subr.mxu0 0.0
    %4084 = vmatpush1.msra.mxu0 0.0
    %4085 = vmatprep.subr.mxu0 0.0
    %4086 = vmatpush1.msra.mxu0 0.0
    %4087 = vmatprep.subr.mxu0 0.0
    %4088 = vmatpush1.msra.mxu0 0.0
    %4089 = vmatprep.subr.mxu0 0.0
    %4090 = vmatpush1.msra.mxu0 0.0
    %4091 = vmatprep.subr.mxu0 0.0
    %4092 = vmatpush1.msra.mxu0 0.0
    %4093 = vmatprep.subr.mxu0 0.0
    %4094 = vmatpush1.msra.mxu0 0.0
    %4095 = vmatprep.subr.mxu0 0.0
    %4096 = vmatpush1.msra.mxu0 0.0
    %4097 = vmatprep.subr.mxu0 0.0
    %4098 = vmatpush1.msra.mxu0 0.0
    %4099 = vmatprep.subr.mxu0 0.0
    %4100 = vmatpush1.msra.mxu0 0.0
    %4101 = vmatprep.subr.mxu0 0.0
    %4102 = vmatpush1.msra.mxu0 0.0
    %4103 = vmatprep.subr.mxu0 0.0
    %4104 = vmatpush1.msra.mxu0 0.0
    %4105 = vmatprep.subr.mxu0 0.0
    %4106 = vmatpush1.msra.mxu0 0.0
    %4107 = vmatprep.subr.mxu0 0.0
    %4108 = vmatpush1.msra.mxu0 0.0
    %4109 = vmatprep.subr.mxu0 0.0
    %4110 = vmatpush1.msra.mxu0 0.0
    %4111 = vmatprep.subr.mxu0 0.0
    %4112 = vmatpush1.msra.mxu0 0.0
    %4113 = vmatprep.subr.mxu0 0.0
    %4114 = vmatpush1.msra.mxu0 0.0
    %4115 = vmatprep.subr.mxu0 0.0
    %4116 = vmatpush1.msra.mxu0 0.0
    %4117 = vmatprep.subr.mxu0 0.0
    %4118 = vmatpush1.msra.mxu0 0.0
    %4119 = vmatprep.subr.mxu0 0.0
    %4120 = vmatpush1.msra.mxu0 0.0
    %4121 = vmatprep.subr.mxu0 0.0
    %4122 = vmatpush1.msra.mxu0 0.0
    %4123 = vmatprep.subr.mxu0 0.0
    %4124 = vmatpush1.msra.mxu0 0.0
    %4125 = vmatprep.subr.mxu0 0.0
    %4126 = vmatpush1.msra.mxu0 0.0
    %4127 = vmatprep.subr.mxu0 0.0
    %4128 = vmatpush1.msra.mxu0 0.0
    %4129 = vmatprep.subr.mxu0 0.0
    %4130 = vmatpush1.msra.mxu0 0.0
    %4131 = vmatprep.subr.mxu0 0.0
    %4132 = vmatpush1.msra.mxu0 0.0
    %4133 = vmatprep.mubr.f32.mxu0 0.0
    %4134 = vmatmul.mubr.f32.gmra.mrb[0].mxu0 %v4067
    %v4135 = vpop.f32.mrb[0].mxu0
    %v4136 = vadd.f32 0.0, %v4135
    %v4137 = vpop.f32.mrb[0].mxu0
    %4138 = vdwg.mxu0
    %v4139 = vadd.f32 %v3983, %v4136
    %s4140 = scalar_lea.vmem %s6, 6
    %v4141 = vld [vmem:[%s4140] sm:$0x3]
    %v4143 = vsel %vm3682, %v4141, 0
    %4145 = vmatprep.subr.mxu0 0.0
    %4146 = vmatpush1.msra.mxu0 %v3680
    %4147 = vmatprep.subr.mxu0 0.0
    %4148 = vmatpush1.msra.mxu0 0.0
    %4149 = vmatprep.subr.mxu0 0.0
    %4150 = vmatpush1.msra.mxu0 0.0
    %4151 = vmatprep.subr.mxu0 0.0
    %4152 = vmatpush1.msra.mxu0 0.0
    %4153 = vmatprep.subr.mxu0 0.0
    %4154 = vmatpush1.msra.mxu0 0.0
    %4155 = vmatprep.subr.mxu0 0.0
    %4156 = vmatpush1.msra.mxu0 0.0
    %4157 = vmatprep.subr.mxu0 0.0
    %4158 = vmatpush1.msra.mxu0 0.0
    %4159 = vmatprep.subr.mxu0 0.0
    %4160 = vmatpush1.msra.mxu0 0.0
    %4161 = vmatprep.subr.mxu0 0.0
    %4162 = vmatpush1.msra.mxu0 0.0
    %4163 = vmatprep.subr.mxu0 0.0
    %4164 = vmatpush1.msra.mxu0 0.0
    %4165 = vmatprep.subr.mxu0 0.0
    %4166 = vmatpush1.msra.mxu0 0.0
    %4167 = vmatprep.subr.mxu0 0.0
    %4168 = vmatpush1.msra.mxu0 0.0
    %4169 = vmatprep.subr.mxu0 0.0
    %4170 = vmatpush1.msra.mxu0 0.0
    %4171 = vmatprep.subr.mxu0 0.0
    %4172 = vmatpush1.msra.mxu0 0.0
    %4173 = vmatprep.subr.mxu0 0.0
    %4174 = vmatpush1.msra.mxu0 0.0
    %4175 = vmatprep.subr.mxu0 0.0
    %4176 = vmatpush1.msra.mxu0 0.0
    %4177 = vmatprep.subr.mxu0 0.0
    %4178 = vmatpush1.msra.mxu0 0.0
    %4179 = vmatprep.subr.mxu0 0.0
    %4180 = vmatpush1.msra.mxu0 0.0
    %4181 = vmatprep.subr.mxu0 0.0
    %4182 = vmatpush1.msra.mxu0 0.0
    %4183 = vmatprep.subr.mxu0 0.0
    %4184 = vmatpush1.msra.mxu0 0.0
    %4185 = vmatprep.subr.mxu0 0.0
    %4186 = vmatpush1.msra.mxu0 0.0
    %4187 = vmatprep.subr.mxu0 0.0
    %4188 = vmatpush1.msra.mxu0 0.0
    %4189 = vmatprep.subr.mxu0 0.0
    %4190 = vmatpush1.msra.mxu0 0.0
    %4191 = vmatprep.subr.mxu0 0.0
    %4192 = vmatpush1.msra.mxu0 0.0
    %4193 = vmatprep.subr.mxu0 0.0
    %4194 = vmatpush1.msra.mxu0 0.0
    %4195 = vmatprep.subr.mxu0 0.0
    %4196 = vmatpush1.msra.mxu0 0.0
    %4197 = vmatprep.subr.mxu0 0.0
    %4198 = vmatpush1.msra.mxu0 0.0
    %4199 = vmatprep.subr.mxu0 0.0
    %4200 = vmatpush1.msra.mxu0 0.0
    %4201 = vmatprep.subr.mxu0 0.0
    %4202 = vmatpush1.msra.mxu0 0.0
    %4203 = vmatprep.subr.mxu0 0.0
    %4204 = vmatpush1.msra.mxu0 0.0
    %4205 = vmatprep.subr.mxu0 0.0
    %4206 = vmatpush1.msra.mxu0 0.0
    %4207 = vmatprep.subr.mxu0 0.0
    %4208 = vmatpush1.msra.mxu0 0.0
    %4209 = vmatprep.mubr.f32.mxu0 0.0
    %4210 = vmatmul.mubr.f32.gmra.mrb[0].mxu0 %v4143
    %v4211 = vpop.f32.mrb[0].mxu0
    %v4212 = vadd.f32 0.0, %v4211
    %v4213 = vpop.f32.mrb[0].mxu0
    %4214 = vdwg.mxu0
    %s4215 = scalar_lea.vmem %s7, 96
    %v4216 = vld [vmem:[%s4215] sm:$0xff]
    %v4217 = vld [vmem:[%s4215 + $0x8] sm:$0xff]
    %v4218 = vld [vmem:[%s4215 + $0x10] sm:$0xff]
    %v4219 = vld [vmem:[%s4215 + $0x18] sm:$0xff]
    %v4221 = vsel %vm258, %v4212, 0
    %4223 = vmatprep.subr.mxu0 0.0
    %4224 = vmatpush1.msra.mxu0 %v4216
    %4225 = vmatprep.subr.mxu0 0.0
    %4226 = vmatpush1.msra.mxu0 %v4217
    %4227 = vmatprep.subr.mxu0 0.0
    %4228 = vmatpush1.msra.mxu0 %v4218
    %4229 = vmatprep.subr.mxu0 0.0
    %4230 = vmatpush1.msra.mxu0 %v4219
    %4231 = vmatprep.subr.mxu0 0.0
    %4232 = vmatpush1.msra.mxu0 0.0
    %4233 = vmatprep.subr.mxu0 0.0
    %4234 = vmatpush1.msra.mxu0 0.0
    %4235 = vmatprep.subr.mxu0 0.0
    %4236 = vmatpush1.msra.mxu0 0.0
    %4237 = vmatprep.subr.mxu0 0.0
    %4238 = vmatpush1.msra.mxu0 0.0
    %4239 = vmatprep.subr.mxu0 0.0
    %4240 = vmatpush1.msra.mxu0 0.0
    %4241 = vmatprep.subr.mxu0 0.0
    %4242 = vmatpush1.msra.mxu0 0.0
    %4243 = vmatprep.subr.mxu0 0.0
    %4244 = vmatpush1.msra.mxu0 0.0
    %4245 = vmatprep.subr.mxu0 0.0
    %4246 = vmatpush1.msra.mxu0 0.0
    %4247 = vmatprep.subr.mxu0 0.0
    %4248 = vmatpush1.msra.mxu0 0.0
    %4249 = vmatprep.subr.mxu0 0.0
    %4250 = vmatpush1.msra.mxu0 0.0
    %4251 = vmatprep.subr.mxu0 0.0
    %4252 = vmatpush1.msra.mxu0 0.0
    %4253 = vmatprep.subr.mxu0 0.0
    %4254 = vmatpush1.msra.mxu0 0.0
    %4255 = vmatprep.subr.mxu0 0.0
    %4256 = vmatpush1.msra.mxu0 0.0
    %4257 = vmatprep.subr.mxu0 0.0
    %4258 = vmatpush1.msra.mxu0 0.0
    %4259 = vmatprep.subr.mxu0 0.0
    %4260 = vmatpush1.msra.mxu0 0.0
    %4261 = vmatprep.subr.mxu0 0.0
    %4262 = vmatpush1.msra.mxu0 0.0
    %4263 = vmatprep.subr.mxu0 0.0
    %4264 = vmatpush1.msra.mxu0 0.0
    %4265 = vmatprep.subr.mxu0 0.0
    %4266 = vmatpush1.msra.mxu0 0.0
    %4267 = vmatprep.subr.mxu0 0.0
    %4268 = vmatpush1.msra.mxu0 0.0
    %4269 = vmatprep.subr.mxu0 0.0
    %4270 = vmatpush1.msra.mxu0 0.0
    %4271 = vmatprep.subr.mxu0 0.0
    %4272 = vmatpush1.msra.mxu0 0.0
    %4273 = vmatprep.subr.mxu0 0.0
    %4274 = vmatpush1.msra.mxu0 0.0
    %4275 = vmatprep.subr.mxu0 0.0
    %4276 = vmatpush1.msra.mxu0 0.0
    %4277 = vmatprep.subr.mxu0 0.0
    %4278 = vmatpush1.msra.mxu0 0.0
    %4279 = vmatprep.subr.mxu0 0.0
    %4280 = vmatpush1.msra.mxu0 0.0
    %4281 = vmatprep.subr.mxu0 0.0
    %4282 = vmatpush1.msra.mxu0 0.0
    %4283 = vmatprep.subr.mxu0 0.0
    %4284 = vmatpush1.msra.mxu0 0.0
    %4285 = vmatprep.subr.mxu0 0.0
    %4286 = vmatpush1.msra.mxu0 0.0
    %4287 = vmatprep.mubr.f32.mxu0 0.0
    %4288 = vmatmul.mubr.f32.gmra.mrb[0].mxu0 %v4221
    %v4289 = vpop.f32.mrb[0].mxu0
    %v4290 = vadd.f32 0.0, %v4289
    %v4291 = vpop.f32.mrb[0].mxu0
    %4292 = vdwg.mxu0
    %v4293 = vadd.f32 %v4139, %v4290
    %s4294 = scalar_lea.vmem %s6, 8
    %v4295 = vld [vmem:[%s4294] sm:$0x3]
    %v4297 = vsel %vm3682, %v4295, 0
    %4299 = vmatprep.subr.mxu0 0.0
    %4300 = vmatpush1.msra.mxu0 %v3680
    %4301 = vmatprep.subr.mxu0 0.0
    %4302 = vmatpush1.msra.mxu0 0.0
    %4303 = vmatprep.subr.mxu0 0.0
    %4304 = vmatpush1.msra.mxu0 0.0
    %4305 = vmatprep.subr.mxu0 0.0
    %4306 = vmatpush1.msra.mxu0 0.0
    %4307 = vmatprep.subr.mxu0 0.0
    %4308 = vmatpush1.msra.mxu0 0.0
    %4309 = vmatprep.subr.mxu0 0.0
    %4310 = vmatpush1.msra.mxu0 0.0
    %4311 = vmatprep.subr.mxu0 0.0
    %4312 = vmatpush1.msra.mxu0 0.0
    %4313 = vmatprep.subr.mxu0 0.0
    %4314 = vmatpush1.msra.mxu0 0.0
    %4315 = vmatprep.subr.mxu0 0.0
    %4316 = vmatpush1.msra.mxu0 0.0
    %4317 = vmatprep.subr.mxu0 0.0
    %4318 = vmatpush1.msra.mxu0 0.0
    %4319 = vmatprep.subr.mxu0 0.0
    %4320 = vmatpush1.msra.mxu0 0.0
    %4321 = vmatprep.subr.mxu0 0.0
    %4322 = vmatpush1.msra.mxu0 0.0
    %4323 = vmatprep.subr.mxu0 0.0
    %4324 = vmatpush1.msra.mxu0 0.0
    %4325 = vmatprep.subr.mxu0 0.0
    %4326 = vmatpush1.msra.mxu0 0.0
    %4327 = vmatprep.subr.mxu0 0.0
    %4328 = vmatpush1.msra.mxu0 0.0
    %4329 = vmatprep.subr.mxu0 0.0
    %4330 = vmatpush1.msra.mxu0 0.0
    %4331 = vmatprep.subr.mxu0 0.0
    %4332 = vmatpush1.msra.mxu0 0.0
    %4333 = vmatprep.subr.mxu0 0.0
    %4334 = vmatpush1.msra.mxu0 0.0
    %4335 = vmatprep.subr.mxu0 0.0
    %4336 = vmatpush1.msra.mxu0 0.0
    %4337 = vmatprep.subr.mxu0 0.0
    %4338 = vmatpush1.msra.mxu0 0.0
    %4339 = vmatprep.subr.mxu0 0.0
    %4340 = vmatpush1.msra.mxu0 0.0
    %4341 = vmatprep.subr.mxu0 0.0
    %4342 = vmatpush1.msra.mxu0 0.0
    %4343 = vmatprep.subr.mxu0 0.0
    %4344 = vmatpush1.msra.mxu0 0.0
    %4345 = vmatprep.subr.mxu0 0.0
    %4346 = vmatpush1.msra.mxu0 0.0
    %4347 = vmatprep.subr.mxu0 0.0
    %4348 = vmatpush1.msra.mxu0 0.0
    %4349 = vmatprep.subr.mxu0 0.0
    %4350 = vmatpush1.msra.mxu0 0.0
    %4351 = vmatprep.subr.mxu0 0.0
    %4352 = vmatpush1.msra.mxu0 0.0
    %4353 = vmatprep.subr.mxu0 0.0
    %4354 = vmatpush1.msra.mxu0 0.0
    %4355 = vmatprep.subr.mxu0 0.0
    %4356 = vmatpush1.msra.mxu0 0.0
    %4357 = vmatprep.subr.mxu0 0.0
    %4358 = vmatpush1.msra.mxu0 0.0
    %4359 = vmatprep.subr.mxu0 0.0
    %4360 = vmatpush1.msra.mxu0 0.0
    %4361 = vmatprep.subr.mxu0 0.0
    %4362 = vmatpush1.msra.mxu0 0.0
    %4363 = vmatprep.mubr.f32.mxu0 0.0
    %4364 = vmatmul.mubr.f32.gmra.mrb[0].mxu0 %v4297
    %v4365 = vpop.f32.mrb[0].mxu0
    %v4366 = vadd.f32 0.0, %v4365
    %v4367 = vpop.f32.mrb[0].mxu0
    %4368 = vdwg.mxu0
    %s4369 = scalar_lea.vmem %s7, 128
    %v4370 = vld [vmem:[%s4369] sm:$0xff]
    %v4371 = vld [vmem:[%s4369 + $0x8] sm:$0xff]
    %v4372 = vld [vmem:[%s4369 + $0x10] sm:$0xff]
    %v4373 = vld [vmem:[%s4369 + $0x18] sm:$0xff]
    %v4375 = vsel %vm258, %v4366, 0
    %4377 = vmatprep.subr.mxu0 0.0
    %4378 = vmatpush1.msra.mxu0 %v4370
    %4379 = vmatprep.subr.mxu0 0.0
    %4380 = vmatpush1.msra.mxu0 %v4371
    %4381 = vmatprep.subr.mxu0 0.0
    %4382 = vmatpush1.msra.mxu0 %v4372
    %4383 = vmatprep.subr.mxu0 0.0
    %4384 = vmatpush1.msra.mxu0 %v4373
    %4385 = vmatprep.subr.mxu0 0.0
    %4386 = vmatpush1.msra.mxu0 0.0
    %4387 = vmatprep.subr.mxu0 0.0
    %4388 = vmatpush1.msra.mxu0 0.0
    %4389 = vmatprep.subr.mxu0 0.0
    %4390 = vmatpush1.msra.mxu0 0.0
    %4391 = vmatprep.subr.mxu0 0.0
    %4392 = vmatpush1.msra.mxu0 0.0
    %4393 = vmatprep.subr.mxu0 0.0
    %4394 = vmatpush1.msra.mxu0 0.0
    %4395 = vmatprep.subr.mxu0 0.0
    %4396 = vmatpush1.msra.mxu0 0.0
    %4397 = vmatprep.subr.mxu0 0.0
    %4398 = vmatpush1.msra.mxu0 0.0
    %4399 = vmatprep.subr.mxu0 0.0
    %4400 = vmatpush1.msra.mxu0 0.0
    %4401 = vmatprep.subr.mxu0 0.0
    %4402 = vmatpush1.msra.mxu0 0.0
    %4403 = vmatprep.subr.mxu0 0.0
    %4404 = vmatpush1.msra.mxu0 0.0
    %4405 = vmatprep.subr.mxu0 0.0
    %4406 = vmatpush1.msra.mxu0 0.0
    %4407 = vmatprep.subr.mxu0 0.0
    %4408 = vmatpush1.msra.mxu0 0.0
    %4409 = vmatprep.subr.mxu0 0.0
    %4410 = vmatpush1.msra.mxu0 0.0
    %4411 = vmatprep.subr.mxu0 0.0
    %4412 = vmatpush1.msra.mxu0 0.0
    %4413 = vmatprep.subr.mxu0 0.0
    %4414 = vmatpush1.msra.mxu0 0.0
    %4415 = vmatprep.subr.mxu0 0.0
    %4416 = vmatpush1.msra.mxu0 0.0
    %4417 = vmatprep.subr.mxu0 0.0
    %4418 = vmatpush1.msra.mxu0 0.0
    %4419 = vmatprep.subr.mxu0 0.0
    %4420 = vmatpush1.msra.mxu0 0.0
    %4421 = vmatprep.subr.mxu0 0.0
    %4422 = vmatpush1.msra.mxu0 0.0
    %4423 = vmatprep.subr.mxu0 0.0
    %4424 = vmatpush1.msra.mxu0 0.0
    %4425 = vmatprep.subr.mxu0 0.0
    %4426 = vmatpush1.msra.mxu0 0.0
    %4427 = vmatprep.subr.mxu0 0.0
    %4428 = vmatpush1.msra.mxu0 0.0
    %4429 = vmatprep.subr.mxu0 0.0
    %4430 = vmatpush1.msra.mxu0 0.0
    %4431 = vmatprep.subr.mxu0 0.0
    %4432 = vmatpush1.msra.mxu0 0.0
    %4433 = vmatprep.subr.mxu0 0.0
    %4434 = vmatpush1.msra.mxu0 0.0
    %4435 = vmatprep.subr.mxu0 0.0
    %4436 = vmatpush1.msra.mxu0 0.0
    %4437 = vmatprep.subr.mxu0 0.0
    %4438 = vmatpush1.msra.mxu0 0.0
    %4439 = vmatprep.subr.mxu0 0.0
    %4440 = vmatpush1.msra.mxu0 0.0
    %4441 = vmatprep.mubr.f32.mxu0 0.0
    %4442 = vmatmul.mubr.f32.gmra.mrb[0].mxu0 %v4375
    %v4443 = vpop.f32.mrb[0].mxu0
    %v4444 = vadd.f32 0.0, %v4443
    %v4445 = vpop.f32.mrb[0].mxu0
    %4446 = vdwg.mxu0
    %v4447 = vadd.f32 %v4293, %v4444
    %s4448 = scalar_lea.vmem %s6, 10
    %v4449 = vld [vmem:[%s4448] sm:$0x3]
    %v4451 = vsel %vm3682, %v4449, 0
    %4453 = vmatprep.subr.mxu0 0.0
    %4454 = vmatpush1.msra.mxu0 %v3680
    %4455 = vmatprep.subr.mxu0 0.0
    %4456 = vmatpush1.msra.mxu0 0.0
    %4457 = vmatprep.subr.mxu0 0.0
    %4458 = vmatpush1.msra.mxu0 0.0
    %4459 = vmatprep.subr.mxu0 0.0
    %4460 = vmatpush1.msra.mxu0 0.0
    %4461 = vmatprep.subr.mxu0 0.0
    %4462 = vmatpush1.msra.mxu0 0.0
    %4463 = vmatprep.subr.mxu0 0.0
    %4464 = vmatpush1.msra.mxu0 0.0
    %4465 = vmatprep.subr.mxu0 0.0
    %4466 = vmatpush1.msra.mxu0 0.0
    %4467 = vmatprep.subr.mxu0 0.0
    %4468 = vmatpush1.msra.mxu0 0.0
    %4469 = vmatprep.subr.mxu0 0.0
    %4470 = vmatpush1.msra.mxu0 0.0
    %4471 = vmatprep.subr.mxu0 0.0
    %4472 = vmatpush1.msra.mxu0 0.0
    %4473 = vmatprep.subr.mxu0 0.0
    %4474 = vmatpush1.msra.mxu0 0.0
    %4475 = vmatprep.subr.mxu0 0.0
    %4476 = vmatpush1.msra.mxu0 0.0
    %4477 = vmatprep.subr.mxu0 0.0
    %4478 = vmatpush1.msra.mxu0 0.0
    %4479 = vmatprep.subr.mxu0 0.0
    %4480 = vmatpush1.msra.mxu0 0.0
    %4481 = vmatprep.subr.mxu0 0.0
    %4482 = vmatpush1.msra.mxu0 0.0
    %4483 = vmatprep.subr.mxu0 0.0
    %4484 = vmatpush1.msra.mxu0 0.0
    %4485 = vmatprep.subr.mxu0 0.0
    %4486 = vmatpush1.msra.mxu0 0.0
    %4487 = vmatprep.subr.mxu0 0.0
    %4488 = vmatpush1.msra.mxu0 0.0
    %4489 = vmatprep.subr.mxu0 0.0
    %4490 = vmatpush1.msra.mxu0 0.0
    %4491 = vmatprep.subr.mxu0 0.0
    %4492 = vmatpush1.msra.mxu0 0.0
    %4493 = vmatprep.subr.mxu0 0.0
    %4494 = vmatpush1.msra.mxu0 0.0
    %4495 = vmatprep.subr.mxu0 0.0
    %4496 = vmatpush1.msra.mxu0 0.0
    %4497 = vmatprep.subr.mxu0 0.0
    %4498 = vmatpush1.msra.mxu0 0.0
    %4499 = vmatprep.subr.mxu0 0.0
    %4500 = vmatpush1.msra.mxu0 0.0
    %4501 = vmatprep.subr.mxu0 0.0
    %4502 = vmatpush1.msra.mxu0 0.0
    %4503 = vmatprep.subr.mxu0 0.0
    %4504 = vmatpush1.msra.mxu0 0.0
    %4505 = vmatprep.subr.mxu0 0.0
    %4506 = vmatpush1.msra.mxu0 0.0
    %4507 = vmatprep.subr.mxu0 0.0
    %4508 = vmatpush1.msra.mxu0 0.0
    %4509 = vmatprep.subr.mxu0 0.0
    %4510 = vmatpush1.msra.mxu0 0.0
    %4511 = vmatprep.subr.mxu0 0.0
    %4512 = vmatpush1.msra.mxu0 0.0
    %4513 = vmatprep.subr.mxu0 0.0
    %4514 = vmatpush1.msra.mxu0 0.0
    %4515 = vmatprep.subr.mxu0 0.0
    %4516 = vmatpush1.msra.mxu0 0.0
    %4517 = vmatprep.mubr.f32.mxu0 0.0
    %4518 = vmatmul.mubr.f32.gmra.mrb[0].mxu0 %v4451
    %v4519 = vpop.f32.mrb[0].mxu0
    %v4520 = vadd.f32 0.0, %v4519
    %v4521 = vpop.f32.mrb[0].mxu0
    %4522 = vdwg.mxu0
    %s4523 = scalar_lea.vmem %s7, 160
    %v4524 = vld [vmem:[%s4523] sm:$0xff]
    %v4525 = vld [vmem:[%s4523 + $0x8] sm:$0xff]
    %v4526 = vld [vmem:[%s4523 + $0x10] sm:$0xff]
    %v4527 = vld [vmem:[%s4523 + $0x18] sm:$0xff]
    %v4529 = vsel %vm258, %v4520, 0
    %4531 = vmatprep.subr.mxu0 0.0
    %4532 = vmatpush1.msra.mxu0 %v4524
    %4533 = vmatprep.subr.mxu0 0.0
    %4534 = vmatpush1.msra.mxu0 %v4525
    %4535 = vmatprep.subr.mxu0 0.0
    %4536 = vmatpush1.msra.mxu0 %v4526
    %4537 = vmatprep.subr.mxu0 0.0
    %4538 = vmatpush1.msra.mxu0 %v4527
    %4539 = vmatprep.subr.mxu0 0.0
    %4540 = vmatpush1.msra.mxu0 0.0
    %4541 = vmatprep.subr.mxu0 0.0
    %4542 = vmatpush1.msra.mxu0 0.0
    %4543 = vmatprep.subr.mxu0 0.0
    %4544 = vmatpush1.msra.mxu0 0.0
    %4545 = vmatprep.subr.mxu0 0.0
    %4546 = vmatpush1.msra.mxu0 0.0
    %4547 = vmatprep.subr.mxu0 0.0
    %4548 = vmatpush1.msra.mxu0 0.0
    %4549 = vmatprep.subr.mxu0 0.0
    %4550 = vmatpush1.msra.mxu0 0.0
    %4551 = vmatprep.subr.mxu0 0.0
    %4552 = vmatpush1.msra.mxu0 0.0
    %4553 = vmatprep.subr.mxu0 0.0
    %4554 = vmatpush1.msra.mxu0 0.0
    %4555 = vmatprep.subr.mxu0 0.0
    %4556 = vmatpush1.msra.mxu0 0.0
    %4557 = vmatprep.subr.mxu0 0.0
    %4558 = vmatpush1.msra.mxu0 0.0
    %4559 = vmatprep.subr.mxu0 0.0
    %4560 = vmatpush1.msra.mxu0 0.0
    %4561 = vmatprep.subr.mxu0 0.0
    %4562 = vmatpush1.msra.mxu0 0.0
    %4563 = vmatprep.subr.mxu0 0.0
    %4564 = vmatpush1.msra.mxu0 0.0
    %4565 = vmatprep.subr.mxu0 0.0
    %4566 = vmatpush1.msra.mxu0 0.0
    %4567 = vmatprep.subr.mxu0 0.0
    %4568 = vmatpush1.msra.mxu0 0.0
    %4569 = vmatprep.subr.mxu0 0.0
    %4570 = vmatpush1.msra.mxu0 0.0
    %4571 = vmatprep.subr.mxu0 0.0
    %4572 = vmatpush1.msra.mxu0 0.0
    %4573 = vmatprep.subr.mxu0 0.0
    %4574 = vmatpush1.msra.mxu0 0.0
    %4575 = vmatprep.subr.mxu0 0.0
    %4576 = vmatpush1.msra.mxu0 0.0
    %4577 = vmatprep.subr.mxu0 0.0
    %4578 = vmatpush1.msra.mxu0 0.0
    %4579 = vmatprep.subr.mxu0 0.0
    %4580 = vmatpush1.msra.mxu0 0.0
    %4581 = vmatprep.subr.mxu0 0.0
    %4582 = vmatpush1.msra.mxu0 0.0
    %4583 = vmatprep.subr.mxu0 0.0
    %4584 = vmatpush1.msra.mxu0 0.0
    %4585 = vmatprep.subr.mxu0 0.0
    %4586 = vmatpush1.msra.mxu0 0.0
    %4587 = vmatprep.subr.mxu0 0.0
    %4588 = vmatpush1.msra.mxu0 0.0
    %4589 = vmatprep.subr.mxu0 0.0
    %4590 = vmatpush1.msra.mxu0 0.0
    %4591 = vmatprep.subr.mxu0 0.0
    %4592 = vmatpush1.msra.mxu0 0.0
    %4593 = vmatprep.subr.mxu0 0.0
    %4594 = vmatpush1.msra.mxu0 0.0
    %4595 = vmatprep.mubr.f32.mxu0 0.0
    %4596 = vmatmul.mubr.f32.gmra.mrb[0].mxu0 %v4529
    %v4597 = vpop.f32.mrb[0].mxu0
    %v4598 = vadd.f32 0.0, %v4597
    %v4599 = vpop.f32.mrb[0].mxu0
    %4600 = vdwg.mxu0
    %v4601 = vadd.f32 %v4447, %v4598
    %s4602 = scalar_lea.vmem %s6, 12
    %v4603 = vld [vmem:[%s4602] sm:$0x3]
    %v4605 = vsel %vm3682, %v4603, 0
    %4607 = vmatprep.subr.mxu0 0.0
    %4608 = vmatpush1.msra.mxu0 %v3680
    %4609 = vmatprep.subr.mxu0 0.0
    %4610 = vmatpush1.msra.mxu0 0.0
    %4611 = vmatprep.subr.mxu0 0.0
    %4612 = vmatpush1.msra.mxu0 0.0
    %4613 = vmatprep.subr.mxu0 0.0
    %4614 = vmatpush1.msra.mxu0 0.0
    %4615 = vmatprep.subr.mxu0 0.0
    %4616 = vmatpush1.msra.mxu0 0.0
    %4617 = vmatprep.subr.mxu0 0.0
    %4618 = vmatpush1.msra.mxu0 0.0
    %4619 = vmatprep.subr.mxu0 0.0
    %4620 = vmatpush1.msra.mxu0 0.0
    %4621 = vmatprep.subr.mxu0 0.0
    %4622 = vmatpush1.msra.mxu0 0.0
    %4623 = vmatprep.subr.mxu0 0.0
    %4624 = vmatpush1.msra.mxu0 0.0
    %4625 = vmatprep.subr.mxu0 0.0
    %4626 = vmatpush1.msra.mxu0 0.0
    %4627 = vmatprep.subr.mxu0 0.0
    %4628 = vmatpush1.msra.mxu0 0.0
    %4629 = vmatprep.subr.mxu0 0.0
    %4630 = vmatpush1.msra.mxu0 0.0
    %4631 = vmatprep.subr.mxu0 0.0
    %4632 = vmatpush1.msra.mxu0 0.0
    %4633 = vmatprep.subr.mxu0 0.0
    %4634 = vmatpush1.msra.mxu0 0.0
    %4635 = vmatprep.subr.mxu0 0.0
    %4636 = vmatpush1.msra.mxu0 0.0
    %4637 = vmatprep.subr.mxu0 0.0
    %4638 = vmatpush1.msra.mxu0 0.0
    %4639 = vmatprep.subr.mxu0 0.0
    %4640 = vmatpush1.msra.mxu0 0.0
    %4641 = vmatprep.subr.mxu0 0.0
    %4642 = vmatpush1.msra.mxu0 0.0
    %4643 = vmatprep.subr.mxu0 0.0
    %4644 = vmatpush1.msra.mxu0 0.0
    %4645 = vmatprep.subr.mxu0 0.0
    %4646 = vmatpush1.msra.mxu0 0.0
    %4647 = vmatprep.subr.mxu0 0.0
    %4648 = vmatpush1.msra.mxu0 0.0
    %4649 = vmatprep.subr.mxu0 0.0
    %4650 = vmatpush1.msra.mxu0 0.0
    %4651 = vmatprep.subr.mxu0 0.0
    %4652 = vmatpush1.msra.mxu0 0.0
    %4653 = vmatprep.subr.mxu0 0.0
    %4654 = vmatpush1.msra.mxu0 0.0
    %4655 = vmatprep.subr.mxu0 0.0
    %4656 = vmatpush1.msra.mxu0 0.0
    %4657 = vmatprep.subr.mxu0 0.0
    %4658 = vmatpush1.msra.mxu0 0.0
    %4659 = vmatprep.subr.mxu0 0.0
    %4660 = vmatpush1.msra.mxu0 0.0
    %4661 = vmatprep.subr.mxu0 0.0
    %4662 = vmatpush1.msra.mxu0 0.0
    %4663 = vmatprep.subr.mxu0 0.0
    %4664 = vmatpush1.msra.mxu0 0.0
    %4665 = vmatprep.subr.mxu0 0.0
    %4666 = vmatpush1.msra.mxu0 0.0
    %4667 = vmatprep.subr.mxu0 0.0
    %4668 = vmatpush1.msra.mxu0 0.0
    %4669 = vmatprep.subr.mxu0 0.0
    %4670 = vmatpush1.msra.mxu0 0.0
    %4671 = vmatprep.mubr.f32.mxu0 0.0
    %4672 = vmatmul.mubr.f32.gmra.mrb[0].mxu0 %v4605
    %v4673 = vpop.f32.mrb[0].mxu0
    %v4674 = vadd.f32 0.0, %v4673
    %v4675 = vpop.f32.mrb[0].mxu0
    %4676 = vdwg.mxu0
    %s4677 = scalar_lea.vmem %s7, 192
    %v4678 = vld [vmem:[%s4677] sm:$0xff]
    %v4679 = vld [vmem:[%s4677 + $0x8] sm:$0xff]
    %v4680 = vld [vmem:[%s4677 + $0x10] sm:$0xff]
    %v4681 = vld [vmem:[%s4677 + $0x18] sm:$0xff]
    %v4683 = vsel %vm258, %v4674, 0
    %4685 = vmatprep.subr.mxu0 0.0
    %4686 = vmatpush1.msra.mxu0 %v4678
    %4687 = vmatprep.subr.mxu0 0.0
    %4688 = vmatpush1.msra.mxu0 %v4679
    %4689 = vmatprep.subr.mxu0 0.0
    %4690 = vmatpush1.msra.mxu0 %v4680
    %4691 = vmatprep.subr.mxu0 0.0
    %4692 = vmatpush1.msra.mxu0 %v4681
    %4693 = vmatprep.subr.mxu0 0.0
    %4694 = vmatpush1.msra.mxu0 0.0
    %4695 = vmatprep.subr.mxu0 0.0
    %4696 = vmatpush1.msra.mxu0 0.0
    %4697 = vmatprep.subr.mxu0 0.0
    %4698 = vmatpush1.msra.mxu0 0.0
    %4699 = vmatprep.subr.mxu0 0.0
    %4700 = vmatpush1.msra.mxu0 0.0
    %4701 = vmatprep.subr.mxu0 0.0
    %4702 = vmatpush1.msra.mxu0 0.0
    %4703 = vmatprep.subr.mxu0 0.0
    %4704 = vmatpush1.msra.mxu0 0.0
    %4705 = vmatprep.subr.mxu0 0.0
    %4706 = vmatpush1.msra.mxu0 0.0
    %4707 = vmatprep.subr.mxu0 0.0
    %4708 = vmatpush1.msra.mxu0 0.0
    %4709 = vmatprep.subr.mxu0 0.0
    %4710 = vmatpush1.msra.mxu0 0.0
    %4711 = vmatprep.subr.mxu0 0.0
    %4712 = vmatpush1.msra.mxu0 0.0
    %4713 = vmatprep.subr.mxu0 0.0
    %4714 = vmatpush1.msra.mxu0 0.0
    %4715 = vmatprep.subr.mxu0 0.0
    %4716 = vmatpush1.msra.mxu0 0.0
    %4717 = vmatprep.subr.mxu0 0.0
    %4718 = vmatpush1.msra.mxu0 0.0
    %4719 = vmatprep.subr.mxu0 0.0
    %4720 = vmatpush1.msra.mxu0 0.0
    %4721 = vmatprep.subr.mxu0 0.0
    %4722 = vmatpush1.msra.mxu0 0.0
    %4723 = vmatprep.subr.mxu0 0.0
    %4724 = vmatpush1.msra.mxu0 0.0
    %4725 = vmatprep.subr.mxu0 0.0
    %4726 = vmatpush1.msra.mxu0 0.0
    %4727 = vmatprep.subr.mxu0 0.0
    %4728 = vmatpush1.msra.mxu0 0.0
    %4729 = vmatprep.subr.mxu0 0.0
    %4730 = vmatpush1.msra.mxu0 0.0
    %4731 = vmatprep.subr.mxu0 0.0
    %4732 = vmatpush1.msra.mxu0 0.0
    %4733 = vmatprep.subr.mxu0 0.0
    %4734 = vmatpush1.msra.mxu0 0.0
    %4735 = vmatprep.subr.mxu0 0.0
    %4736 = vmatpush1.msra.mxu0 0.0
    %4737 = vmatprep.subr.mxu0 0.0
    %4738 = vmatpush1.msra.mxu0 0.0
    %4739 = vmatprep.subr.mxu0 0.0
    %4740 = vmatpush1.msra.mxu0 0.0
    %4741 = vmatprep.subr.mxu0 0.0
    %4742 = vmatpush1.msra.mxu0 0.0
    %4743 = vmatprep.subr.mxu0 0.0
    %4744 = vmatpush1.msra.mxu0 0.0
    %4745 = vmatprep.subr.mxu0 0.0
    %4746 = vmatpush1.msra.mxu0 0.0
    %4747 = vmatprep.subr.mxu0 0.0
    %4748 = vmatpush1.msra.mxu0 0.0
    %4749 = vmatprep.mubr.f32.mxu0 0.0
    %4750 = vmatmul.mubr.f32.gmra.mrb[0].mxu0 %v4683
    %v4751 = vpop.f32.mrb[0].mxu0
    %v4752 = vadd.f32 0.0, %v4751
    %v4753 = vpop.f32.mrb[0].mxu0
    %4754 = vdwg.mxu0
    %v4755 = vadd.f32 %v4601, %v4752
    %s4756 = scalar_lea.vmem %s6, 14
    %v4757 = vld [vmem:[%s4756] sm:$0x3]
    %v4759 = vsel %vm3682, %v4757, 0
    %4761 = vmatprep.subr.mxu0 0.0
    %4762 = vmatpush1.msra.mxu0 %v3680
    %4763 = vmatprep.subr.mxu0 0.0
    %4764 = vmatpush1.msra.mxu0 0.0
    %4765 = vmatprep.subr.mxu0 0.0
    %4766 = vmatpush1.msra.mxu0 0.0
    %4767 = vmatprep.subr.mxu0 0.0
    %4768 = vmatpush1.msra.mxu0 0.0
    %4769 = vmatprep.subr.mxu0 0.0
    %4770 = vmatpush1.msra.mxu0 0.0
    %4771 = vmatprep.subr.mxu0 0.0
    %4772 = vmatpush1.msra.mxu0 0.0
    %4773 = vmatprep.subr.mxu0 0.0
    %4774 = vmatpush1.msra.mxu0 0.0
    %4775 = vmatprep.subr.mxu0 0.0
    %4776 = vmatpush1.msra.mxu0 0.0
    %4777 = vmatprep.subr.mxu0 0.0
    %4778 = vmatpush1.msra.mxu0 0.0
    %4779 = vmatprep.subr.mxu0 0.0
    %4780 = vmatpush1.msra.mxu0 0.0
    %4781 = vmatprep.subr.mxu0 0.0
    %4782 = vmatpush1.msra.mxu0 0.0
    %4783 = vmatprep.subr.mxu0 0.0
    %4784 = vmatpush1.msra.mxu0 0.0
    %4785 = vmatprep.subr.mxu0 0.0
    %4786 = vmatpush1.msra.mxu0 0.0
    %4787 = vmatprep.subr.mxu0 0.0
    %4788 = vmatpush1.msra.mxu0 0.0
    %4789 = vmatprep.subr.mxu0 0.0
    %4790 = vmatpush1.msra.mxu0 0.0
    %4791 = vmatprep.subr.mxu0 0.0
    %4792 = vmatpush1.msra.mxu0 0.0
    %4793 = vmatprep.subr.mxu0 0.0
    %4794 = vmatpush1.msra.mxu0 0.0
    %4795 = vmatprep.subr.mxu0 0.0
    %4796 = vmatpush1.msra.mxu0 0.0
    %4797 = vmatprep.subr.mxu0 0.0
    %4798 = vmatpush1.msra.mxu0 0.0
    %4799 = vmatprep.subr.mxu0 0.0
    %4800 = vmatpush1.msra.mxu0 0.0
    %4801 = vmatprep.subr.mxu0 0.0
    %4802 = vmatpush1.msra.mxu0 0.0
    %4803 = vmatprep.subr.mxu0 0.0
    %4804 = vmatpush1.msra.mxu0 0.0
    %4805 = vmatprep.subr.mxu0 0.0
    %4806 = vmatpush1.msra.mxu0 0.0
    %4807 = vmatprep.subr.mxu0 0.0
    %4808 = vmatpush1.msra.mxu0 0.0
    %4809 = vmatprep.subr.mxu0 0.0
    %4810 = vmatpush1.msra.mxu0 0.0
    %4811 = vmatprep.subr.mxu0 0.0
    %4812 = vmatpush1.msra.mxu0 0.0
    %4813 = vmatprep.subr.mxu0 0.0
    %4814 = vmatpush1.msra.mxu0 0.0
    %4815 = vmatprep.subr.mxu0 0.0
    %4816 = vmatpush1.msra.mxu0 0.0
    %4817 = vmatprep.subr.mxu0 0.0
    %4818 = vmatpush1.msra.mxu0 0.0
    %4819 = vmatprep.subr.mxu0 0.0
    %4820 = vmatpush1.msra.mxu0 0.0
    %4821 = vmatprep.subr.mxu0 0.0
    %4822 = vmatpush1.msra.mxu0 0.0
    %4823 = vmatprep.subr.mxu0 0.0
    %4824 = vmatpush1.msra.mxu0 0.0
    %4825 = vmatprep.mubr.f32.mxu0 0.0
    %4826 = vmatmul.mubr.f32.gmra.mrb[0].mxu0 %v4759
    %v4827 = vpop.f32.mrb[0].mxu0
    %v4828 = vadd.f32 0.0, %v4827
    %v4829 = vpop.f32.mrb[0].mxu0
    %4830 = vdwg.mxu0
    %s4831 = scalar_lea.vmem %s7, 224
    %v4832 = vld [vmem:[%s4831] sm:$0xff]
    %v4833 = vld [vmem:[%s4831 + $0x8] sm:$0xff]
    %v4834 = vld [vmem:[%s4831 + $0x10] sm:$0xff]
    %v4835 = vld [vmem:[%s4831 + $0x18] sm:$0xff]
    %v4837 = vsel %vm258, %v4828, 0
    %4839 = vmatprep.subr.mxu0 0.0
    %4840 = vmatpush1.msra.mxu0 %v4832
    %4841 = vmatprep.subr.mxu0 0.0
    %4842 = vmatpush1.msra.mxu0 %v4833
    %4843 = vmatprep.subr.mxu0 0.0
    %4844 = vmatpush1.msra.mxu0 %v4834
    %4845 = vmatprep.subr.mxu0 0.0
    %4846 = vmatpush1.msra.mxu0 %v4835
    %4847 = vmatprep.subr.mxu0 0.0
    %4848 = vmatpush1.msra.mxu0 0.0
    %4849 = vmatprep.subr.mxu0 0.0
    %4850 = vmatpush1.msra.mxu0 0.0
    %4851 = vmatprep.subr.mxu0 0.0
    %4852 = vmatpush1.msra.mxu0 0.0
    %4853 = vmatprep.subr.mxu0 0.0
    %4854 = vmatpush1.msra.mxu0 0.0
    %4855 = vmatprep.subr.mxu0 0.0
    %4856 = vmatpush1.msra.mxu0 0.0
    %4857 = vmatprep.subr.mxu0 0.0
    %4858 = vmatpush1.msra.mxu0 0.0
    %4859 = vmatprep.subr.mxu0 0.0
    %4860 = vmatpush1.msra.mxu0 0.0
    %4861 = vmatprep.subr.mxu0 0.0
    %4862 = vmatpush1.msra.mxu0 0.0
    %4863 = vmatprep.subr.mxu0 0.0
    %4864 = vmatpush1.msra.mxu0 0.0
    %4865 = vmatprep.subr.mxu0 0.0
    %4866 = vmatpush1.msra.mxu0 0.0
    %4867 = vmatprep.subr.mxu0 0.0
    %4868 = vmatpush1.msra.mxu0 0.0
    %4869 = vmatprep.subr.mxu0 0.0
    %4870 = vmatpush1.msra.mxu0 0.0
    %4871 = vmatprep.subr.mxu0 0.0
    %4872 = vmatpush1.msra.mxu0 0.0
    %4873 = vmatprep.subr.mxu0 0.0
    %4874 = vmatpush1.msra.mxu0 0.0
    %4875 = vmatprep.subr.mxu0 0.0
    %4876 = vmatpush1.msra.mxu0 0.0
    %4877 = vmatprep.subr.mxu0 0.0
    %4878 = vmatpush1.msra.mxu0 0.0
    %4879 = vmatprep.subr.mxu0 0.0
    %4880 = vmatpush1.msra.mxu0 0.0
    %4881 = vmatprep.subr.mxu0 0.0
    %4882 = vmatpush1.msra.mxu0 0.0
    %4883 = vmatprep.subr.mxu0 0.0
    %4884 = vmatpush1.msra.mxu0 0.0
    %4885 = vmatprep.subr.mxu0 0.0
    %4886 = vmatpush1.msra.mxu0 0.0
    %4887 = vmatprep.subr.mxu0 0.0
    %4888 = vmatpush1.msra.mxu0 0.0
    %4889 = vmatprep.subr.mxu0 0.0
    %4890 = vmatpush1.msra.mxu0 0.0
    %4891 = vmatprep.subr.mxu0 0.0
    %4892 = vmatpush1.msra.mxu0 0.0
    %4893 = vmatprep.subr.mxu0 0.0
    %4894 = vmatpush1.msra.mxu0 0.0
    %4895 = vmatprep.subr.mxu0 0.0
    %4896 = vmatpush1.msra.mxu0 0.0
    %4897 = vmatprep.subr.mxu0 0.0
    %4898 = vmatpush1.msra.mxu0 0.0
    %4899 = vmatprep.subr.mxu0 0.0
    %4900 = vmatpush1.msra.mxu0 0.0
    %4901 = vmatprep.subr.mxu0 0.0
    %4902 = vmatpush1.msra.mxu0 0.0
    %4903 = vmatprep.mubr.f32.mxu0 0.0
    %4904 = vmatmul.mubr.f32.gmra.mrb[0].mxu0 %v4837
    %v4905 = vpop.f32.mrb[0].mxu0
    %v4906 = vadd.f32 0.0, %v4905
    %v4907 = vpop.f32.mrb[0].mxu0
    %4908 = vdwg.mxu0
    %v4909 = vadd.f32 %v4755, %v4906
    %s4910 = scalar_lea.vmem %s6, 16
    %v4911 = vld [vmem:[%s4910] sm:$0x3]
    %v4913 = vsel %vm3682, %v4911, 0
    %4915 = vmatprep.subr.mxu0 0.0
    %4916 = vmatpush1.msra.mxu0 %v3680
    %4917 = vmatprep.subr.mxu0 0.0
    %4918 = vmatpush1.msra.mxu0 0.0
    %4919 = vmatprep.subr.mxu0 0.0
    %4920 = vmatpush1.msra.mxu0 0.0
    %4921 = vmatprep.subr.mxu0 0.0
    %4922 = vmatpush1.msra.mxu0 0.0
    %4923 = vmatprep.subr.mxu0 0.0
    %4924 = vmatpush1.msra.mxu0 0.0
    %4925 = vmatprep.subr.mxu0 0.0
    %4926 = vmatpush1.msra.mxu0 0.0
    %4927 = vmatprep.subr.mxu0 0.0
    %4928 = vmatpush1.msra.mxu0 0.0
    %4929 = vmatprep.subr.mxu0 0.0
    %4930 = vmatpush1.msra.mxu0 0.0
    %4931 = vmatprep.subr.mxu0 0.0
    %4932 = vmatpush1.msra.mxu0 0.0
    %4933 = vmatprep.subr.mxu0 0.0
    %4934 = vmatpush1.msra.mxu0 0.0
    %4935 = vmatprep.subr.mxu0 0.0
    %4936 = vmatpush1.msra.mxu0 0.0
    %4937 = vmatprep.subr.mxu0 0.0
    %4938 = vmatpush1.msra.mxu0 0.0
    %4939 = vmatprep.subr.mxu0 0.0
    %4940 = vmatpush1.msra.mxu0 0.0
    %4941 = vmatprep.subr.mxu0 0.0
    %4942 = vmatpush1.msra.mxu0 0.0
    %4943 = vmatprep.subr.mxu0 0.0
    %4944 = vmatpush1.msra.mxu0 0.0
    %4945 = vmatprep.subr.mxu0 0.0
    %4946 = vmatpush1.msra.mxu0 0.0
    %4947 = vmatprep.subr.mxu0 0.0
    %4948 = vmatpush1.msra.mxu0 0.0
    %4949 = vmatprep.subr.mxu0 0.0
    %4950 = vmatpush1.msra.mxu0 0.0
    %4951 = vmatprep.subr.mxu0 0.0
    %4952 = vmatpush1.msra.mxu0 0.0
    %4953 = vmatprep.subr.mxu0 0.0
    %4954 = vmatpush1.msra.mxu0 0.0
    %4955 = vmatprep.subr.mxu0 0.0
    %4956 = vmatpush1.msra.mxu0 0.0
    %4957 = vmatprep.subr.mxu0 0.0
    %4958 = vmatpush1.msra.mxu0 0.0
    %4959 = vmatprep.subr.mxu0 0.0
    %4960 = vmatpush1.msra.mxu0 0.0
    %4961 = vmatprep.subr.mxu0 0.0
    %4962 = vmatpush1.msra.mxu0 0.0
    %4963 = vmatprep.subr.mxu0 0.0
    %4964 = vmatpush1.msra.mxu0 0.0
    %4965 = vmatprep.subr.mxu0 0.0
    %4966 = vmatpush1.msra.mxu0 0.0
    %4967 = vmatprep.subr.mxu0 0.0
    %4968 = vmatpush1.msra.mxu0 0.0
    %4969 = vmatprep.subr.mxu0 0.0
    %4970 = vmatpush1.msra.mxu0 0.0
    %4971 = vmatprep.subr.mxu0 0.0
    %4972 = vmatpush1.msra.mxu0 0.0
    %4973 = vmatprep.subr.mxu0 0.0
    %4974 = vmatpush1.msra.mxu0 0.0
    %4975 = vmatprep.subr.mxu0 0.0
    %4976 = vmatpush1.msra.mxu0 0.0
    %4977 = vmatprep.subr.mxu0 0.0
    %4978 = vmatpush1.msra.mxu0 0.0
    %4979 = vmatprep.mubr.f32.mxu0 0.0
    %4980 = vmatmul.mubr.f32.gmra.mrb[0].mxu0 %v4913
    %v4981 = vpop.f32.mrb[0].mxu0
    %v4982 = vadd.f32 0.0, %v4981
    %v4983 = vpop.f32.mrb[0].mxu0
    %4984 = vdwg.mxu0
    %s4985 = scalar_lea.vmem %s7, 256
    %v4986 = vld [vmem:[%s4985] sm:$0xff]
    %v4987 = vld [vmem:[%s4985 + $0x8] sm:$0xff]
    %v4988 = vld [vmem:[%s4985 + $0x10] sm:$0xff]
    %v4989 = vld [vmem:[%s4985 + $0x18] sm:$0xff]
    %v4991 = vsel %vm258, %v4982, 0
    %4993 = vmatprep.subr.mxu0 0.0
    %4994 = vmatpush1.msra.mxu0 %v4986
    %4995 = vmatprep.subr.mxu0 0.0
    %4996 = vmatpush1.msra.mxu0 %v4987
    %4997 = vmatprep.subr.mxu0 0.0
    %4998 = vmatpush1.msra.mxu0 %v4988
    %4999 = vmatprep.subr.mxu0 0.0
    %5000 = vmatpush1.msra.mxu0 %v4989
    %5001 = vmatprep.subr.mxu0 0.0
    %5002 = vmatpush1.msra.mxu0 0.0
    %5003 = vmatprep.subr.mxu0 0.0
    %5004 = vmatpush1.msra.mxu0 0.0
    %5005 = vmatprep.subr.mxu0 0.0
    %5006 = vmatpush1.msra.mxu0 0.0
    %5007 = vmatprep.subr.mxu0 0.0
    %5008 = vmatpush1.msra.mxu0 0.0
    %5009 = vmatprep.subr.mxu0 0.0
    %5010 = vmatpush1.msra.mxu0 0.0
    %5011 = vmatprep.subr.mxu0 0.0
    %5012 = vmatpush1.msra.mxu0 0.0
    %5013 = vmatprep.subr.mxu0 0.0
    %5014 = vmatpush1.msra.mxu0 0.0
    %5015 = vmatprep.subr.mxu0 0.0
    %5016 = vmatpush1.msra.mxu0 0.0
    %5017 = vmatprep.subr.mxu0 0.0
    %5018 = vmatpush1.msra.mxu0 0.0
    %5019 = vmatprep.subr.mxu0 0.0
    %5020 = vmatpush1.msra.mxu0 0.0
    %5021 = vmatprep.subr.mxu0 0.0
    %5022 = vmatpush1.msra.mxu0 0.0
    %5023 = vmatprep.subr.mxu0 0.0
    %5024 = vmatpush1.msra.mxu0 0.0
    %5025 = vmatprep.subr.mxu0 0.0
    %5026 = vmatpush1.msra.mxu0 0.0
    %5027 = vmatprep.subr.mxu0 0.0
    %5028 = vmatpush1.msra.mxu0 0.0
    %5029 = vmatprep.subr.mxu0 0.0
    %5030 = vmatpush1.msra.mxu0 0.0
    %5031 = vmatprep.subr.mxu0 0.0
    %5032 = vmatpush1.msra.mxu0 0.0
    %5033 = vmatprep.subr.mxu0 0.0
    %5034 = vmatpush1.msra.mxu0 0.0
    %5035 = vmatprep.subr.mxu0 0.0
    %5036 = vmatpush1.msra.mxu0 0.0
    %5037 = vmatprep.subr.mxu0 0.0
    %5038 = vmatpush1.msra.mxu0 0.0
    %5039 = vmatprep.subr.mxu0 0.0
    %5040 = vmatpush1.msra.mxu0 0.0
    %5041 = vmatprep.subr.mxu0 0.0
    %5042 = vmatpush1.msra.mxu0 0.0
    %5043 = vmatprep.subr.mxu0 0.0
    %5044 = vmatpush1.msra.mxu0 0.0
    %5045 = vmatprep.subr.mxu0 0.0
    %5046 = vmatpush1.msra.mxu0 0.0
    %5047 = vmatprep.subr.mxu0 0.0
    %5048 = vmatpush1.msra.mxu0 0.0
    %5049 = vmatprep.subr.mxu0 0.0
    %5050 = vmatpush1.msra.mxu0 0.0
    %5051 = vmatprep.subr.mxu0 0.0
    %5052 = vmatpush1.msra.mxu0 0.0
    %5053 = vmatprep.subr.mxu0 0.0
    %5054 = vmatpush1.msra.mxu0 0.0
    %5055 = vmatprep.subr.mxu0 0.0
    %5056 = vmatpush1.msra.mxu0 0.0
    %5057 = vmatprep.mubr.f32.mxu0 0.0
    %5058 = vmatmul.mubr.f32.gmra.mrb[0].mxu0 %v4991
    %v5059 = vpop.f32.mrb[0].mxu0
    %v5060 = vadd.f32 0.0, %v5059
    %v5061 = vpop.f32.mrb[0].mxu0
    %5062 = vdwg.mxu0
    %v5063 = vadd.f32 %v4909, %v5060
    %vm5064 = vcmask 254976
    %v5065 = vsel %vm5064, %v5063, 0.0
    %v5066 = vrot.slane %v5065, 4
    %v5067 = vadd.f32 %v5065, %v5066
    %v5068 = vrot.slane %v5067, 2
    %v5069 = vadd.f32 %v5067, %v5068
    %v5070 = vrot.slane %v5069, 1
    %v5071 = vadd.f32 %v5069, %v5070
    %v5072 = vmul.f32 %v5071, 0.5
    %v5073 = vmul.f32 %v5063, %v5063
    %v5074 = vsel %vm5064, %v5073, 0.0
    %v5075 = vrot.slane %v5074, 4
    %v5076 = vadd.f32 %v5074, %v5075
    %v5077 = vrot.slane %v5076, 2
    %v5078 = vadd.f32 %v5076, %v5077
    %v5079 = vrot.slane %v5078, 1
    %v5080 = vadd.f32 %v5078, %v5079
    %v5081 = vmul.f32 %v5080, 0.5
    %v5082 = vmul.f32 %v5072, %v5072
    %v5083 = vsub.f32 %v5081, %v5082
    %s5084 = scalar_lea.vmem %s8, 3
    %v5085 = vld [vmem:[%s5084] sm:$0x1]
    %v5086 = vadd.f32 %v5083, 1e-05
    %v5087 = vrsqrt.pop %v5086
    %v5088 = vmul.f32 %v5085, %v5087
    %v5089 = vsub.f32 %v5063, %v5072
    %v5091 = vlaneseq
    %v5092 = vshrl.u32 %v5091, 7
    %v5093 = vsub.s32 0, %v5092
    %v5094 = vrot.slane %v5088, %v5093
    %v5096 = vmul.f32 %v5089, %v5094
    %s5097 = scalar_lea.vmem %s9, 3
    %v5098 = vld [vmem:[%s5097] sm:$0x1]
    %v5100 = vlaneseq
    %v5101 = vshrl.u32 %v5100, 7
    %v5102 = vsub.s32 0, %v5101
    %v5103 = vrot.slane %v5098, %v5102
    %v5105 = vadd.f32 %v5096, %v5103
    %v5106 = vmax.f32 %v5105, 0.0
    %v5107 = vld [vmem:[%s10] sm:$0xff]
    %v5108 = vld [vmem:[%s10 + $0x8] sm:$0xff]
    %v5109 = vld [vmem:[%s10 + $0x10] sm:$0xff]
    %v5110 = vld [vmem:[%s10 + $0x18] sm:$0xff]
    %v5111 = vld [vmem:[%s11] sm:$0x1]
    %v5113 = vlaneseq
    %v5114 = vshrl.u32 %v5113, 7
    %v5115 = vsub.s32 0, %v5114
    %v5116 = vrot.slane %v5111, %v5115
    %v5119 = vsel %vm258, %v5106, 0
    %5121 = vmatprep.subr.mxu0 0.0
    %5122 = vmatpush1.msra.mxu0 %v5107
    %5123 = vmatprep.subr.mxu0 0.0
    %5124 = vmatpush1.msra.mxu0 %v5108
    %5125 = vmatprep.subr.mxu0 0.0
    %5126 = vmatpush1.msra.mxu0 %v5109
    %5127 = vmatprep.subr.mxu0 0.0
    %5128 = vmatpush1.msra.mxu0 %v5110
    %5129 = vmatprep.subr.mxu0 0.0
    %5130 = vmatpush1.msra.mxu0 0.0
    %5131 = vmatprep.subr.mxu0 0.0
    %5132 = vmatpush1.msra.mxu0 0.0
    %5133 = vmatprep.subr.mxu0 0.0
    %5134 = vmatpush1.msra.mxu0 0.0
    %5135 = vmatprep.subr.mxu0 0.0
    %5136 = vmatpush1.msra.mxu0 0.0
    %5137 = vmatprep.subr.mxu0 0.0
    %5138 = vmatpush1.msra.mxu0 0.0
    %5139 = vmatprep.subr.mxu0 0.0
    %5140 = vmatpush1.msra.mxu0 0.0
    %5141 = vmatprep.subr.mxu0 0.0
    %5142 = vmatpush1.msra.mxu0 0.0
    %5143 = vmatprep.subr.mxu0 0.0
    %5144 = vmatpush1.msra.mxu0 0.0
    %5145 = vmatprep.subr.mxu0 0.0
    %5146 = vmatpush1.msra.mxu0 0.0
    %5147 = vmatprep.subr.mxu0 0.0
    %5148 = vmatpush1.msra.mxu0 0.0
    %5149 = vmatprep.subr.mxu0 0.0
    %5150 = vmatpush1.msra.mxu0 0.0
    %5151 = vmatprep.subr.mxu0 0.0
    %5152 = vmatpush1.msra.mxu0 0.0
    %5153 = vmatprep.subr.mxu0 0.0
    %5154 = vmatpush1.msra.mxu0 0.0
    %5155 = vmatprep.subr.mxu0 0.0
    %5156 = vmatpush1.msra.mxu0 0.0
    %5157 = vmatprep.subr.mxu0 0.0
    %5158 = vmatpush1.msra.mxu0 0.0
    %5159 = vmatprep.subr.mxu0 0.0
    %5160 = vmatpush1.msra.mxu0 0.0
    %5161 = vmatprep.subr.mxu0 0.0
    %5162 = vmatpush1.msra.mxu0 0.0
    %5163 = vmatprep.subr.mxu0 0.0
    %5164 = vmatpush1.msra.mxu0 0.0
    %5165 = vmatprep.subr.mxu0 0.0
    %5166 = vmatpush1.msra.mxu0 0.0
    %5167 = vmatprep.subr.mxu0 0.0
    %5168 = vmatpush1.msra.mxu0 0.0
    %5169 = vmatprep.subr.mxu0 0.0
    %5170 = vmatpush1.msra.mxu0 0.0
    %5171 = vmatprep.subr.mxu0 0.0
    %5172 = vmatpush1.msra.mxu0 0.0
    %5173 = vmatprep.subr.mxu0 0.0
    %5174 = vmatpush1.msra.mxu0 0.0
    %5175 = vmatprep.subr.mxu0 0.0
    %5176 = vmatpush1.msra.mxu0 0.0
    %5177 = vmatprep.subr.mxu0 0.0
    %5178 = vmatpush1.msra.mxu0 0.0
    %5179 = vmatprep.subr.mxu0 0.0
    %5180 = vmatpush1.msra.mxu0 0.0
    %5181 = vmatprep.subr.mxu0 0.0
    %5182 = vmatpush1.msra.mxu0 0.0
    %5183 = vmatprep.subr.mxu0 0.0
    %5184 = vmatpush1.msra.mxu0 0.0
    %5185 = vmatprep.mubr.f32.mxu0 0.0
    %5186 = vmatmul.mubr.f32.gmra.mrb[0].mxu0 %v5119
    %v5187 = vpop.f32.mrb[0].mxu0
    %v5188 = vadd.f32 %v5116, %v5187
    %v5189 = vpop.f32.mrb[0].mxu0
    %5190 = vdwg.mxu0
    %vm5191 = vcmask 33792
    %5192 = vst.msk [vmem:[#allocation2] sm:$0x3] %vm5191, %v5188
    // Predicated region
    $region50: #{cond_conv_net_forward.1} parent=1 // pred_check
      _
    $region51: #{cond_conv_net_forward.1} parent=1 // pred_check_branch
      %5194 = sbr.rel (0) target = $region53
    $region52: #{cond_conv_net_forward.1} parent=1 // pred_region
      %s5196 = ssub.s32 32, 32
      %5197 = vsyncadd [#allocation3], %s5196
      %s5199 = sshll.u32 [#allocation2], 4
      %s5200 = int_to_ptr.vmem [resolvable:$true] %s5199
      %5202 = dma.vmem_to_hbm [thread:$0]  %s5200, 32, %s12, [#allocation3]
    $region53: #{cond_conv_net_forward.1} parent=1 // pred_fallthru
      _
    // Predicated region
    $region54: #{cond_conv_net_forward.1} parent=1 // pred_check
      _
    $region55: #{cond_conv_net_forward.1} parent=1 // pred_check_branch
      %5204 = sbr.rel (0) target = $region57
    $region56: #{cond_conv_net_forward.1} parent=1 // pred_region
      %5205 = dma.done [#allocation3], 32
    $region57: #{cond_conv_net_forward.1} parent=1 // pred_fallthru
      _
    %5206 = vsyncpa [#allocation3], 1

</llo_original>
